<compile_context>
chip_gen: v7x
topology: tpu7x:2x2x1
jax: 0.10.0
libtpu: 0.0.40
codegen_flags: <defaults>
</compile_context>

<pallas_src>
import functools
import math

import jax
import jax.numpy as jnp
from jax.experimental import pallas as pl
from jax.experimental.pallas import tpu as pltpu


def _layernorm(x, gamma, beta, eps=1e-5):
    mu = jnp.mean(x, axis=-1, keepdims=True)
    var = jnp.mean((x - mu) ** 2, axis=-1, keepdims=True)
    return (x - mu) * jax.lax.rsqrt(var + eps) * gamma + beta


# --------------------------------------------------------------------------
# Kernel 1: K/V projection, once per (batch, layer), head-batched bf16 output
# --------------------------------------------------------------------------
def kv_proj_kernel(x_ref, wk_ref, bk_ref, wv_ref, bv_ref, k_ref, v_ref,
                   *, n_heads):
    x = x_ref[0].astype(jnp.bfloat16)                        # (ts, D)
    ts, d_model = x.shape
    hd = d_model // n_heads
    k = jnp.dot(x, wk_ref[...], preferred_element_type=jnp.float32) + bk_ref[...]
    v = jnp.dot(x, wv_ref[...], preferred_element_type=jnp.float32) + bv_ref[...]
    # Head-batched layout (H, ts, hd): relayout done once per sequence tile,
    # so the attention kernel needs no per-(q,kv)-step K/V transposes.
    k_ref[0] = jnp.transpose(k.reshape(ts, n_heads, hd), (1, 0, 2)).astype(jnp.bfloat16)
    v_ref[0] = jnp.transpose(v.reshape(ts, n_heads, hd), (1, 0, 2)).astype(jnp.bfloat16)


# --------------------------------------------------------------------------
# Kernel 2: flash attention (online softmax over KV tiles) + out-proj + FFN
# --------------------------------------------------------------------------
def attn_ffn_kernel(xq_ref, k_ref, v_ref,
                    wq_ref, bq_ref, wo_ref, bo_ref,
                    w1_ref, b1_ref, w2_ref, b2_ref,
                    g1_ref, be1_ref, g2_ref, be2_ref,
                    o_ref,
                    q_sc, m_sc, l_sc, acc_sc,
                    *, n_heads, d_model):
    hd = d_model // n_heads
    kv = pl.program_id(2)

    @pl.when(kv == 0)
    def _():
        # Q projection (1/sqrt(hd) pre-folded into wq/bq), once per query tile.
        q = jnp.dot(xq_ref[0].astype(jnp.bfloat16), wq_ref[...],
                    preferred_element_type=jnp.float32) + bq_ref[...]
        tq = q.shape[0]
        q_sc[...] = jnp.transpose(q.reshape(tq, n_heads, hd),
                                  (1, 0, 2)).astype(jnp.bfloat16)
        m_sc[...] = jnp.full(m_sc.shape, -jnp.inf, dtype=m_sc.dtype)
        l_sc[...] = jnp.zeros(l_sc.shape, dtype=l_sc.dtype)
        acc_sc[...] = jnp.zeros(acc_sc.shape, dtype=acc_sc.dtype)

    # ---- online-softmax update for this KV tile ----
    s = jnp.einsum('hqc,hkc->hqk', q_sc[...], k_ref[0],
                   preferred_element_type=jnp.float32)          # (H, tq, tkv)
    m_prev = m_sc[...]
    m_new = jnp.maximum(m_prev, jnp.max(s, axis=-1, keepdims=True))
    alpha = jnp.exp(m_prev - m_new)
    p = jnp.exp(s - m_new)
    l_sc[...] = alpha * l_sc[...] + jnp.sum(p, axis=-1, keepdims=True)
    acc_sc[...] = alpha * acc_sc[...] + jnp.einsum(
        'hqk,hkc->hqc', p.astype(jnp.bfloat16), v_ref[0],
        preferred_element_type=jnp.float32)                     # (H, tq, hd)
    m_sc[...] = m_new

    @pl.when(kv == pl.num_programs(2) - 1)
    def _():
        # approx reciprocal (EUP): ~1e-3 relative error, fine for inference.
        attn = acc_sc[...] * pl.reciprocal(l_sc[...], approx=True)  # (H,tq,hd)
        tq = attn.shape[1]
        attn = jnp.transpose(attn, (1, 0, 2)).reshape(tq, d_model)
        o = jnp.dot(attn.astype(jnp.bfloat16), wo_ref[...],
                    preferred_element_type=jnp.float32) + bo_ref[...]
        x_q = xq_ref[0]                                          # f32 residual
        x1 = _layernorm(x_q + o, g1_ref[...], be1_ref[...])
        h1 = jnp.dot(x1.astype(jnp.bfloat16), w1_ref[...],
                     preferred_element_type=jnp.float32) + b1_ref[...]
        h1 = jnp.maximum(h1, 0.0)
        ff = jnp.dot(h1.astype(jnp.bfloat16), w2_ref[...],
                     preferred_element_type=jnp.float32) + b2_ref[...]
        o_ref[0] = _layernorm(x1 + ff, g2_ref[...], be2_ref[...])


# --------------------------------------------------------------------------
# Wrappers
# --------------------------------------------------------------------------
def _pick_tile(total, tile):
    return tile if (total >= tile and total % tile == 0) else total


def _vmem_limit(need_bytes):
    try:
        cap = pltpu.get_tpu_info().vmem_capacity_bytes
    except Exception:  # older runtimes / no query support
        cap = 64 * 1024 * 1024
    limit = max(int(need_bytes * 1.5) + (8 << 20), 32 << 20)
    return int(max(min(limit, cap - (8 << 20), 112 << 20), 16 << 20))


def _const_spec(shape):
    # Grid-invariant block: constant index map + single buffer (no re-fetch).
    return pl.BlockSpec(shape, lambda *args: (0,) * len(shape),
                        pipeline_mode=pl.Buffered(1))


def kv_projection(x, p, *, n_heads, s_tile=256):
    B, S, D = x.shape
    hd = D // n_heads
    ts = _pick_tile(S, s_tile)
    n_s = S // ts
    need = (2 * D * D * 2) + 2 * 2 * (ts * D * 4) + 2 * 2 * (n_heads * ts * hd * 2) \
        + 4 * ts * D * 4
    kernel = functools.partial(kv_proj_kernel, n_heads=n_heads)
    return pl.pallas_call(
        kernel,
        out_shape=(jax.ShapeDtypeStruct((B, n_heads, S, hd), jnp.bfloat16),
                   jax.ShapeDtypeStruct((B, n_heads, S, hd), jnp.bfloat16)),
        grid=(B, n_s),
        in_specs=[
            pl.BlockSpec((1, ts, D), lambda b, s: (b, s, 0)),
            _const_spec((D, D)), _const_spec((1, D)),
            _const_spec((D, D)), _const_spec((1, D)),
        ],
        out_specs=(
            pl.BlockSpec((1, n_heads, ts, hd), lambda b, s: (b, 0, s, 0)),
            pl.BlockSpec((1, n_heads, ts, hd), lambda b, s: (b, 0, s, 0)),
        ),
        compiler_params=pltpu.CompilerParams(
            dimension_semantics=("parallel", "parallel"),
            vmem_limit_bytes=_vmem_limit(need)),
    )(x, p["wk_t"], p["bk"], p["wv_t"], p["bv"])


def encoder_block(x, p, *, n_heads, q_tile=256, kv_tile=256, s_tile=256):
    """One EncoderBlock forward. x: (B, S, D) fp32. Dropout is identity."""
    B, S, D = x.shape
    FF = p["w1_t"].shape[1]
    hd = D // n_heads
    assert D % n_heads == 0

    # ---- K/V projected once per (batch, layer) ----
    k, v = kv_projection(x, p, n_heads=n_heads, s_tile=s_tile)

    # TODO(synk): auto-select 128 on v5e (128x128 MXU), 256 on v6e/v7x.
    tq = _pick_tile(S, q_tile)
    tkv = _pick_tile(S, kv_tile)
    n_q, n_kv = S // tq, S // tkv

    weights_b = 2 * (2 * D * D + 2 * D * FF)                       # bf16, single-buffered
    blocks_b = 2 * (2 * tq * D * 4) + 2 * (2 * n_heads * tkv * hd * 2)
    scratch_b = n_heads * tq * hd * (2 + 4) + 2 * n_heads * tq * 4
    act_b = 2 * n_heads * tq * tkv * 4 + tq * FF * 4 + 6 * tq * D * 4
    need = weights_b + blocks_b + scratch_b + act_b

    kernel = functools.partial(attn_ffn_kernel, n_heads=n_heads, d_model=D)

    return pl.pallas_call(
        kernel,
        out_shape=jax.ShapeDtypeStruct((B, S, D), jnp.float32),
        grid=(B, n_q, n_kv),
        in_specs=[
            pl.BlockSpec((1, tq, D), lambda b, q, kv: (b, q, 0)),              # x query tile (f32)
            pl.BlockSpec((1, n_heads, tkv, hd), lambda b, q, kv: (b, 0, kv, 0)),  # K tile (bf16)
            pl.BlockSpec((1, n_heads, tkv, hd), lambda b, q, kv: (b, 0, kv, 0)),  # V tile (bf16)
            _const_spec((D, D)), _const_spec((1, D)),                          # wq (scaled), bq (scaled)
            _const_spec((D, D)), _const_spec((1, D)),                          # wo, bo
            _const_spec((D, FF)), _const_spec((1, FF)),                        # w1, b1
            _const_spec((FF, D)), _const_spec((1, D)),                         # w2, b2
            _const_spec((1, D)), _const_spec((1, D)),                          # ln1 gamma/beta
            _const_spec((1, D)), _const_spec((1, D)),                          # ln2 gamma/beta
        ],
        out_specs=pl.BlockSpec((1, tq, D), lambda b, q, kv: (b, q, 0)),
        scratch_shapes=[
            pltpu.VMEM((n_heads, tq, hd), jnp.bfloat16),   # Q (scaled, head-batched)
            pltpu.VMEM((n_heads, tq, 1), jnp.float32),     # m (running max)
            pltpu.VMEM((n_heads, tq, 1), jnp.float32),     # l (running denom)
            pltpu.VMEM((n_heads, tq, hd), jnp.float32),    # acc (running PV)
        ],
        compiler_params=pltpu.CompilerParams(
            dimension_semantics=("parallel", "parallel", "arbitrary"),
            vmem_limit_bytes=_vmem_limit(need)),
    )(x, k, v,
      p["wq_t"], p["bq"], p["wo_t"], p["bo"],
      p["w1_t"], p["b1"], p["w2_t"], p["b2"],
      p["g1"], p["be1"], p["g2"], p["be2"])


def prepare_layer_params(raw, n_heads):
    """One-time host-side layout prep: split QKV, transpose, cast to bf16,
    fold 1/sqrt(head_dim) into the Q projection."""
    D = raw["wo"].shape[0]
    hd = D // n_heads
    scale = 1.0 / math.sqrt(hd)
    wqkv, bqkv = raw["wqkv"], raw["bqkv"]
    return dict(
        wq_t=jnp.asarray(wqkv[:D].T * scale, jnp.bfloat16),
        bq=jnp.asarray(bqkv[:, :D] * scale, jnp.float32),
        wk_t=jnp.asarray(wqkv[D:2 * D].T, jnp.bfloat16),
        bk=jnp.asarray(bqkv[:, D:2 * D], jnp.float32),
        wv_t=jnp.asarray(wqkv[2 * D:].T, jnp.bfloat16),
        bv=jnp.asarray(bqkv[:, 2 * D:], jnp.float32),
        wo_t=jnp.asarray(raw["wo"].T, jnp.bfloat16),
        bo=raw["bo"],
        w1_t=jnp.asarray(raw["w1"].T, jnp.bfloat16),
        b1=raw["b1"],
        w2_t=jnp.asarray(raw["w2"].T, jnp.bfloat16),
        b2=raw["b2"],
        g1=raw["g1"], be1=raw["be1"], g2=raw["g2"], be2=raw["be2"],
    )


@functools.partial(jax.jit, static_argnames=("n_heads",))
def transformer_encoder(x, prepared_layers, *, n_heads):
    for p in prepared_layers:
        x = encoder_block(x, p, n_heads=n_heads)
    return x


# ---------------- pure-JAX f32 reference (sanity check) ----------------
def _ref_block(x, p, n_heads):
    B, S, D = x.shape
    hd = D // n_heads
    qkv = x @ p["wqkv"].T + p["bqkv"][0]
    q, k, v = qkv[..., :D], qkv[..., D:2 * D], qkv[..., 2 * D:]
    q = q.reshape(B, S, n_heads, hd).transpose(0, 2, 1, 3) / math.sqrt(hd)
    k = k.reshape(B, S, n_heads, hd).transpose(0, 2, 1, 3)
    v = v.reshape(B, S, n_heads, hd).transpose(0, 2, 1, 3)
    s = jnp.einsum("bhqd,bhkd->bhqk", q, k)
    p_att = jax.nn.softmax(s, axis=-1)
    o = jnp.einsum("bhqk,bhkd->bhqd", p_att, v).transpose(0, 2, 1, 3).reshape(B, S, D)
    o = o @ p["wo"].T + p["bo"][0]
    x = _layernorm(x + o, p["g1"][0], p["be1"][0])
    h1 = jax.nn.relu(x @ p["w1"].T + p["b1"][0])
    ff = h1 @ p["w2"].T + p["b2"][0]
    return _layernorm(x + ff, p["g2"][0], p["be2"][0])


def _make_params(key, n_layers, d_model, dim_ff):
    layers = []
    for i in range(n_layers):
        ks = jax.random.split(jax.random.fold_in(key, i), 4)
        std = 0.02
        layers.append(dict(
            wqkv=std * jax.random.normal(ks[0], (3 * d_model, d_model), jnp.float32),
            bqkv=jnp.zeros((1, 3 * d_model), jnp.float32),
            wo=std * jax.random.normal(ks[1], (d_model, d_model), jnp.float32),
            bo=jnp.zeros((1, d_model), jnp.float32),
            w1=std * jax.random.normal(ks[2], (dim_ff, d_model), jnp.float32),
            b1=jnp.zeros((1, dim_ff), jnp.float32),
            w2=std * jax.random.normal(ks[3], (d_model, dim_ff), jnp.float32),
            b2=jnp.zeros((1, d_model), jnp.float32),
            g1=jnp.ones((1, d_model), jnp.float32),
            be1=jnp.zeros((1, d_model), jnp.float32),
            g2=jnp.ones((1, d_model), jnp.float32),
            be2=jnp.zeros((1, d_model), jnp.float32),
        ))
    return layers


if __name__ == "__main__":
    # small shapes consistent with the module
    B, S, D = 2, 8, 32
    N_HEADS, DIM_FF, N_LAYERS = 4, 64, 2

    key = jax.random.PRNGKey(0)
    x = jax.random.normal(jax.random.fold_in(key, 123), (B, S, D), jnp.float32)
    raw_layers = _make_params(key, N_LAYERS, D, DIM_FF)
    prepared = [prepare_layer_params(p, N_HEADS) for p in raw_layers]

    out = transformer_encoder(x, prepared, n_heads=N_HEADS)
    out = jax.block_until_ready(out)

    # cross-check vs pure-JAX f32 reference (kernel uses bf16 matmuls + approx
    # reciprocal + flash softmax, so tolerance is relaxed accordingly)
    ref = x
    for p in raw_layers:
        ref = _ref_block(ref, p, N_HEADS)
    err = float(jnp.max(jnp.abs(out - ref)))
    assert err < 5e-2, f"mismatch vs reference (max abs err {err})"

    print("KERNEL_OK")
</pallas_src>

<mosaic_0001>
module attributes {stable_mosaic.version = 11 : i64} {
  func.func @kv_proj_kernel(%arg0: i32, %arg1: i32, %arg2: memref<1x8x32xf32, #tpu.memory_space<vmem>>, %arg3: memref<32x32xbf16, #tpu.memory_space<vmem>>, %arg4: memref<1x32xf32, #tpu.memory_space<vmem>>, %arg5: memref<32x32xbf16, #tpu.memory_space<vmem>>, %arg6: memref<1x32xf32, #tpu.memory_space<vmem>>, %arg7: memref<1x4x8x8xbf16, #tpu.memory_space<vmem>>, %arg8: memref<1x4x8x8xbf16, #tpu.memory_space<vmem>>) attributes {dimension_semantics = [#tpu.dimension_semantics<parallel>, #tpu.dimension_semantics<parallel>], iteration_bounds = array<i64: 2, 1>, scalar_prefetch = 0 : i64, scratch_operands = 0 : i64, tpu.core_type = #tpu.core_type<tc>, window_params = [{transform_indices = @transform_0, window_bounds = array<i64: 1, 8, 32>}, {pipeline_mode = #tpu.pipeline_mode<synchronous>, transform_indices = @transform_1, window_bounds = array<i64: 32, 32>}, {pipeline_mode = #tpu.pipeline_mode<synchronous>, transform_indices = @transform_2, window_bounds = array<i64: 1, 32>}, {pipeline_mode = #tpu.pipeline_mode<synchronous>, transform_indices = @transform_3, window_bounds = array<i64: 32, 32>}, {pipeline_mode = #tpu.pipeline_mode<synchronous>, transform_indices = @transform_4, window_bounds = array<i64: 1, 32>}, {transform_indices = @transform_5, window_bounds = array<i64: 1, 4, 8, 8>}, {transform_indices = @transform_6, window_bounds = array<i64: 1, 4, 8, 8>}]} {
    %c0 = arith.constant 0 : index
    %c0_0 = arith.constant 0 : index
    %c0_1 = arith.constant 0 : index
    %0 = vector.load %arg2[%c0, %c0_0, %c0_1] : memref<1x8x32xf32, #tpu.memory_space<vmem>>, vector<1x8x32xf32>
    %1 = vector.shape_cast %0 : vector<1x8x32xf32> to vector<8x32xf32>
    %2 = arith.truncf %1 : vector<8x32xf32> to vector<8x32xbf16>
    %c0_2 = arith.constant 0 : index
    %c0_3 = arith.constant 0 : index
    %3 = vector.load %arg3[%c0_2, %c0_3] : memref<32x32xbf16, #tpu.memory_space<vmem>>, vector<32x32xbf16>
    %cst = arith.constant dense<0.000000e+00> : vector<8x32xf32>
    %4 = tpu.matmul %2, %3, %cst {dimension_numbers = #tpu.dot_dimension_numbers<[1], [0], [0], [1], [0, 0, 1, 1], [], []>} : vector<8x32xbf16>, vector<32x32xbf16>, vector<8x32xf32> -> vector<8x32xf32>
    %c0_4 = arith.constant 0 : index
    %c0_5 = arith.constant 0 : index
    %5 = vector.load %arg4[%c0_4, %c0_5] : memref<1x32xf32, #tpu.memory_space<vmem>>, vector<1x32xf32>
    %6 = vector.broadcast %5 : vector<1x32xf32> to vector<8x32xf32>
    %7 = arith.addf %4, %6 : vector<8x32xf32>
    %c0_6 = arith.constant 0 : index
    %c0_7 = arith.constant 0 : index
    %8 = vector.load %arg5[%c0_6, %c0_7] : memref<32x32xbf16, #tpu.memory_space<vmem>>, vector<32x32xbf16>
    %cst_8 = arith.constant dense<0.000000e+00> : vector<8x32xf32>
    %9 = tpu.matmul %2, %8, %cst_8 {dimension_numbers = #tpu.dot_dimension_numbers<[1], [0], [0], [1], [0, 0, 1, 1], [], []>} : vector<8x32xbf16>, vector<32x32xbf16>, vector<8x32xf32> -> vector<8x32xf32>
    %c0_9 = arith.constant 0 : index
    %c0_10 = arith.constant 0 : index
    %10 = vector.load %arg6[%c0_9, %c0_10] : memref<1x32xf32, #tpu.memory_space<vmem>>, vector<1x32xf32>
    %11 = vector.broadcast %10 : vector<1x32xf32> to vector<8x32xf32>
    %12 = arith.addf %9, %11 : vector<8x32xf32>
    %13 = vector.shape_cast %7 : vector<8x32xf32> to vector<8x4x8xf32>
    %14 = tpu.transpose %13, [1, 0, 2] : vector<8x4x8xf32> -> vector<4x8x8xf32>
    %15 = arith.truncf %14 : vector<4x8x8xf32> to vector<4x8x8xbf16>
    %c0_11 = arith.constant 0 : index
    %c0_12 = arith.constant 0 : index
    %c0_13 = arith.constant 0 : index
    %c0_14 = arith.constant 0 : index
    %16 = vector.load %arg7[%c0_11, %c0_12, %c0_13, %c0_14] : memref<1x4x8x8xbf16, #tpu.memory_space<vmem>>, vector<1x4x8x8xbf16>
    %17 = vector.shape_cast %16 : vector<1x4x8x8xbf16> to vector<4x8x8xbf16>
    %18 = vector.shape_cast %15 : vector<4x8x8xbf16> to vector<1x4x8x8xbf16>
    tpu.vector_store %arg7[%c0_11, %c0_12, %c0_13, %c0_14], %18 {strides = array<i32>} : memref<1x4x8x8xbf16, #tpu.memory_space<vmem>>, vector<1x4x8x8xbf16>,
    %19 = vector.shape_cast %12 : vector<8x32xf32> to vector<8x4x8xf32>
    %20 = tpu.transpose %19, [1, 0, 2] : vector<8x4x8xf32> -> vector<4x8x8xf32>
    %21 = arith.truncf %20 : vector<4x8x8xf32> to vector<4x8x8xbf16>
    %c0_15 = arith.constant 0 : index
    %c0_16 = arith.constant 0 : index
    %c0_17 = arith.constant 0 : index
    %c0_18 = arith.constant 0 : index
    %22 = vector.load %arg8[%c0_15, %c0_16, %c0_17, %c0_18] : memref<1x4x8x8xbf16, #tpu.memory_space<vmem>>, vector<1x4x8x8xbf16>
    %23 = vector.shape_cast %22 : vector<1x4x8x8xbf16> to vector<4x8x8xbf16>
    %24 = vector.shape_cast %21 : vector<4x8x8xbf16> to vector<1x4x8x8xbf16>
    tpu.vector_store %arg8[%c0_15, %c0_16, %c0_17, %c0_18], %24 {strides = array<i32>} : memref<1x4x8x8xbf16, #tpu.memory_space<vmem>>, vector<1x4x8x8xbf16>,
    return
  }
  func.func @transform_0(%arg0: i32, %arg1: i32) -> (i32, i32, i32) {
    %c0_i32 = arith.constant 0 : i32
    %c0_i32_0 = arith.constant 0 : i32
    return %arg0, %arg1, %c0_i32 : i32, i32, i32
  }
  func.func @transform_1(%arg0: i32, %arg1: i32) -> (i32, i32) {
    %c0_i32 = arith.constant 0 : i32
    %c0_i32_0 = arith.constant 0 : i32
    %c0_i32_1 = arith.constant 0 : i32
    return %c0_i32, %c0_i32_0 : i32, i32
  }
  func.func @transform_2(%arg0: i32, %arg1: i32) -> (i32, i32) {
    %c0_i32 = arith.constant 0 : i32
    %c0_i32_0 = arith.constant 0 : i32
    %c0_i32_1 = arith.constant 0 : i32
    return %c0_i32, %c0_i32_0 : i32, i32
  }
  func.func @transform_3(%arg0: i32, %arg1: i32) -> (i32, i32) {
    %c0_i32 = arith.constant 0 : i32
    %c0_i32_0 = arith.constant 0 : i32
    %c0_i32_1 = arith.constant 0 : i32
    return %c0_i32, %c0_i32_0 : i32, i32
  }
  func.func @transform_4(%arg0: i32, %arg1: i32) -> (i32, i32) {
    %c0_i32 = arith.constant 0 : i32
    %c0_i32_0 = arith.constant 0 : i32
    %c0_i32_1 = arith.constant 0 : i32
    return %c0_i32, %c0_i32_0 : i32, i32
  }
  func.func @transform_5(%arg0: i32, %arg1: i32) -> (i32, i32, i32, i32) {
    %c0_i32 = arith.constant 0 : i32
    %c0_i32_0 = arith.constant 0 : i32
    %c0_i32_1 = arith.constant 0 : i32
    return %arg0, %c0_i32, %arg1, %c0_i32_0 : i32, i32, i32, i32
  }
  func.func @transform_6(%arg0: i32, %arg1: i32) -> (i32, i32, i32, i32) {
    %c0_i32 = arith.constant 0 : i32
    %c0_i32_0 = arith.constant 0 : i32
    %c0_i32_1 = arith.constant 0 : i32
    return %arg0, %c0_i32, %arg1, %c0_i32_0 : i32, i32, i32, i32
  }
}

module attributes {stable_mosaic.version = 11 : i64} {
  func.func @attn_ffn_kernel(%arg0: i32, %arg1: i32, %arg2: i32, %arg3: memref<1x8x32xf32, #tpu.memory_space<vmem>>, %arg4: memref<1x4x8x8xbf16, #tpu.memory_space<vmem>>, %arg5: memref<1x4x8x8xbf16, #tpu.memory_space<vmem>>, %arg6: memref<32x32xbf16, #tpu.memory_space<vmem>>, %arg7: memref<1x32xf32, #tpu.memory_space<vmem>>, %arg8: memref<32x32xbf16, #tpu.memory_space<vmem>>, %arg9: memref<1x32xf32, #tpu.memory_space<vmem>>, %arg10: memref<32x64xbf16, #tpu.memory_space<vmem>>, %arg11: memref<1x64xf32, #tpu.memory_space<vmem>>, %arg12: memref<64x32xbf16, #tpu.memory_space<vmem>>, %arg13: memref<1x32xf32, #tpu.memory_space<vmem>>, %arg14: memref<1x32xf32, #tpu.memory_space<vmem>>, %arg15: memref<1x32xf32, #tpu.memory_space<vmem>>, %arg16: memref<1x32xf32, #tpu.memory_space<vmem>>, %arg17: memref<1x32xf32, #tpu.memory_space<vmem>>, %arg18: memref<1x8x32xf32, #tpu.memory_space<vmem>>, %arg19: memref<4x8x8xbf16, #tpu.memory_space<vmem>>, %arg20: memref<4x8x1xf32, #tpu.memory_space<vmem>>, %arg21: memref<4x8x1xf32, #tpu.memory_space<vmem>>, %arg22: memref<4x8x8xf32, #tpu.memory_space<vmem>>) attributes {dimension_semantics = [#tpu.dimension_semantics<parallel>, #tpu.dimension_semantics<parallel>, #tpu.dimension_semantics<arbitrary>], iteration_bounds = array<i64: 2, 1, 1>, scalar_prefetch = 0 : i64, scratch_operands = 4 : i64, tpu.core_type = #tpu.core_type<tc>, window_params = [{transform_indices = @transform_0, window_bounds = array<i64: 1, 8, 32>}, {transform_indices = @transform_1, window_bounds = array<i64: 1, 4, 8, 8>}, {transform_indices = @transform_2, window_bounds = array<i64: 1, 4, 8, 8>}, {pipeline_mode = #tpu.pipeline_mode<synchronous>, transform_indices = @transform_3, window_bounds = array<i64: 32, 32>}, {pipeline_mode = #tpu.pipeline_mode<synchronous>, transform_indices = @transform_4, window_bounds = array<i64: 1, 32>}, {pipeline_mode = #tpu.pipeline_mode<synchronous>, transform_indices = @transform_5, window_bounds = array<i64: 32, 32>}, {pipeline_mode = #tpu.pipeline_mode<synchronous>, transform_indices = @transform_6, window_bounds = array<i64: 1, 32>}, {pipeline_mode = #tpu.pipeline_mode<synchronous>, transform_indices = @transform_7, window_bounds = array<i64: 32, 64>}, {pipeline_mode = #tpu.pipeline_mode<synchronous>, transform_indices = @transform_8, window_bounds = array<i64: 1, 64>}, {pipeline_mode = #tpu.pipeline_mode<synchronous>, transform_indices = @transform_9, window_bounds = array<i64: 64, 32>}, {pipeline_mode = #tpu.pipeline_mode<synchronous>, transform_indices = @transform_10, window_bounds = array<i64: 1, 32>}, {pipeline_mode = #tpu.pipeline_mode<synchronous>, transform_indices = @transform_11, window_bounds = array<i64: 1, 32>}, {pipeline_mode = #tpu.pipeline_mode<synchronous>, transform_indices = @transform_12, window_bounds = array<i64: 1, 32>}, {pipeline_mode = #tpu.pipeline_mode<synchronous>, transform_indices = @transform_13, window_bounds = array<i64: 1, 32>}, {pipeline_mode = #tpu.pipeline_mode<synchronous>, transform_indices = @transform_14, window_bounds = array<i64: 1, 32>}, {transform_indices = @transform_15, window_bounds = array<i64: 1, 8, 32>}]} {
    %c0_i32 = arith.constant 0 : i32
    %0 = arith.cmpi eq, %arg2, %c0_i32 : i32
    %1 = arith.extui %0 : i1 to i32
    %c0_i32_0 = arith.constant 0 : i32
    %2 = arith.cmpi ne, %1, %c0_i32_0 : i32
    scf.if %2 {
      %c0_34 = arith.constant 0 : index
      %c0_35 = arith.constant 0 : index
      %c0_36 = arith.constant 0 : index
      %35 = vector.load %arg3[%c0_34, %c0_35, %c0_36] : memref<1x8x32xf32, #tpu.memory_space<vmem>>, vector<1x8x32xf32>
      %36 = vector.shape_cast %35 : vector<1x8x32xf32> to vector<8x32xf32>
      %37 = arith.truncf %36 : vector<8x32xf32> to vector<8x32xbf16>
      %c0_37 = arith.constant 0 : index
      %c0_38 = arith.constant 0 : index
      %38 = vector.load %arg6[%c0_37, %c0_38] : memref<32x32xbf16, #tpu.memory_space<vmem>>, vector<32x32xbf16>
      %cst_39 = arith.constant dense<0.000000e+00> : vector<8x32xf32>
      %39 = tpu.matmul %37, %38, %cst_39 {dimension_numbers = #tpu.dot_dimension_numbers<[1], [0], [0], [1], [0, 0, 1, 1], [], []>} : vector<8x32xbf16>, vector<32x32xbf16>, vector<8x32xf32> -> vector<8x32xf32>
      %c0_40 = arith.constant 0 : index
      %c0_41 = arith.constant 0 : index
      %40 = vector.load %arg7[%c0_40, %c0_41] : memref<1x32xf32, #tpu.memory_space<vmem>>, vector<1x32xf32>
      %41 = vector.broadcast %40 : vector<1x32xf32> to vector<8x32xf32>
      %42 = arith.addf %39, %41 : vector<8x32xf32>
      %43 = vector.shape_cast %42 : vector<8x32xf32> to vector<8x4x8xf32>
      %44 = tpu.transpose %43, [1, 0, 2] : vector<8x4x8xf32> -> vector<4x8x8xf32>
      %45 = arith.truncf %44 : vector<4x8x8xf32> to vector<4x8x8xbf16>
      %c0_42 = arith.constant 0 : index
      %c0_43 = arith.constant 0 : index
      %c0_44 = arith.constant 0 : index
      %46 = vector.load %arg19[%c0_42, %c0_43, %c0_44] : memref<4x8x8xbf16, #tpu.memory_space<vmem>>, vector<4x8x8xbf16>
      tpu.vector_store %arg19[%c0_42, %c0_43, %c0_44], %45 {strides = array<i32>} : memref<4x8x8xbf16, #tpu.memory_space<vmem>>, vector<4x8x8xbf16>,
      %cst_45 = arith.constant 0xFF800000 : f32
      %47 = vector.broadcast %cst_45 : f32 to vector<4x8x1xf32>
      %c0_46 = arith.constant 0 : index
      %c0_47 = arith.constant 0 : index
      %c0_48 = arith.constant 0 : index
      %48 = vector.load %arg20[%c0_46, %c0_47, %c0_48] : memref<4x8x1xf32, #tpu.memory_space<vmem>>, vector<4x8x1xf32>
      tpu.vector_store %arg20[%c0_46, %c0_47, %c0_48], %47 {strides = array<i32>} : memref<4x8x1xf32, #tpu.memory_space<vmem>>, vector<4x8x1xf32>,
      %cst_49 = arith.constant 0.000000e+00 : f32
      %49 = vector.broadcast %cst_49 : f32 to vector<4x8x1xf32>
      %c0_50 = arith.constant 0 : index
      %c0_51 = arith.constant 0 : index
      %c0_52 = arith.constant 0 : index
      %50 = vector.load %arg21[%c0_50, %c0_51, %c0_52] : memref<4x8x1xf32, #tpu.memory_space<vmem>>, vector<4x8x1xf32>
      tpu.vector_store %arg21[%c0_50, %c0_51, %c0_52], %49 {strides = array<i32>} : memref<4x8x1xf32, #tpu.memory_space<vmem>>, vector<4x8x1xf32>,
      %cst_53 = arith.constant 0.000000e+00 : f32
      %51 = vector.broadcast %cst_53 : f32 to vector<4x8x8xf32>
      %c0_54 = arith.constant 0 : index
      %c0_55 = arith.constant 0 : index
      %c0_56 = arith.constant 0 : index
      %52 = vector.load %arg22[%c0_54, %c0_55, %c0_56] : memref<4x8x8xf32, #tpu.memory_space<vmem>>, vector<4x8x8xf32>
      tpu.vector_store %arg22[%c0_54, %c0_55, %c0_56], %51 {strides = array<i32>} : memref<4x8x8xf32, #tpu.memory_space<vmem>>, vector<4x8x8xf32>,
    } else {
    }
    %c0 = arith.constant 0 : index
    %c0_1 = arith.constant 0 : index
    %c0_2 = arith.constant 0 : index
    %3 = vector.load %arg19[%c0, %c0_1, %c0_2] : memref<4x8x8xbf16, #tpu.memory_space<vmem>>, vector<4x8x8xbf16>
    %c0_3 = arith.constant 0 : index
    %c0_4 = arith.constant 0 : index
    %c0_5 = arith.constant 0 : index
    %c0_6 = arith.constant 0 : index
    %4 = vector.load %arg4[%c0_3, %c0_4, %c0_5, %c0_6] : memref<1x4x8x8xbf16, #tpu.memory_space<vmem>>, vector<1x4x8x8xbf16>
    %5 = vector.shape_cast %4 : vector<1x4x8x8xbf16> to vector<4x8x8xbf16>
    "tpu.trace_start"() <{level = 10 : i32, message = "hqc,hkc->hqk"}> : () -> ()
    %cst = arith.constant dense<0.000000e+00> : vector<4x8x8xf32>
    %6 = tpu.matmul %3, %5, %cst {dimension_numbers = #tpu.dot_dimension_numbers<[2], [2], [1], [1], [0, 0, 0, 1, 1, 1], [0], [0]>} : vector<4x8x8xbf16>, vector<4x8x8xbf16>, vector<4x8x8xf32> -> vector<4x8x8xf32>
    "tpu.trace_stop"() : () -> ()
    %c0_7 = arith.constant 0 : index
    %c0_8 = arith.constant 0 : index
    %c0_9 = arith.constant 0 : index
    %7 = vector.load %arg20[%c0_7, %c0_8, %c0_9] : memref<4x8x1xf32, #tpu.memory_space<vmem>>, vector<4x8x1xf32>
    %cst_10 = arith.constant dense<0xFF800000> : vector<4x8xf32>
    %8 = vector.multi_reduction <maximumf>, %6, %cst_10 [2] : vector<4x8x8xf32> to vector<4x8xf32>
    %9 = vector.shape_cast %8 : vector<4x8xf32> to vector<4x8x1xf32>
    %10 = arith.maximumf %7, %9 : vector<4x8x1xf32>
    %11 = arith.subf %7, %10 : vector<4x8x1xf32>
    %12 = math.exp %11 : vector<4x8x1xf32>
    %13 = vector.broadcast %10 : vector<4x8x1xf32> to vector<4x8x8xf32>
    %14 = arith.subf %6, %13 : vector<4x8x8xf32>
    %15 = math.exp %14 : vector<4x8x8xf32>
    %c0_11 = arith.constant 0 : index
    %c0_12 = arith.constant 0 : index
    %c0_13 = arith.constant 0 : index
    %16 = vector.load %arg21[%c0_11, %c0_12, %c0_13] : memref<4x8x1xf32, #tpu.memory_space<vmem>>, vector<4x8x1xf32>
    %17 = arith.mulf %12, %16 : vector<4x8x1xf32>
    %cst_14 = arith.constant dense<0.000000e+00> : vector<4x8xf32>
    %18 = vector.multi_reduction <add>, %15, %cst_14 [2] : vector<4x8x8xf32> to vector<4x8xf32>
    %19 = vector.shape_cast %18 : vector<4x8xf32> to vector<4x8x1xf32>
    %20 = arith.addf %17, %19 : vector<4x8x1xf32>
    %c0_15 = arith.constant 0 : index
    %c0_16 = arith.constant 0 : index
    %c0_17 = arith.constant 0 : index
    %21 = vector.load %arg21[%c0_15, %c0_16, %c0_17] : memref<4x8x1xf32, #tpu.memory_space<vmem>>, vector<4x8x1xf32>
    tpu.vector_store %arg21[%c0_15, %c0_16, %c0_17], %20 {strides = array<i32>} : memref<4x8x1xf32, #tpu.memory_space<vmem>>, vector<4x8x1xf32>,
    %c0_18 = arith.constant 0 : index
    %c0_19 = arith.constant 0 : index
    %c0_20 = arith.constant 0 : index
    %22 = vector.load %arg22[%c0_18, %c0_19, %c0_20] : memref<4x8x8xf32, #tpu.memory_space<vmem>>, vector<4x8x8xf32>
    %23 = vector.broadcast %12 : vector<4x8x1xf32> to vector<4x8x8xf32>
    %24 = arith.mulf %23, %22 : vector<4x8x8xf32>
    %25 = arith.truncf %15 : vector<4x8x8xf32> to vector<4x8x8xbf16>
    %c0_21 = arith.constant 0 : index
    %c0_22 = arith.constant 0 : index
    %c0_23 = arith.constant 0 : index
    %c0_24 = arith.constant 0 : index
    %26 = vector.load %arg5[%c0_21, %c0_22, %c0_23, %c0_24] : memref<1x4x8x8xbf16, #tpu.memory_space<vmem>>, vector<1x4x8x8xbf16>
    %27 = vector.shape_cast %26 : vector<1x4x8x8xbf16> to vector<4x8x8xbf16>
    "tpu.trace_start"() <{level = 10 : i32, message = "hqk,hkc->hqc"}> : () -> ()
    %cst_25 = arith.constant dense<0.000000e+00> : vector<4x8x8xf32>
    %28 = tpu.matmul %25, %27, %cst_25 {dimension_numbers = #tpu.dot_dimension_numbers<[2], [1], [1], [2], [0, 0, 0, 1, 1, 2], [0], [0]>} : vector<4x8x8xbf16>, vector<4x8x8xbf16>, vector<4x8x8xf32> -> vector<4x8x8xf32>
    "tpu.trace_stop"() : () -> ()
    %29 = arith.addf %24, %28 : vector<4x8x8xf32>
    %c0_26 = arith.constant 0 : index
    %c0_27 = arith.constant 0 : index
    %c0_28 = arith.constant 0 : index
    %30 = vector.load %arg22[%c0_26, %c0_27, %c0_28] : memref<4x8x8xf32, #tpu.memory_space<vmem>>, vector<4x8x8xf32>
    tpu.vector_store %arg22[%c0_26, %c0_27, %c0_28], %29 {strides = array<i32>} : memref<4x8x8xf32, #tpu.memory_space<vmem>>, vector<4x8x8xf32>,
    %c0_29 = arith.constant 0 : index
    %c0_30 = arith.constant 0 : index
    %c0_31 = arith.constant 0 : index
    %31 = vector.load %arg20[%c0_29, %c0_30, %c0_31] : memref<4x8x1xf32, #tpu.memory_space<vmem>>, vector<4x8x1xf32>
    tpu.vector_store %arg20[%c0_29, %c0_30, %c0_31], %10 {strides = array<i32>} : memref<4x8x1xf32, #tpu.memory_space<vmem>>, vector<4x8x1xf32>,
    %c0_i32_32 = arith.constant 0 : i32
    %32 = arith.cmpi eq, %arg2, %c0_i32_32 : i32
    %33 = arith.extui %32 : i1 to i32
    %c0_i32_33 = arith.constant 0 : i32
    %34 = arith.cmpi ne, %33, %c0_i32_33 : i32
    scf.if %34 {
      %c0_34 = arith.constant 0 : index
      %c0_35 = arith.constant 0 : index
      %c0_36 = arith.constant 0 : index
      %35 = vector.load %arg22[%c0_34, %c0_35, %c0_36] : memref<4x8x8xf32, #tpu.memory_space<vmem>>, vector<4x8x8xf32>
      %c0_37 = arith.constant 0 : index
      %c0_38 = arith.constant 0 : index
      %c0_39 = arith.constant 0 : index
      %36 = vector.load %arg21[%c0_37, %c0_38, %c0_39] : memref<4x8x1xf32, #tpu.memory_space<vmem>>, vector<4x8x1xf32>
      %37 = tpu.reciprocal %36 {approx = true} : vector<4x8x1xf32> -> vector<4x8x1xf32>
      %38 = vector.broadcast %37 : vector<4x8x1xf32> to vector<4x8x8xf32>
      %39 = arith.mulf %35, %38 : vector<4x8x8xf32>
      %40 = tpu.transpose %39, [1, 0, 2] : vector<4x8x8xf32> -> vector<8x4x8xf32>
      %41 = vector.shape_cast %40 : vector<8x4x8xf32> to vector<8x32xf32>
      %42 = arith.truncf %41 : vector<8x32xf32> to vector<8x32xbf16>
      %c0_40 = arith.constant 0 : index
      %c0_41 = arith.constant 0 : index
      %43 = vector.load %arg8[%c0_40, %c0_41] : memref<32x32xbf16, #tpu.memory_space<vmem>>, vector<32x32xbf16>
      %cst_42 = arith.constant dense<0.000000e+00> : vector<8x32xf32>
      %44 = tpu.matmul %42, %43, %cst_42 {dimension_numbers = #tpu.dot_dimension_numbers<[1], [0], [0], [1], [0, 0, 1, 1], [], []>} : vector<8x32xbf16>, vector<32x32xbf16>, vector<8x32xf32> -> vector<8x32xf32>
      %c0_43 = arith.constant 0 : index
      %c0_44 = arith.constant 0 : index
      %45 = vector.load %arg9[%c0_43, %c0_44] : memref<1x32xf32, #tpu.memory_space<vmem>>, vector<1x32xf32>
      %46 = vector.broadcast %45 : vector<1x32xf32> to vector<8x32xf32>
      %47 = arith.addf %44, %46 : vector<8x32xf32>
      %c0_45 = arith.constant 0 : index
      %c0_46 = arith.constant 0 : index
      %c0_47 = arith.constant 0 : index
      %48 = vector.load %arg3[%c0_45, %c0_46, %c0_47] : memref<1x8x32xf32, #tpu.memory_space<vmem>>, vector<1x8x32xf32>
      %49 = vector.shape_cast %48 : vector<1x8x32xf32> to vector<8x32xf32>
      %50 = arith.addf %49, %47 : vector<8x32xf32>
      %c0_48 = arith.constant 0 : index
      %c0_49 = arith.constant 0 : index
      %51 = vector.load %arg14[%c0_48, %c0_49] : memref<1x32xf32, #tpu.memory_space<vmem>>, vector<1x32xf32>
      %c0_50 = arith.constant 0 : index
      %c0_51 = arith.constant 0 : index
      %52 = vector.load %arg15[%c0_50, %c0_51] : memref<1x32xf32, #tpu.memory_space<vmem>>, vector<1x32xf32>
      %cst_52 = arith.constant dense<0.000000e+00> : vector<8xf32>
      %53 = vector.multi_reduction <add>, %50, %cst_52 [1] : vector<8x32xf32> to vector<8xf32>
      %54 = vector.shape_cast %53 : vector<8xf32> to vector<8x1xf32>
      %cst_53 = arith.constant 3.200000e+01 : f32
      %55 = vector.broadcast %cst_53 : f32 to vector<8x1xf32>
      %56 = arith.divf %54, %55 : vector<8x1xf32>
      %57 = vector.broadcast %56 : vector<8x1xf32> to vector<8x32xf32>
      %58 = arith.subf %50, %57 : vector<8x32xf32>
      %59 = arith.mulf %58, %58 : vector<8x32xf32>
      %cst_54 = arith.constant dense<0.000000e+00> : vector<8xf32>
      %60 = vector.multi_reduction <add>, %59, %cst_54 [1] : vector<8x32xf32> to vector<8xf32>
      %61 = vector.shape_cast %60 : vector<8xf32> to vector<8x1xf32>
      %cst_55 = arith.constant 3.200000e+01 : f32
      %62 = vector.broadcast %cst_55 : f32 to vector<8x1xf32>
      %63 = arith.divf %61, %62 : vector<8x1xf32>
      %64 = vector.broadcast %56 : vector<8x1xf32> to vector<8x32xf32>
      %65 = arith.subf %50, %64 : vector<8x32xf32>
      %cst_56 = arith.constant 9.99999974E-6 : f32
      %66 = vector.broadcast %cst_56 : f32 to vector<8x1xf32>
      %67 = arith.addf %63, %66 : vector<8x1xf32>
      %68 = math.rsqrt %67 : vector<8x1xf32>
      %69 = vector.broadcast %68 : vector<8x1xf32> to vector<8x32xf32>
      %70 = arith.mulf %65, %69 : vector<8x32xf32>
      %71 = vector.broadcast %51 : vector<1x32xf32> to vector<8x32xf32>
      %72 = arith.mulf %70, %71 : vector<8x32xf32>
      %73 = vector.broadcast %52 : vector<1x32xf32> to vector<8x32xf32>
      %74 = arith.addf %72, %73 : vector<8x32xf32>
      %75 = arith.truncf %74 : vector<8x32xf32> to vector<8x32xbf16>
      %c0_57 = arith.constant 0 : index
      %c0_58 = arith.constant 0 : index
      %76 = vector.load %arg10[%c0_57, %c0_58] : memref<32x64xbf16, #tpu.memory_space<vmem>>, vector<32x64xbf16>
      %cst_59 = arith.constant dense<0.000000e+00> : vector<8x64xf32>
      %77 = tpu.matmul %75, %76, %cst_59 {dimension_numbers = #tpu.dot_dimension_numbers<[1], [0], [0], [1], [0, 0, 1, 1], [], []>} : vector<8x32xbf16>, vector<32x64xbf16>, vector<8x64xf32> -> vector<8x64xf32>
      %c0_60 = arith.constant 0 : index
      %c0_61 = arith.constant 0 : index
      %78 = vector.load %arg11[%c0_60, %c0_61] : memref<1x64xf32, #tpu.memory_space<vmem>>, vector<1x64xf32>
      %79 = vector.broadcast %78 : vector<1x64xf32> to vector<8x64xf32>
      %80 = arith.addf %77, %79 : vector<8x64xf32>
      %cst_62 = arith.constant 0.000000e+00 : f32
      %81 = vector.broadcast %cst_62 : f32 to vector<8x64xf32>
      %82 = arith.maximumf %80, %81 : vector<8x64xf32>
      %83 = arith.truncf %82 : vector<8x64xf32> to vector<8x64xbf16>
      %c0_63 = arith.constant 0 : index
      %c0_64 = arith.constant 0 : index
      %84 = vector.load %arg12[%c0_63, %c0_64] : memref<64x32xbf16, #tpu.memory_space<vmem>>, vector<64x32xbf16>
      %cst_65 = arith.constant dense<0.000000e+00> : vector<8x32xf32>
      %85 = tpu.matmul %83, %84, %cst_65 {dimension_numbers = #tpu.dot_dimension_numbers<[1], [0], [0], [1], [0, 0, 1, 1], [], []>} : vector<8x64xbf16>, vector<64x32xbf16>, vector<8x32xf32> -> vector<8x32xf32>
      %c0_66 = arith.constant 0 : index
      %c0_67 = arith.constant 0 : index
      %86 = vector.load %arg13[%c0_66, %c0_67] : memref<1x32xf32, #tpu.memory_space<vmem>>, vector<1x32xf32>
      %87 = vector.broadcast %86 : vector<1x32xf32> to vector<8x32xf32>
      %88 = arith.addf %85, %87 : vector<8x32xf32>
      %89 = arith.addf %74, %88 : vector<8x32xf32>
      %c0_68 = arith.constant 0 : index
      %c0_69 = arith.constant 0 : index
      %90 = vector.load %arg16[%c0_68, %c0_69] : memref<1x32xf32, #tpu.memory_space<vmem>>, vector<1x32xf32>
      %c0_70 = arith.constant 0 : index
      %c0_71 = arith.constant 0 : index
      %91 = vector.load %arg17[%c0_70, %c0_71] : memref<1x32xf32, #tpu.memory_space<vmem>>, vector<1x32xf32>
      %cst_72 = arith.constant dense<0.000000e+00> : vector<8xf32>
      %92 = vector.multi_reduction <add>, %89, %cst_72 [1] : vector<8x32xf32> to vector<8xf32>
      %93 = vector.shape_cast %92 : vector<8xf32> to vector<8x1xf32>
      %cst_73 = arith.constant 3.200000e+01 : f32
      %94 = vector.broadcast %cst_73 : f32 to vector<8x1xf32>
      %95 = arith.divf %93, %94 : vector<8x1xf32>
      %96 = vector.broadcast %95 : vector<8x1xf32> to vector<8x32xf32>
      %97 = arith.subf %89, %96 : vector<8x32xf32>
      %98 = arith.mulf %97, %97 : vector<8x32xf32>
      %cst_74 = arith.constant dense<0.000000e+00> : vector<8xf32>
      %99 = vector.multi_reduction <add>, %98, %cst_74 [1] : vector<8x32xf32> to vector<8xf32>
      %100 = vector.shape_cast %99 : vector<8xf32> to vector<8x1xf32>
      %cst_75 = arith.constant 3.200000e+01 : f32
      %101 = vector.broadcast %cst_75 : f32 to vector<8x1xf32>
      %102 = arith.divf %100, %101 : vector<8x1xf32>
      %103 = vector.broadcast %95 : vector<8x1xf32> to vector<8x32xf32>
      %104 = arith.subf %89, %103 : vector<8x32xf32>
      %cst_76 = arith.constant 9.99999974E-6 : f32
      %105 = vector.broadcast %cst_76 : f32 to vector<8x1xf32>
      %106 = arith.addf %102, %105 : vector<8x1xf32>
      %107 = math.rsqrt %106 : vector<8x1xf32>
      %108 = vector.broadcast %107 : vector<8x1xf32> to vector<8x32xf32>
      %109 = arith.mulf %104, %108 : vector<8x32xf32>
      %110 = vector.broadcast %90 : vector<1x32xf32> to vector<8x32xf32>
      %111 = arith.mulf %109, %110 : vector<8x32xf32>
      %112 = vector.broadcast %91 : vector<1x32xf32> to vector<8x32xf32>
      %113 = arith.addf %111, %112 : vector<8x32xf32>
      %c0_77 = arith.constant 0 : index
      %c0_78 = arith.constant 0 : index
      %c0_79 = arith.constant 0 : index
      %114 = vector.load %arg18[%c0_77, %c0_78, %c0_79] : memref<1x8x32xf32, #tpu.memory_space<vmem>>, vector<1x8x32xf32>
      %115 = vector.shape_cast %114 : vector<1x8x32xf32> to vector<8x32xf32>
      %116 = vector.shape_cast %113 : vector<8x32xf32> to vector<1x8x32xf32>
      tpu.vector_store %arg18[%c0_77, %c0_78, %c0_79], %116 {strides = array<i32>} : memref<1x8x32xf32, #tpu.memory_space<vmem>>, vector<1x8x32xf32>,
    } else {
    }
    return
  }
  func.func @transform_0(%arg0: i32, %arg1: i32, %arg2: i32) -> (i32, i32, i32) {
    %c0_i32 = arith.constant 0 : i32
    %c0_i32_0 = arith.constant 0 : i32
    return %arg0, %arg1, %c0_i32 : i32, i32, i32
  }
  func.func @transform_1(%arg0: i32, %arg1: i32, %arg2: i32) -> (i32, i32, i32, i32) {
    %c0_i32 = arith.constant 0 : i32
    %c0_i32_0 = arith.constant 0 : i32
    %c0_i32_1 = arith.constant 0 : i32
    return %arg0, %c0_i32, %arg2, %c0_i32_0 : i32, i32, i32, i32
  }
  func.func @transform_2(%arg0: i32, %arg1: i32, %arg2: i32) -> (i32, i32, i32, i32) {
    %c0_i32 = arith.constant 0 : i32
    %c0_i32_0 = arith.constant 0 : i32
    %c0_i32_1 = arith.constant 0 : i32
    return %arg0, %c0_i32, %arg2, %c0_i32_0 : i32, i32, i32, i32
  }
  func.func @transform_3(%arg0: i32, %arg1: i32, %arg2: i32) -> (i32, i32) {
    %c0_i32 = arith.constant 0 : i32
    %c0_i32_0 = arith.constant 0 : i32
    %c0_i32_1 = arith.constant 0 : i32
    return %c0_i32, %c0_i32_0 : i32, i32
  }
  func.func @transform_4(%arg0: i32, %arg1: i32, %arg2: i32) -> (i32, i32) {
    %c0_i32 = arith.constant 0 : i32
    %c0_i32_0 = arith.constant 0 : i32
    %c0_i32_1 = arith.constant 0 : i32
    return %c0_i32, %c0_i32_0 : i32, i32
  }
  func.func @transform_5(%arg0: i32, %arg1: i32, %arg2: i32) -> (i32, i32) {
    %c0_i32 = arith.constant 0 : i32
    %c0_i32_0 = arith.constant 0 : i32
    %c0_i32_1 = arith.constant 0 : i32
    return %c0_i32, %c0_i32_0 : i32, i32
  }
  func.func @transform_6(%arg0: i32, %arg1: i32, %arg2: i32) -> (i32, i32) {
    %c0_i32 = arith.constant 0 : i32
    %c0_i32_0 = arith.constant 0 : i32
    %c0_i32_1 = arith.constant 0 : i32
    return %c0_i32, %c0_i32_0 : i32, i32
  }
  func.func @transform_7(%arg0: i32, %arg1: i32, %arg2: i32) -> (i32, i32) {
    %c0_i32 = arith.constant 0 : i32
    %c0_i32_0 = arith.constant 0 : i32
    %c0_i32_1 = arith.constant 0 : i32
    return %c0_i32, %c0_i32_0 : i32, i32
  }
  func.func @transform_8(%arg0: i32, %arg1: i32, %arg2: i32) -> (i32, i32) {
    %c0_i32 = arith.constant 0 : i32
    %c0_i32_0 = arith.constant 0 : i32
    %c0_i32_1 = arith.constant 0 : i32
    return %c0_i32, %c0_i32_0 : i32, i32
  }
  func.func @transform_9(%arg0: i32, %arg1: i32, %arg2: i32) -> (i32, i32) {
    %c0_i32 = arith.constant 0 : i32
    %c0_i32_0 = arith.constant 0 : i32
    %c0_i32_1 = arith.constant 0 : i32
    return %c0_i32, %c0_i32_0 : i32, i32
  }
  func.func @transform_10(%arg0: i32, %arg1: i32, %arg2: i32) -> (i32, i32) {
    %c0_i32 = arith.constant 0 : i32
    %c0_i32_0 = arith.constant 0 : i32
    %c0_i32_1 = arith.constant 0 : i32
    return %c0_i32, %c0_i32_0 : i32, i32
  }
  func.func @transform_11(%arg0: i32, %arg1: i32, %arg2: i32) -> (i32, i32) {
    %c0_i32 = arith.constant 0 : i32
    %c0_i32_0 = arith.constant 0 : i32
    %c0_i32_1 = arith.constant 0 : i32
    return %c0_i32, %c0_i32_0 : i32, i32
  }
  func.func @transform_12(%arg0: i32, %arg1: i32, %arg2: i32) -> (i32, i32) {
    %c0_i32 = arith.constant 0 : i32
    %c0_i32_0 = arith.constant 0 : i32
    %c0_i32_1 = arith.constant 0 : i32
    return %c0_i32, %c0_i32_0 : i32, i32
  }
  func.func @transform_13(%arg0: i32, %arg1: i32, %arg2: i32) -> (i32, i32) {
    %c0_i32 = arith.constant 0 : i32
    %c0_i32_0 = arith.constant 0 : i32
    %c0_i32_1 = arith.constant 0 : i32
    return %c0_i32, %c0_i32_0 : i32, i32
  }
  func.func @transform_14(%arg0: i32, %arg1: i32, %arg2: i32) -> (i32, i32) {
    %c0_i32 = arith.constant 0 : i32
    %c0_i32_0 = arith.constant 0 : i32
    %c0_i32_1 = arith.constant 0 : i32
    return %c0_i32, %c0_i32_0 : i32, i32
  }
  func.func @transform_15(%arg0: i32, %arg1: i32, %arg2: i32) -> (i32, i32, i32) {
    %c0_i32 = arith.constant 0 : i32
    %c0_i32_0 = arith.constant 0 : i32
    return %arg0, %arg1, %c0_i32 : i32, i32, i32
  }
}

module attributes {stable_mosaic.version = 11 : i64} {
  func.func @attn_ffn_kernel(%arg0: i32, %arg1: i32, %arg2: i32, %arg3: memref<1x8x32xf32, #tpu.memory_space<vmem>>, %arg4: memref<1x4x8x8xbf16, #tpu.memory_space<vmem>>, %arg5: memref<1x4x8x8xbf16, #tpu.memory_space<vmem>>, %arg6: memref<32x32xbf16, #tpu.memory_space<vmem>>, %arg7: memref<1x32xf32, #tpu.memory_space<vmem>>, %arg8: memref<32x32xbf16, #tpu.memory_space<vmem>>, %arg9: memref<1x32xf32, #tpu.memory_space<vmem>>, %arg10: memref<32x64xbf16, #tpu.memory_space<vmem>>, %arg11: memref<1x64xf32, #tpu.memory_space<vmem>>, %arg12: memref<64x32xbf16, #tpu.memory_space<vmem>>, %arg13: memref<1x32xf32, #tpu.memory_space<vmem>>, %arg14: memref<1x32xf32, #tpu.memory_space<vmem>>, %arg15: memref<1x32xf32, #tpu.memory_space<vmem>>, %arg16: memref<1x32xf32, #tpu.memory_space<vmem>>, %arg17: memref<1x32xf32, #tpu.memory_space<vmem>>, %arg18: memref<1x8x32xf32, #tpu.memory_space<vmem>>, %arg19: memref<4x8x8xbf16, #tpu.memory_space<vmem>>, %arg20: memref<4x8x1xf32, #tpu.memory_space<vmem>>, %arg21: memref<4x8x1xf32, #tpu.memory_space<vmem>>, %arg22: memref<4x8x8xf32, #tpu.memory_space<vmem>>) attributes {dimension_semantics = [#tpu.dimension_semantics<parallel>, #tpu.dimension_semantics<parallel>, #tpu.dimension_semantics<arbitrary>], iteration_bounds = array<i64: 2, 1, 1>, scalar_prefetch = 0 : i64, scratch_operands = 4 : i64, tpu.core_type = #tpu.core_type<tc>, window_params = [{transform_indices = @transform_0, window_bounds = array<i64: 1, 8, 32>}, {transform_indices = @transform_1, window_bounds = array<i64: 1, 4, 8, 8>}, {transform_indices = @transform_2, window_bounds = array<i64: 1, 4, 8, 8>}, {pipeline_mode = #tpu.pipeline_mode<synchronous>, transform_indices = @transform_3, window_bounds = array<i64: 32, 32>}, {pipeline_mode = #tpu.pipeline_mode<synchronous>, transform_indices = @transform_4, window_bounds = array<i64: 1, 32>}, {pipeline_mode = #tpu.pipeline_mode<synchronous>, transform_indices = @transform_5, window_bounds = array<i64: 32, 32>}, {pipeline_mode = #tpu.pipeline_mode<synchronous>, transform_indices = @transform_6, window_bounds = array<i64: 1, 32>}, {pipeline_mode = #tpu.pipeline_mode<synchronous>, transform_indices = @transform_7, window_bounds = array<i64: 32, 64>}, {pipeline_mode = #tpu.pipeline_mode<synchronous>, transform_indices = @transform_8, window_bounds = array<i64: 1, 64>}, {pipeline_mode = #tpu.pipeline_mode<synchronous>, transform_indices = @transform_9, window_bounds = array<i64: 64, 32>}, {pipeline_mode = #tpu.pipeline_mode<synchronous>, transform_indices = @transform_10, window_bounds = array<i64: 1, 32>}, {pipeline_mode = #tpu.pipeline_mode<synchronous>, transform_indices = @transform_11, window_bounds = array<i64: 1, 32>}, {pipeline_mode = #tpu.pipeline_mode<synchronous>, transform_indices = @transform_12, window_bounds = array<i64: 1, 32>}, {pipeline_mode = #tpu.pipeline_mode<synchronous>, transform_indices = @transform_13, window_bounds = array<i64: 1, 32>}, {pipeline_mode = #tpu.pipeline_mode<synchronous>, transform_indices = @transform_14, window_bounds = array<i64: 1, 32>}, {transform_indices = @transform_15, window_bounds = array<i64: 1, 8, 32>}]} {
    %c0_i32 = arith.constant 0 : i32
    %0 = arith.cmpi eq, %arg2, %c0_i32 : i32
    %1 = arith.extui %0 : i1 to i32
    %c0_i32_0 = arith.constant 0 : i32
    %2 = arith.cmpi ne, %1, %c0_i32_0 : i32
    scf.if %2 {
      %c0_34 = arith.constant 0 : index
      %c0_35 = arith.constant 0 : index
      %c0_36 = arith.constant 0 : index
      %35 = vector.load %arg3[%c0_34, %c0_35, %c0_36] : memref<1x8x32xf32, #tpu.memory_space<vmem>>, vector<1x8x32xf32>
      %36 = vector.shape_cast %35 : vector<1x8x32xf32> to vector<8x32xf32>
      %37 = arith.truncf %36 : vector<8x32xf32> to vector<8x32xbf16>
      %c0_37 = arith.constant 0 : index
      %c0_38 = arith.constant 0 : index
      %38 = vector.load %arg6[%c0_37, %c0_38] : memref<32x32xbf16, #tpu.memory_space<vmem>>, vector<32x32xbf16>
      %cst_39 = arith.constant dense<0.000000e+00> : vector<8x32xf32>
      %39 = tpu.matmul %37, %38, %cst_39 {dimension_numbers = #tpu.dot_dimension_numbers<[1], [0], [0], [1], [0, 0, 1, 1], [], []>} : vector<8x32xbf16>, vector<32x32xbf16>, vector<8x32xf32> -> vector<8x32xf32>
      %c0_40 = arith.constant 0 : index
      %c0_41 = arith.constant 0 : index
      %40 = vector.load %arg7[%c0_40, %c0_41] : memref<1x32xf32, #tpu.memory_space<vmem>>, vector<1x32xf32>
      %41 = vector.broadcast %40 : vector<1x32xf32> to vector<8x32xf32>
      %42 = arith.addf %39, %41 : vector<8x32xf32>
      %43 = vector.shape_cast %42 : vector<8x32xf32> to vector<8x4x8xf32>
      %44 = tpu.transpose %43, [1, 0, 2] : vector<8x4x8xf32> -> vector<4x8x8xf32>
      %45 = arith.truncf %44 : vector<4x8x8xf32> to vector<4x8x8xbf16>
      %c0_42 = arith.constant 0 : index
      %c0_43 = arith.constant 0 : index
      %c0_44 = arith.constant 0 : index
      %46 = vector.load %arg19[%c0_42, %c0_43, %c0_44] : memref<4x8x8xbf16, #tpu.memory_space<vmem>>, vector<4x8x8xbf16>
      tpu.vector_store %arg19[%c0_42, %c0_43, %c0_44], %45 {strides = array<i32>} : memref<4x8x8xbf16, #tpu.memory_space<vmem>>, vector<4x8x8xbf16>,
      %cst_45 = arith.constant 0xFF800000 : f32
      %47 = vector.broadcast %cst_45 : f32 to vector<4x8x1xf32>
      %c0_46 = arith.constant 0 : index
      %c0_47 = arith.constant 0 : index
      %c0_48 = arith.constant 0 : index
      %48 = vector.load %arg20[%c0_46, %c0_47, %c0_48] : memref<4x8x1xf32, #tpu.memory_space<vmem>>, vector<4x8x1xf32>
      tpu.vector_store %arg20[%c0_46, %c0_47, %c0_48], %47 {strides = array<i32>} : memref<4x8x1xf32, #tpu.memory_space<vmem>>, vector<4x8x1xf32>,
      %cst_49 = arith.constant 0.000000e+00 : f32
      %49 = vector.broadcast %cst_49 : f32 to vector<4x8x1xf32>
      %c0_50 = arith.constant 0 : index
      %c0_51 = arith.constant 0 : index
      %c0_52 = arith.constant 0 : index
      %50 = vector.load %arg21[%c0_50, %c0_51, %c0_52] : memref<4x8x1xf32, #tpu.memory_space<vmem>>, vector<4x8x1xf32>
      tpu.vector_store %arg21[%c0_50, %c0_51, %c0_52], %49 {strides = array<i32>} : memref<4x8x1xf32, #tpu.memory_space<vmem>>, vector<4x8x1xf32>,
      %cst_53 = arith.constant 0.000000e+00 : f32
      %51 = vector.broadcast %cst_53 : f32 to vector<4x8x8xf32>
      %c0_54 = arith.constant 0 : index
      %c0_55 = arith.constant 0 : index
      %c0_56 = arith.constant 0 : index
      %52 = vector.load %arg22[%c0_54, %c0_55, %c0_56] : memref<4x8x8xf32, #tpu.memory_space<vmem>>, vector<4x8x8xf32>
      tpu.vector_store %arg22[%c0_54, %c0_55, %c0_56], %51 {strides = array<i32>} : memref<4x8x8xf32, #tpu.memory_space<vmem>>, vector<4x8x8xf32>,
    } else {
    }
    %c0 = arith.constant 0 : index
    %c0_1 = arith.constant 0 : index
    %c0_2 = arith.constant 0 : index
    %3 = vector.load %arg19[%c0, %c0_1, %c0_2] : memref<4x8x8xbf16, #tpu.memory_space<vmem>>, vector<4x8x8xbf16>
    %c0_3 = arith.constant 0 : index
    %c0_4 = arith.constant 0 : index
    %c0_5 = arith.constant 0 : index
    %c0_6 = arith.constant 0 : index
    %4 = vector.load %arg4[%c0_3, %c0_4, %c0_5, %c0_6] : memref<1x4x8x8xbf16, #tpu.memory_space<vmem>>, vector<1x4x8x8xbf16>
    %5 = vector.shape_cast %4 : vector<1x4x8x8xbf16> to vector<4x8x8xbf16>
    "tpu.trace_start"() <{level = 10 : i32, message = "hqc,hkc->hqk"}> : () -> ()
    %cst = arith.constant dense<0.000000e+00> : vector<4x8x8xf32>
    %6 = tpu.matmul %3, %5, %cst {dimension_numbers = #tpu.dot_dimension_numbers<[2], [2], [1], [1], [0, 0, 0, 1, 1, 1], [0], [0]>} : vector<4x8x8xbf16>, vector<4x8x8xbf16>, vector<4x8x8xf32> -> vector<4x8x8xf32>
    "tpu.trace_stop"() : () -> ()
    %c0_7 = arith.constant 0 : index
    %c0_8 = arith.constant 0 : index
    %c0_9 = arith.constant 0 : index
    %7 = vector.load %arg20[%c0_7, %c0_8, %c0_9] : memref<4x8x1xf32, #tpu.memory_space<vmem>>, vector<4x8x1xf32>
    %cst_10 = arith.constant dense<0xFF800000> : vector<4x8xf32>
    %8 = vector.multi_reduction <maximumf>, %6, %cst_10 [2] : vector<4x8x8xf32> to vector<4x8xf32>
    %9 = vector.shape_cast %8 : vector<4x8xf32> to vector<4x8x1xf32>
    %10 = arith.maximumf %7, %9 : vector<4x8x1xf32>
    %11 = arith.subf %7, %10 : vector<4x8x1xf32>
    %12 = math.exp %11 : vector<4x8x1xf32>
    %13 = vector.broadcast %10 : vector<4x8x1xf32> to vector<4x8x8xf32>
    %14 = arith.subf %6, %13 : vector<4x8x8xf32>
    %15 = math.exp %14 : vector<4x8x8xf32>
    %c0_11 = arith.constant 0 : index
    %c0_12 = arith.constant 0 : index
    %c0_13 = arith.constant 0 : index
    %16 = vector.load %arg21[%c0_11, %c0_12, %c0_13] : memref<4x8x1xf32, #tpu.memory_space<vmem>>, vector<4x8x1xf32>
    %17 = arith.mulf %12, %16 : vector<4x8x1xf32>
    %cst_14 = arith.constant dense<0.000000e+00> : vector<4x8xf32>
    %18 = vector.multi_reduction <add>, %15, %cst_14 [2] : vector<4x8x8xf32> to vector<4x8xf32>
    %19 = vector.shape_cast %18 : vector<4x8xf32> to vector<4x8x1xf32>
    %20 = arith.addf %17, %19 : vector<4x8x1xf32>
    %c0_15 = arith.constant 0 : index
    %c0_16 = arith.constant 0 : index
    %c0_17 = arith.constant 0 : index
    %21 = vector.load %arg21[%c0_15, %c0_16, %c0_17] : memref<4x8x1xf32, #tpu.memory_space<vmem>>, vector<4x8x1xf32>
    tpu.vector_store %arg21[%c0_15, %c0_16, %c0_17], %20 {strides = array<i32>} : memref<4x8x1xf32, #tpu.memory_space<vmem>>, vector<4x8x1xf32>,
    %c0_18 = arith.constant 0 : index
    %c0_19 = arith.constant 0 : index
    %c0_20 = arith.constant 0 : index
    %22 = vector.load %arg22[%c0_18, %c0_19, %c0_20] : memref<4x8x8xf32, #tpu.memory_space<vmem>>, vector<4x8x8xf32>
    %23 = vector.broadcast %12 : vector<4x8x1xf32> to vector<4x8x8xf32>
    %24 = arith.mulf %23, %22 : vector<4x8x8xf32>
    %25 = arith.truncf %15 : vector<4x8x8xf32> to vector<4x8x8xbf16>
    %c0_21 = arith.constant 0 : index
    %c0_22 = arith.constant 0 : index
    %c0_23 = arith.constant 0 : index
    %c0_24 = arith.constant 0 : index
    %26 = vector.load %arg5[%c0_21, %c0_22, %c0_23, %c0_24] : memref<1x4x8x8xbf16, #tpu.memory_space<vmem>>, vector<1x4x8x8xbf16>
    %27 = vector.shape_cast %26 : vector<1x4x8x8xbf16> to vector<4x8x8xbf16>
    "tpu.trace_start"() <{level = 10 : i32, message = "hqk,hkc->hqc"}> : () -> ()
    %cst_25 = arith.constant dense<0.000000e+00> : vector<4x8x8xf32>
    %28 = tpu.matmul %25, %27, %cst_25 {dimension_numbers = #tpu.dot_dimension_numbers<[2], [1], [1], [2], [0, 0, 0, 1, 1, 2], [0], [0]>} : vector<4x8x8xbf16>, vector<4x8x8xbf16>, vector<4x8x8xf32> -> vector<4x8x8xf32>
    "tpu.trace_stop"() : () -> ()
    %29 = arith.addf %24, %28 : vector<4x8x8xf32>
    %c0_26 = arith.constant 0 : index
    %c0_27 = arith.constant 0 : index
    %c0_28 = arith.constant 0 : index
    %30 = vector.load %arg22[%c0_26, %c0_27, %c0_28] : memref<4x8x8xf32, #tpu.memory_space<vmem>>, vector<4x8x8xf32>
    tpu.vector_store %arg22[%c0_26, %c0_27, %c0_28], %29 {strides = array<i32>} : memref<4x8x8xf32, #tpu.memory_space<vmem>>, vector<4x8x8xf32>,
    %c0_29 = arith.constant 0 : index
    %c0_30 = arith.constant 0 : index
    %c0_31 = arith.constant 0 : index
    %31 = vector.load %arg20[%c0_29, %c0_30, %c0_31] : memref<4x8x1xf32, #tpu.memory_space<vmem>>, vector<4x8x1xf32>
    tpu.vector_store %arg20[%c0_29, %c0_30, %c0_31], %10 {strides = array<i32>} : memref<4x8x1xf32, #tpu.memory_space<vmem>>, vector<4x8x1xf32>,
    %c0_i32_32 = arith.constant 0 : i32
    %32 = arith.cmpi eq, %arg2, %c0_i32_32 : i32
    %33 = arith.extui %32 : i1 to i32
    %c0_i32_33 = arith.constant 0 : i32
    %34 = arith.cmpi ne, %33, %c0_i32_33 : i32
    scf.if %34 {
      %c0_34 = arith.constant 0 : index
      %c0_35 = arith.constant 0 : index
      %c0_36 = arith.constant 0 : index
      %35 = vector.load %arg22[%c0_34, %c0_35, %c0_36] : memref<4x8x8xf32, #tpu.memory_space<vmem>>, vector<4x8x8xf32>
      %c0_37 = arith.constant 0 : index
      %c0_38 = arith.constant 0 : index
      %c0_39 = arith.constant 0 : index
      %36 = vector.load %arg21[%c0_37, %c0_38, %c0_39] : memref<4x8x1xf32, #tpu.memory_space<vmem>>, vector<4x8x1xf32>
      %37 = tpu.reciprocal %36 {approx = true} : vector<4x8x1xf32> -> vector<4x8x1xf32>
      %38 = vector.broadcast %37 : vector<4x8x1xf32> to vector<4x8x8xf32>
      %39 = arith.mulf %35, %38 : vector<4x8x8xf32>
      %40 = tpu.transpose %39, [1, 0, 2] : vector<4x8x8xf32> -> vector<8x4x8xf32>
      %41 = vector.shape_cast %40 : vector<8x4x8xf32> to vector<8x32xf32>
      %42 = arith.truncf %41 : vector<8x32xf32> to vector<8x32xbf16>
      %c0_40 = arith.constant 0 : index
      %c0_41 = arith.constant 0 : index
      %43 = vector.load %arg8[%c0_40, %c0_41] : memref<32x32xbf16, #tpu.memory_space<vmem>>, vector<32x32xbf16>
      %cst_42 = arith.constant dense<0.000000e+00> : vector<8x32xf32>
      %44 = tpu.matmul %42, %43, %cst_42 {dimension_numbers = #tpu.dot_dimension_numbers<[1], [0], [0], [1], [0, 0, 1, 1], [], []>} : vector<8x32xbf16>, vector<32x32xbf16>, vector<8x32xf32> -> vector<8x32xf32>
      %c0_43 = arith.constant 0 : index
      %c0_44 = arith.constant 0 : index
      %45 = vector.load %arg9[%c0_43, %c0_44] : memref<1x32xf32, #tpu.memory_space<vmem>>, vector<1x32xf32>
      %46 = vector.broadcast %45 : vector<1x32xf32> to vector<8x32xf32>
      %47 = arith.addf %44, %46 : vector<8x32xf32>
      %c0_45 = arith.constant 0 : index
      %c0_46 = arith.constant 0 : index
      %c0_47 = arith.constant 0 : index
      %48 = vector.load %arg3[%c0_45, %c0_46, %c0_47] : memref<1x8x32xf32, #tpu.memory_space<vmem>>, vector<1x8x32xf32>
      %49 = vector.shape_cast %48 : vector<1x8x32xf32> to vector<8x32xf32>
      %50 = arith.addf %49, %47 : vector<8x32xf32>
      %c0_48 = arith.constant 0 : index
      %c0_49 = arith.constant 0 : index
      %51 = vector.load %arg14[%c0_48, %c0_49] : memref<1x32xf32, #tpu.memory_space<vmem>>, vector<1x32xf32>
      %c0_50 = arith.constant 0 : index
      %c0_51 = arith.constant 0 : index
      %52 = vector.load %arg15[%c0_50, %c0_51] : memref<1x32xf32, #tpu.memory_space<vmem>>, vector<1x32xf32>
      %cst_52 = arith.constant dense<0.000000e+00> : vector<8xf32>
      %53 = vector.multi_reduction <add>, %50, %cst_52 [1] : vector<8x32xf32> to vector<8xf32>
      %54 = vector.shape_cast %53 : vector<8xf32> to vector<8x1xf32>
      %cst_53 = arith.constant 3.200000e+01 : f32
      %55 = vector.broadcast %cst_53 : f32 to vector<8x1xf32>
      %56 = arith.divf %54, %55 : vector<8x1xf32>
      %57 = vector.broadcast %56 : vector<8x1xf32> to vector<8x32xf32>
      %58 = arith.subf %50, %57 : vector<8x32xf32>
      %59 = arith.mulf %58, %58 : vector<8x32xf32>
      %cst_54 = arith.constant dense<0.000000e+00> : vector<8xf32>
      %60 = vector.multi_reduction <add>, %59, %cst_54 [1] : vector<8x32xf32> to vector<8xf32>
      %61 = vector.shape_cast %60 : vector<8xf32> to vector<8x1xf32>
      %cst_55 = arith.constant 3.200000e+01 : f32
      %62 = vector.broadcast %cst_55 : f32 to vector<8x1xf32>
      %63 = arith.divf %61, %62 : vector<8x1xf32>
      %64 = vector.broadcast %56 : vector<8x1xf32> to vector<8x32xf32>
      %65 = arith.subf %50, %64 : vector<8x32xf32>
      %cst_56 = arith.constant 9.99999974E-6 : f32
      %66 = vector.broadcast %cst_56 : f32 to vector<8x1xf32>
      %67 = arith.addf %63, %66 : vector<8x1xf32>
      %68 = math.rsqrt %67 : vector<8x1xf32>
      %69 = vector.broadcast %68 : vector<8x1xf32> to vector<8x32xf32>
      %70 = arith.mulf %65, %69 : vector<8x32xf32>
      %71 = vector.broadcast %51 : vector<1x32xf32> to vector<8x32xf32>
      %72 = arith.mulf %70, %71 : vector<8x32xf32>
      %73 = vector.broadcast %52 : vector<1x32xf32> to vector<8x32xf32>
      %74 = arith.addf %72, %73 : vector<8x32xf32>
      %75 = arith.truncf %74 : vector<8x32xf32> to vector<8x32xbf16>
      %c0_57 = arith.constant 0 : index
      %c0_58 = arith.constant 0 : index
      %76 = vector.load %arg10[%c0_57, %c0_58] : memref<32x64xbf16, #tpu.memory_space<vmem>>, vector<32x64xbf16>
      %cst_59 = arith.constant dense<0.000000e+00> : vector<8x64xf32>
      %77 = tpu.matmul %75, %76, %cst_59 {dimension_numbers = #tpu.dot_dimension_numbers<[1], [0], [0], [1], [0, 0, 1, 1], [], []>} : vector<8x32xbf16>, vector<32x64xbf16>, vector<8x64xf32> -> vector<8x64xf32>
      %c0_60 = arith.constant 0 : index
      %c0_61 = arith.constant 0 : index
      %78 = vector.load %arg11[%c0_60, %c0_61] : memref<1x64xf32, #tpu.memory_space<vmem>>, vector<1x64xf32>
      %79 = vector.broadcast %78 : vector<1x64xf32> to vector<8x64xf32>
      %80 = arith.addf %77, %79 : vector<8x64xf32>
      %cst_62 = arith.constant 0.000000e+00 : f32
      %81 = vector.broadcast %cst_62 : f32 to vector<8x64xf32>
      %82 = arith.maximumf %80, %81 : vector<8x64xf32>
      %83 = arith.truncf %82 : vector<8x64xf32> to vector<8x64xbf16>
      %c0_63 = arith.constant 0 : index
      %c0_64 = arith.constant 0 : index
      %84 = vector.load %arg12[%c0_63, %c0_64] : memref<64x32xbf16, #tpu.memory_space<vmem>>, vector<64x32xbf16>
      %cst_65 = arith.constant dense<0.000000e+00> : vector<8x32xf32>
      %85 = tpu.matmul %83, %84, %cst_65 {dimension_numbers = #tpu.dot_dimension_numbers<[1], [0], [0], [1], [0, 0, 1, 1], [], []>} : vector<8x64xbf16>, vector<64x32xbf16>, vector<8x32xf32> -> vector<8x32xf32>
      %c0_66 = arith.constant 0 : index
      %c0_67 = arith.constant 0 : index
      %86 = vector.load %arg13[%c0_66, %c0_67] : memref<1x32xf32, #tpu.memory_space<vmem>>, vector<1x32xf32>
      %87 = vector.broadcast %86 : vector<1x32xf32> to vector<8x32xf32>
      %88 = arith.addf %85, %87 : vector<8x32xf32>
      %89 = arith.addf %74, %88 : vector<8x32xf32>
      %c0_68 = arith.constant 0 : index
      %c0_69 = arith.constant 0 : index
      %90 = vector.load %arg16[%c0_68, %c0_69] : memref<1x32xf32, #tpu.memory_space<vmem>>, vector<1x32xf32>
      %c0_70 = arith.constant 0 : index
      %c0_71 = arith.constant 0 : index
      %91 = vector.load %arg17[%c0_70, %c0_71] : memref<1x32xf32, #tpu.memory_space<vmem>>, vector<1x32xf32>
      %cst_72 = arith.constant dense<0.000000e+00> : vector<8xf32>
      %92 = vector.multi_reduction <add>, %89, %cst_72 [1] : vector<8x32xf32> to vector<8xf32>
      %93 = vector.shape_cast %92 : vector<8xf32> to vector<8x1xf32>
      %cst_73 = arith.constant 3.200000e+01 : f32
      %94 = vector.broadcast %cst_73 : f32 to vector<8x1xf32>
      %95 = arith.divf %93, %94 : vector<8x1xf32>
      %96 = vector.broadcast %95 : vector<8x1xf32> to vector<8x32xf32>
      %97 = arith.subf %89, %96 : vector<8x32xf32>
      %98 = arith.mulf %97, %97 : vector<8x32xf32>
      %cst_74 = arith.constant dense<0.000000e+00> : vector<8xf32>
      %99 = vector.multi_reduction <add>, %98, %cst_74 [1] : vector<8x32xf32> to vector<8xf32>
      %100 = vector.shape_cast %99 : vector<8xf32> to vector<8x1xf32>
      %cst_75 = arith.constant 3.200000e+01 : f32
      %101 = vector.broadcast %cst_75 : f32 to vector<8x1xf32>
      %102 = arith.divf %100, %101 : vector<8x1xf32>
      %103 = vector.broadcast %95 : vector<8x1xf32> to vector<8x32xf32>
      %104 = arith.subf %89, %103 : vector<8x32xf32>
      %cst_76 = arith.constant 9.99999974E-6 : f32
      %105 = vector.broadcast %cst_76 : f32 to vector<8x1xf32>
      %106 = arith.addf %102, %105 : vector<8x1xf32>
      %107 = math.rsqrt %106 : vector<8x1xf32>
      %108 = vector.broadcast %107 : vector<8x1xf32> to vector<8x32xf32>
      %109 = arith.mulf %104, %108 : vector<8x32xf32>
      %110 = vector.broadcast %90 : vector<1x32xf32> to vector<8x32xf32>
      %111 = arith.mulf %109, %110 : vector<8x32xf32>
      %112 = vector.broadcast %91 : vector<1x32xf32> to vector<8x32xf32>
      %113 = arith.addf %111, %112 : vector<8x32xf32>
      %c0_77 = arith.constant 0 : index
      %c0_78 = arith.constant 0 : index
      %c0_79 = arith.constant 0 : index
      %114 = vector.load %arg18[%c0_77, %c0_78, %c0_79] : memref<1x8x32xf32, #tpu.memory_space<vmem>>, vector<1x8x32xf32>
      %115 = vector.shape_cast %114 : vector<1x8x32xf32> to vector<8x32xf32>
      %116 = vector.shape_cast %113 : vector<8x32xf32> to vector<1x8x32xf32>
      tpu.vector_store %arg18[%c0_77, %c0_78, %c0_79], %116 {strides = array<i32>} : memref<1x8x32xf32, #tpu.memory_space<vmem>>, vector<1x8x32xf32>,
    } else {
    }
    return
  }
  func.func @transform_0(%arg0: i32, %arg1: i32, %arg2: i32) -> (i32, i32, i32) {
    %c0_i32 = arith.constant 0 : i32
    %c0_i32_0 = arith.constant 0 : i32
    return %arg0, %arg1, %c0_i32 : i32, i32, i32
  }
  func.func @transform_1(%arg0: i32, %arg1: i32, %arg2: i32) -> (i32, i32, i32, i32) {
    %c0_i32 = arith.constant 0 : i32
    %c0_i32_0 = arith.constant 0 : i32
    %c0_i32_1 = arith.constant 0 : i32
    return %arg0, %c0_i32, %arg2, %c0_i32_0 : i32, i32, i32, i32
  }
  func.func @transform_2(%arg0: i32, %arg1: i32, %arg2: i32) -> (i32, i32, i32, i32) {
    %c0_i32 = arith.constant 0 : i32
    %c0_i32_0 = arith.constant 0 : i32
    %c0_i32_1 = arith.constant 0 : i32
    return %arg0, %c0_i32, %arg2, %c0_i32_0 : i32, i32, i32, i32
  }
  func.func @transform_3(%arg0: i32, %arg1: i32, %arg2: i32) -> (i32, i32) {
    %c0_i32 = arith.constant 0 : i32
    %c0_i32_0 = arith.constant 0 : i32
    %c0_i32_1 = arith.constant 0 : i32
    return %c0_i32, %c0_i32_0 : i32, i32
  }
  func.func @transform_4(%arg0: i32, %arg1: i32, %arg2: i32) -> (i32, i32) {
    %c0_i32 = arith.constant 0 : i32
    %c0_i32_0 = arith.constant 0 : i32
    %c0_i32_1 = arith.constant 0 : i32
    return %c0_i32, %c0_i32_0 : i32, i32
  }
  func.func @transform_5(%arg0: i32, %arg1: i32, %arg2: i32) -> (i32, i32) {
    %c0_i32 = arith.constant 0 : i32
    %c0_i32_0 = arith.constant 0 : i32
    %c0_i32_1 = arith.constant 0 : i32
    return %c0_i32, %c0_i32_0 : i32, i32
  }
  func.func @transform_6(%arg0: i32, %arg1: i32, %arg2: i32) -> (i32, i32) {
    %c0_i32 = arith.constant 0 : i32
    %c0_i32_0 = arith.constant 0 : i32
    %c0_i32_1 = arith.constant 0 : i32
    return %c0_i32, %c0_i32_0 : i32, i32
  }
  func.func @transform_7(%arg0: i32, %arg1: i32, %arg2: i32) -> (i32, i32) {
    %c0_i32 = arith.constant 0 : i32
    %c0_i32_0 = arith.constant 0 : i32
    %c0_i32_1 = arith.constant 0 : i32
    return %c0_i32, %c0_i32_0 : i32, i32
  }
  func.func @transform_8(%arg0: i32, %arg1: i32, %arg2: i32) -> (i32, i32) {
    %c0_i32 = arith.constant 0 : i32
    %c0_i32_0 = arith.constant 0 : i32
    %c0_i32_1 = arith.constant 0 : i32
    return %c0_i32, %c0_i32_0 : i32, i32
  }
  func.func @transform_9(%arg0: i32, %arg1: i32, %arg2: i32) -> (i32, i32) {
    %c0_i32 = arith.constant 0 : i32
    %c0_i32_0 = arith.constant 0 : i32
    %c0_i32_1 = arith.constant 0 : i32
    return %c0_i32, %c0_i32_0 : i32, i32
  }
  func.func @transform_10(%arg0: i32, %arg1: i32, %arg2: i32) -> (i32, i32) {
    %c0_i32 = arith.constant 0 : i32
    %c0_i32_0 = arith.constant 0 : i32
    %c0_i32_1 = arith.constant 0 : i32
    return %c0_i32, %c0_i32_0 : i32, i32
  }
  func.func @transform_11(%arg0: i32, %arg1: i32, %arg2: i32) -> (i32, i32) {
    %c0_i32 = arith.constant 0 : i32
    %c0_i32_0 = arith.constant 0 : i32
    %c0_i32_1 = arith.constant 0 : i32
    return %c0_i32, %c0_i32_0 : i32, i32
  }
  func.func @transform_12(%arg0: i32, %arg1: i32, %arg2: i32) -> (i32, i32) {
    %c0_i32 = arith.constant 0 : i32
    %c0_i32_0 = arith.constant 0 : i32
    %c0_i32_1 = arith.constant 0 : i32
    return %c0_i32, %c0_i32_0 : i32, i32
  }
  func.func @transform_13(%arg0: i32, %arg1: i32, %arg2: i32) -> (i32, i32) {
    %c0_i32 = arith.constant 0 : i32
    %c0_i32_0 = arith.constant 0 : i32
    %c0_i32_1 = arith.constant 0 : i32
    return %c0_i32, %c0_i32_0 : i32, i32
  }
  func.func @transform_14(%arg0: i32, %arg1: i32, %arg2: i32) -> (i32, i32) {
    %c0_i32 = arith.constant 0 : i32
    %c0_i32_0 = arith.constant 0 : i32
    %c0_i32_1 = arith.constant 0 : i32
    return %c0_i32, %c0_i32_0 : i32, i32
  }
  func.func @transform_15(%arg0: i32, %arg1: i32, %arg2: i32) -> (i32, i32, i32) {
    %c0_i32 = arith.constant 0 : i32
    %c0_i32_0 = arith.constant 0 : i32
    return %arg0, %arg1, %c0_i32 : i32, i32, i32
  }
}

</mosaic_0001>

<llo_original>
// kernel: transformer_encoder.4
$region0: #{transformer_encoder.4}
  #allocation0 [shape = 'u32[]', space=smem, size = 0x4, offset = 0x4, fixed_abs, tag = 'smem constant byte address 0x4 - core index']
  #allocation1 [shape = 'u32[144,128]{1,0:T(1,128)}', space=vmem, size = 0x12000, scoped, tag = 'internal scratch']
  %s0 = inlined_call_operand.vmem [shape: f32[2,8,32], index: 0, kind: input, shape index: {}]
  %s1 = inlined_call_operand.vmem [shape: bf16[32,32], index: 1, kind: input, shape index: {}]
  %s2 = inlined_call_operand.vmem [shape: f32[1,32], index: 2, kind: input, shape index: {}]
  %s3 = inlined_call_operand.vmem [shape: bf16[32,32], index: 3, kind: input, shape index: {}]
  %s4 = inlined_call_operand.vmem [shape: f32[1,32], index: 4, kind: input, shape index: {}]
  %s5 = inlined_call_operand.vmem [shape: bf16[2,4,8,8], index: 5, kind: output, shape index: {0}]
  %s6 = inlined_call_operand.vmem [shape: bf16[2,4,8,8], index: 6, kind: output, shape index: {1}]
  %7 = xla_tuple %s5, %s6
  %s8 = sld [smem:[#allocation0]]
  $region61: #{transformer_encoder.4} parent=0
    _
  %s10 = ssub.s32 1, %s8
  %s11 = scalar_select 0, %s10, %s8
  loop: start=0, step=1, limit=4
  $region2: #{transformer_encoder.4} parent=0 // loop_pre_header
    _
  $region3: #{transformer_encoder.4} parent=0 // loop_header
    %s13 = sphi 0, %s17
    %p14 = scmp.ge.s32.totalorder %s13, 4
    %s20 = sphi 0, %s32
    %s21 = sphi 0, %s28
    %s22 = sphi 0, %s20
    %s23 = sphi 0, %s21
    %s24 = sphi 0, %s22
    %s25 = sphi 0, %s23
    %s37 = sphi 0, %s39
    %s40 = sphi 0, %s37
    %s41 = sphi 0, %s40
    %s57 = sphi 0, %s41
    %s61 = sphi 0, %s61
    %s63 = sphi 0, %s61
    %s64 = sphi 0, %s63
    %s78 = sphi 0, %s64
    %s82 = sphi 0, %s82
    %s84 = sphi 0, %s82
    %s85 = sphi 0, %s84
    %s99 = sphi 0, %s85
    %s103 = sphi 0, %s103
    %s105 = sphi 0, %s103
    %s106 = sphi 0, %s105
    %s120 = sphi 0, %s106
    %s124 = sphi 0, %s124
    %s126 = sphi 0, %s124
    %s127 = sphi 0, %s126
    %s141 = sphi 0, %s127
    %s149 = sphi 0, %s151
    %s152 = sphi 0, %s149
    %s153 = sphi 0, %s152
    %s169 = sphi 0, %s153
    %s177 = sphi 0, %s179
    %s180 = sphi 0, %s177
    %s181 = sphi 0, %s180
    %s197 = sphi 0, %s181
  $region4: #{transformer_encoder.4} parent=0 // loop_header_branch
    %16 = sbr.rel (%p14) target = $region8
  $region5: #{transformer_encoder.4} parent=0 // loop_body
    %s18 = ssub.s32 %s13, 1
    %s19 = ssub.s32 %s13, 2
    %s26 = sadd.s32 1, %s21
    %p27 = scmp.ge.s32.totalorder %s26, 1
    %s28 = scalar_select %p27, 0, %s26
    %s29 = sadd.s32 1, %s20
    %s30 = scalar_select %p27, %s29, %s20
    %p31 = scmp.ge.s32.totalorder %s30, 2
    %s32 = scalar_select %p31, 0, %s30
    %s33 = ssub.s32 %s20, %s32
    %s34 = ssub.s32 %s21, %s28
    %s35 = sor.u32 %s33, %s34
    %p36 = scmp.eq.s32.totalorder %s35, 0
    %s38 = sadd.s32 %s37, 1
    %s39 = scalar_select %p36, %s37, %s38
    %p42 = pneg %p36
    %p43 = scmp.eq.s32.totalorder %s13, 1
    %p44 = por %p42, %p43
    %p45 = scmp.ne.s32.totalorder %s37, %s40
    %p46 = scmp.eq.s32.totalorder %s13, 0
    %p47 = por %p45, %p46
    %p48 = scmp.ne.s32.totalorder %s37, %s40
    %p49 = scmp.eq.s32.totalorder %s18, 1
    %p50 = por %p48, %p49
    %p51 = scmp.ne.s32.totalorder %s40, %s41
    %p52 = scmp.eq.s32.totalorder %s18, 0
    %p53 = por %p51, %p52
    %p54 = scmp.ne.s32.totalorder %s40, %s41
    %p55 = scmp.eq.s32.totalorder %s19, 1
    %p56 = por %p54, %p55
    %p58 = scmp.ne.s32.totalorder %s41, %s57
    %p59 = scmp.eq.s32.totalorder %s19, 0
    %p60 = por %p58, %p59
    %s62 = sadd.s32 %s61, 1
    %p65 = scmp.eq.s32.totalorder %s13, 1
    %p66 = scmp.ne.s32.totalorder %s61, %s63
    %p67 = scmp.eq.s32.totalorder %s13, 0
    %p68 = por %p66, %p67
    %p69 = scmp.ne.s32.totalorder %s61, %s63
    %p70 = scmp.eq.s32.totalorder %s18, 1
    %p71 = por %p69, %p70
    %p72 = scmp.ne.s32.totalorder %s63, %s64
    %p73 = scmp.eq.s32.totalorder %s18, 0
    %p74 = por %p72, %p73
    %p75 = scmp.ne.s32.totalorder %s63, %s64
    %p76 = scmp.eq.s32.totalorder %s19, 1
    %p77 = por %p75, %p76
    %p79 = scmp.ne.s32.totalorder %s64, %s78
    %p80 = scmp.eq.s32.totalorder %s19, 0
    %p81 = por %p79, %p80
    %s83 = sadd.s32 %s82, 1
    %p86 = scmp.eq.s32.totalorder %s13, 1
    %p87 = scmp.ne.s32.totalorder %s82, %s84
    %p88 = scmp.eq.s32.totalorder %s13, 0
    %p89 = por %p87, %p88
    %p90 = scmp.ne.s32.totalorder %s82, %s84
    %p91 = scmp.eq.s32.totalorder %s18, 1
    %p92 = por %p90, %p91
    %p93 = scmp.ne.s32.totalorder %s84, %s85
    %p94 = scmp.eq.s32.totalorder %s18, 0
    %p95 = por %p93, %p94
    %p96 = scmp.ne.s32.totalorder %s84, %s85
    %p97 = scmp.eq.s32.totalorder %s19, 1
    %p98 = por %p96, %p97
    %p100 = scmp.ne.s32.totalorder %s85, %s99
    %p101 = scmp.eq.s32.totalorder %s19, 0
    %p102 = por %p100, %p101
    %s104 = sadd.s32 %s103, 1
    %p107 = scmp.eq.s32.totalorder %s13, 1
    %p108 = scmp.ne.s32.totalorder %s103, %s105
    %p109 = scmp.eq.s32.totalorder %s13, 0
    %p110 = por %p108, %p109
    %p111 = scmp.ne.s32.totalorder %s103, %s105
    %p112 = scmp.eq.s32.totalorder %s18, 1
    %p113 = por %p111, %p112
    %p114 = scmp.ne.s32.totalorder %s105, %s106
    %p115 = scmp.eq.s32.totalorder %s18, 0
    %p116 = por %p114, %p115
    %p117 = scmp.ne.s32.totalorder %s105, %s106
    %p118 = scmp.eq.s32.totalorder %s19, 1
    %p119 = por %p117, %p118
    %p121 = scmp.ne.s32.totalorder %s106, %s120
    %p122 = scmp.eq.s32.totalorder %s19, 0
    %p123 = por %p121, %p122
    %s125 = sadd.s32 %s124, 1
    %p128 = scmp.eq.s32.totalorder %s13, 1
    %p129 = scmp.ne.s32.totalorder %s124, %s126
    %p130 = scmp.eq.s32.totalorder %s13, 0
    %p131 = por %p129, %p130
    %p132 = scmp.ne.s32.totalorder %s124, %s126
    %p133 = scmp.eq.s32.totalorder %s18, 1
    %p134 = por %p132, %p133
    %p135 = scmp.ne.s32.totalorder %s126, %s127
    %p136 = scmp.eq.s32.totalorder %s18, 0
    %p137 = por %p135, %p136
    %p138 = scmp.ne.s32.totalorder %s126, %s127
    %p139 = scmp.eq.s32.totalorder %s19, 1
    %p140 = por %p138, %p139
    %p142 = scmp.ne.s32.totalorder %s127, %s141
    %p143 = scmp.eq.s32.totalorder %s19, 0
    %p144 = por %p142, %p143
    %s145 = ssub.s32 %s20, %s32
    %s146 = ssub.s32 %s21, %s28
    %s147 = sor.u32 %s145, %s146
    %p148 = scmp.eq.s32.totalorder %s147, 0
    %s150 = sadd.s32 %s149, 1
    %s151 = scalar_select %p148, %s149, %s150
    %p154 = pneg %p148
    %p155 = scmp.eq.s32.totalorder %s13, 1
    %p156 = por %p154, %p155
    %p157 = scmp.ne.s32.totalorder %s149, %s152
    %p158 = scmp.eq.s32.totalorder %s13, 0
    %p159 = por %p157, %p158
    %p160 = scmp.ne.s32.totalorder %s149, %s152
    %p161 = scmp.eq.s32.totalorder %s18, 1
    %p162 = por %p160, %p161
    %p163 = scmp.ne.s32.totalorder %s152, %s153
    %p164 = scmp.eq.s32.totalorder %s18, 0
    %p165 = por %p163, %p164
    %p166 = scmp.ne.s32.totalorder %s152, %s153
    %p167 = scmp.eq.s32.totalorder %s19, 1
    %p168 = por %p166, %p167
    %p170 = scmp.ne.s32.totalorder %s153, %s169
    %p171 = scmp.eq.s32.totalorder %s19, 0
    %p172 = por %p170, %p171
    %s173 = ssub.s32 %s20, %s32
    %s174 = ssub.s32 %s21, %s28
    %s175 = sor.u32 %s173, %s174
    %p176 = scmp.eq.s32.totalorder %s175, 0
    %s178 = sadd.s32 %s177, 1
    %s179 = scalar_select %p176, %s177, %s178
    %p182 = pneg %p176
    %p183 = scmp.eq.s32.totalorder %s13, 1
    %p184 = por %p182, %p183
    %p185 = scmp.ne.s32.totalorder %s177, %s180
    %p186 = scmp.eq.s32.totalorder %s13, 0
    %p187 = por %p185, %p186
    %p188 = scmp.ne.s32.totalorder %s177, %s180
    %p189 = scmp.eq.s32.totalorder %s18, 1
    %p190 = por %p188, %p189
    %p191 = scmp.ne.s32.totalorder %s180, %s181
    %p192 = scmp.eq.s32.totalorder %s18, 0
    %p193 = por %p191, %p192
    %p194 = scmp.ne.s32.totalorder %s180, %s181
    %p195 = scmp.eq.s32.totalorder %s19, 1
    %p196 = por %p194, %p195
    %p198 = scmp.ne.s32.totalorder %s181, %s197
    %p199 = scmp.eq.s32.totalorder %s19, 0
    %p200 = por %p198, %p199
    %p201 = scmp.le.s32.totalorder 1, %s13
    %p202 = scmp.lt.s32.totalorder %s13, 3
    %p203 = pnand %p201, %p202
    %p204 = pneg %p203
    // Predicated region
    $region9: #{transformer_encoder.4} parent=5 // pred_check
      _
    $region10: #{transformer_encoder.4} parent=5 // pred_check_branch
      %206 = sbr.rel (%p203) target = $region12
    $region11: #{transformer_encoder.4} parent=5 // pred_region
      %s207 = ssub.s32 %s13, 1
      // Predicated region
      $region13: #{transformer_encoder.4} parent=11 // pred_check
        %p208 = pneg %p74
      $region14: #{transformer_encoder.4} parent=11 // pred_check_branch
        %210 = sbr.rel (%p208) target = $region16
      $region15: #{transformer_encoder.4} parent=11 // pred_region
        _
      $region16: #{transformer_encoder.4} parent=11 // pred_fallthru
        _
      // Predicated region
      $region17: #{transformer_encoder.4} parent=11 // pred_check
        %p211 = pneg %p95
      $region18: #{transformer_encoder.4} parent=11 // pred_check_branch
        %213 = sbr.rel (%p211) target = $region20
      $region19: #{transformer_encoder.4} parent=11 // pred_region
        _
      $region20: #{transformer_encoder.4} parent=11 // pred_fallthru
        _
      // Predicated region
      $region21: #{transformer_encoder.4} parent=11 // pred_check
        %p214 = pneg %p116
      $region22: #{transformer_encoder.4} parent=11 // pred_check_branch
        %216 = sbr.rel (%p214) target = $region24
      $region23: #{transformer_encoder.4} parent=11 // pred_region
        _
      $region24: #{transformer_encoder.4} parent=11 // pred_fallthru
        _
      // Predicated region
      $region25: #{transformer_encoder.4} parent=11 // pred_check
        %p217 = pneg %p137
      $region26: #{transformer_encoder.4} parent=11 // pred_check_branch
        %219 = sbr.rel (%p217) target = $region28
      $region27: #{transformer_encoder.4} parent=11 // pred_region
        _
      $region28: #{transformer_encoder.4} parent=11 // pred_fallthru
        _
    $region12: #{transformer_encoder.4} parent=5 // pred_fallthru
      _
    %p220 = scmp.lt.s32.totalorder %s13, 2
    // Predicated region
    $region29: #{transformer_encoder.4} parent=5 // pred_check
      %p221 = pneg %p220
    $region30: #{transformer_encoder.4} parent=5 // pred_check_branch
      %223 = sbr.rel (%p221) target = $region32
    $region31: #{transformer_encoder.4} parent=5 // pred_region
      // Predicated region
      $region33: #{transformer_encoder.4} parent=31 // pred_check
        %p224 = pneg %p47
      $region34: #{transformer_encoder.4} parent=31 // pred_check_branch
        %226 = sbr.rel (%p224) target = $region36
      $region35: #{transformer_encoder.4} parent=31 // pred_region
        %p227 = scmp.lt.s32.totalorder %s20, 1
        %s228 = scalar_select %p227, %s20, 1
        %p229 = scmp.lt.s32.totalorder %s21, 0
        %s230 = scalar_select %p229, %s21, 0
        %s231 = sadd.s32 %s230, %s228
        %s232 = smul.addr %s231, 8
        %s233 = scalar_lea.vmem %s0, %s232
      $region36: #{transformer_encoder.4} parent=31 // pred_fallthru
        _
    $region32: #{transformer_encoder.4} parent=5 // pred_fallthru
      _
    %p234 = scmp.le.s32.totalorder 1, %s13
    %p235 = scmp.lt.s32.totalorder %s13, 3
    %p236 = pnand %p234, %p235
    %p237 = pneg %p236
    // Predicated region
    $region37: #{transformer_encoder.4} parent=5 // pred_check
      _
    $region38: #{transformer_encoder.4} parent=5 // pred_check_branch
      %239 = sbr.rel (%p236) target = $region40
    $region39: #{transformer_encoder.4} parent=5 // pred_region
      %s240 = ssub.s32 %s13, 1
      %p241 = scmp.lt.s32.totalorder %s22, 1
      %s242 = scalar_select %p241, %s22, 1
      %p243 = scmp.lt.s32.totalorder %s23, 0
      %s244 = scalar_select %p243, %s23, 0
      %s245 = sadd.s32 %s244, %s242
      %s246 = smul.addr %s245, 8
      %s247 = scalar_lea.vmem %s0, %s246
      %p248 = pneg %p53
      %p249 = pneg %p50
      %p250 = pneg %p74
      %p251 = pneg %p71
      %p252 = pneg %p95
      %p253 = pneg %p92
      %p254 = pneg %p116
      %p255 = pneg %p113
      %p256 = pneg %p137
      %p257 = pneg %p134
      %p258 = pneg %p165
      %p259 = pneg %p162
      %p260 = scmp.lt.s32.totalorder %s22, 1
      %s261 = scalar_select %p260, %s22, 1
      %p262 = scmp.lt.s32.totalorder %s23, 0
      %s263 = scalar_select %p262, %s23, 0
      %s264 = smul.addr %s261, 4
      %s265 = sadd.s32 %s263, %s264
      %s266 = smul.addr %s265, 4
      %s267 = scalar_lea.vmem %s5, %s266
      %p268 = pneg %p193
      %p269 = pneg %p190
      %p270 = scmp.lt.s32.totalorder %s22, 1
      %s271 = scalar_select %p270, %s22, 1
      %p272 = scmp.lt.s32.totalorder %s23, 0
      %s273 = scalar_select %p272, %s23, 0
      %s274 = smul.addr %s271, 4
      %s275 = sadd.s32 %s273, %s274
      %s276 = smul.addr %s275, 4
      %s277 = scalar_lea.vmem %s6, %s276
      %p278 = scmp.lt.s32.totalorder %s22, 1
      %s279 = scalar_select %p278, %s22, 1
      %p280 = scmp.lt.s32.totalorder %s23, 0
      %s281 = scalar_select %p280, %s23, 0
      %s282 = sadd.s32 %s281, %s279
      %s283 = smul.addr %s282, 8
      %s284 = scalar_lea.vmem %s0, %s283
      %p285 = scmp.lt.s32.totalorder %s22, 1
      %s286 = scalar_select %p285, %s22, 1
      %p287 = scmp.lt.s32.totalorder %s23, 0
      %s288 = scalar_select %p287, %s23, 0
      %s289 = smul.addr %s286, 4
      %s290 = sadd.s32 %s288, %s289
      %s291 = smul.addr %s290, 4
      %s292 = scalar_lea.vmem %s5, %s291
      %p293 = scmp.lt.s32.totalorder %s22, 1
      %s294 = scalar_select %p293, %s22, 1
      %p295 = scmp.lt.s32.totalorder %s23, 0
      %s296 = scalar_select %p295, %s23, 0
      %s297 = smul.addr %s294, 4
      %s298 = sadd.s32 %s296, %s297
      %s299 = smul.addr %s298, 4
      %s300 = scalar_lea.vmem %s6, %s299
      %v302 = vld [vmem:[%s284] sm:$0xff]
      %v303 = vpack.c.bf16 %v302, %v302
      %v304 = vld [vmem:[%s1] sm:$0xf]
      %v305 = vld [vmem:[%s1 + $0x4] sm:$0xf]
      %v306 = vld [vmem:[%s1 + $0x8] sm:$0xf]
      %v307 = vld [vmem:[%s1 + $0xc] sm:$0xf]
      %v308 = vld [vmem:[%s2] sm:$0x1]
      %v310 = vlaneseq
      %v311 = vshrl.u32 %v310, 7
      %v312 = vsub.s32 0, %v311
      %v313 = vrot.slane %v308, %v312
      %v319 = vunpack.c.l.b16 %v304
      %v320 = vunpack.c.l.b16 %v305
      %v321 = vunpack.c.l.b16 %v306
      %v322 = vunpack.c.l.b16 %v307
      %v323 = vpack.c.b16 %v320, %v319
      %v324 = vpack.c.b16 %v322, %v321
      %vm327 = vcmask 261120
      %v329 = vsel %vm327, %v303, 0
      %331 = vmatprep.subr.bf16.mxu0 0
      %332 = vmatpush1.bf16.msra.mxu0 %v323
      %333 = vmatprep.subr.bf16.mxu0 0
      %334 = vmatpush1.bf16.msra.mxu0 %v324
      %335 = vmatprep.subr.bf16.mxu0 0
      %336 = vmatpush1.bf16.msra.mxu0 0
      %337 = vmatprep.subr.bf16.mxu0 0
      %338 = vmatpush1.bf16.msra.mxu0 0
      %339 = vmatprep.subr.bf16.mxu0 0
      %340 = vmatpush1.bf16.msra.mxu0 0
      %341 = vmatprep.subr.bf16.mxu0 0
      %342 = vmatpush1.bf16.msra.mxu0 0
      %343 = vmatprep.subr.bf16.mxu0 0
      %344 = vmatpush1.bf16.msra.mxu0 0
      %345 = vmatprep.subr.bf16.mxu0 0
      %346 = vmatpush1.bf16.msra.mxu0 0
      %347 = vmatprep.subr.bf16.mxu0 0
      %348 = vmatpush1.bf16.msra.mxu0 0
      %349 = vmatprep.subr.bf16.mxu0 0
      %350 = vmatpush1.bf16.msra.mxu0 0
      %351 = vmatprep.subr.bf16.mxu0 0
      %352 = vmatpush1.bf16.msra.mxu0 0
      %353 = vmatprep.subr.bf16.mxu0 0
      %354 = vmatpush1.bf16.msra.mxu0 0
      %355 = vmatprep.subr.bf16.mxu0 0
      %356 = vmatpush1.bf16.msra.mxu0 0
      %357 = vmatprep.subr.bf16.mxu0 0
      %358 = vmatpush1.bf16.msra.mxu0 0
      %359 = vmatprep.subr.bf16.mxu0 0
      %360 = vmatpush1.bf16.msra.mxu0 0
      %361 = vmatprep.subr.bf16.mxu0 0
      %362 = vmatpush1.bf16.msra.mxu0 0
      %363 = vmatprep.mubr.bf16.mxu0 0
      %364 = vmatmul.mubr.bf16.gmra.mrb[0].mxu0 %v329
      %v365 = vpop.f32.mrb[0].mxu0
      %v366 = vadd.f32 %v313, %v365
      %v367 = vpop.f32.mrb[0].mxu0
      %v368 = vpop.f32.mrb[0].mxu0
      %v369 = vpop.f32.mrb[0].mxu0
      %370 = vdwg.mxu0
      %v371 = vld [vmem:[%s3] sm:$0xf]
      %v372 = vld [vmem:[%s3 + $0x4] sm:$0xf]
      %v373 = vld [vmem:[%s3 + $0x8] sm:$0xf]
      %v374 = vld [vmem:[%s3 + $0xc] sm:$0xf]
      %v375 = vld [vmem:[%s4] sm:$0x1]
      %v377 = vlaneseq
      %v378 = vshrl.u32 %v377, 7
      %v379 = vsub.s32 0, %v378
      %v380 = vrot.slane %v375, %v379
      %v386 = vunpack.c.l.b16 %v371
      %v387 = vunpack.c.l.b16 %v372
      %v388 = vunpack.c.l.b16 %v373
      %v389 = vunpack.c.l.b16 %v374
      %v390 = vpack.c.b16 %v387, %v386
      %v391 = vpack.c.b16 %v389, %v388
      %394 = vmatprep.subr.bf16.mxu0 0
      %395 = vmatpush1.bf16.msra.mxu0 %v390
      %396 = vmatprep.subr.bf16.mxu0 0
      %397 = vmatpush1.bf16.msra.mxu0 %v391
      %398 = vmatprep.subr.bf16.mxu0 0
      %399 = vmatpush1.bf16.msra.mxu0 0
      %400 = vmatprep.subr.bf16.mxu0 0
      %401 = vmatpush1.bf16.msra.mxu0 0
      %402 = vmatprep.subr.bf16.mxu0 0
      %403 = vmatpush1.bf16.msra.mxu0 0
      %404 = vmatprep.subr.bf16.mxu0 0
      %405 = vmatpush1.bf16.msra.mxu0 0
      %406 = vmatprep.subr.bf16.mxu0 0
      %407 = vmatpush1.bf16.msra.mxu0 0
      %408 = vmatprep.subr.bf16.mxu0 0
      %409 = vmatpush1.bf16.msra.mxu0 0
      %410 = vmatprep.subr.bf16.mxu0 0
      %411 = vmatpush1.bf16.msra.mxu0 0
      %412 = vmatprep.subr.bf16.mxu0 0
      %413 = vmatpush1.bf16.msra.mxu0 0
      %414 = vmatprep.subr.bf16.mxu0 0
      %415 = vmatpush1.bf16.msra.mxu0 0
      %416 = vmatprep.subr.bf16.mxu0 0
      %417 = vmatpush1.bf16.msra.mxu0 0
      %418 = vmatprep.subr.bf16.mxu0 0
      %419 = vmatpush1.bf16.msra.mxu0 0
      %420 = vmatprep.subr.bf16.mxu0 0
      %421 = vmatpush1.bf16.msra.mxu0 0
      %422 = vmatprep.subr.bf16.mxu0 0
      %423 = vmatpush1.bf16.msra.mxu0 0
      %424 = vmatprep.subr.bf16.mxu0 0
      %425 = vmatpush1.bf16.msra.mxu0 0
      %426 = vmatprep.mubr.bf16.mxu0 0
      %427 = vmatmul.mubr.bf16.gmra.mrb[0].mxu0 %v329
      %v428 = vpop.f32.mrb[0].mxu0
      %v429 = vadd.f32 %v380, %v428
      %v430 = vpop.f32.mrb[0].mxu0
      %v431 = vpop.f32.mrb[0].mxu0
      %v432 = vpop.f32.mrb[0].mxu0
      %433 = vdwg.mxu0
      %435 = vrot.lane.b32.xlu0 %v366, 120
      %v436 = vpop.permute.xlu0 %435
      %438 = vrot.lane.b32.xlu0 %v366, 112
      %v439 = vpop.permute.xlu0 %438
      %441 = vrot.lane.b32.xlu0 %v366, 104
      %v442 = vpop.permute.xlu0 %441
      %v444 = vcombine.low %v366, %v439
      %v445 = vcombine.high %v366, %v439
      %v447 = vunpack.c.l.s4 1983009808
      %v448 = vunpack.c.0.s8 %v447
      %v449 = vlaneseq
      %v450 = vshrl.u32 %v449, 7
      %v451 = vsub.s32 %v448, %v450
      %v452 = vrot.slane %v444, %v451
      %v454 = vunpack.c.l.s4 1983009808
      %v455 = vunpack.c.0.s8 %v454
      %v456 = vlaneseq
      %v457 = vshrl.u32 %v456, 7
      %v458 = vsub.s32 %v455, %v457
      %v459 = vrot.slane %v445, %v458
      %v460 = vcombine.low %v436, %v442
      %v461 = vcombine.high %v436, %v442
      %v463 = vunpack.c.l.s4 1983009808
      %v464 = vunpack.c.0.s8 %v463
      %v465 = vlaneseq
      %v466 = vshrl.u32 %v465, 7
      %v467 = vsub.s32 %v464, %v466
      %v468 = vrot.slane %v460, %v467
      %v470 = vunpack.c.l.s4 1983009808
      %v471 = vunpack.c.0.s8 %v470
      %v472 = vlaneseq
      %v473 = vshrl.u32 %v472, 7
      %v474 = vsub.s32 %v471, %v473
      %v475 = vrot.slane %v461, %v474
      %v476 = vcombine.low %v452, %v468
      %v477 = vcombine.high %v452, %v468
      %v479 = vunpack.c.l.s4 1934713408
      %v480 = vunpack.c.0.s8 %v479
      %v481 = vlaneseq
      %v482 = vshrl.u32 %v481, 7
      %v483 = vsub.s32 %v480, %v482
      %v484 = vrot.slane %v476, %v483
      %v486 = vunpack.c.l.s4 1934713408
      %v487 = vunpack.c.0.s8 %v486
      %v488 = vlaneseq
      %v489 = vshrl.u32 %v488, 7
      %v490 = vsub.s32 %v487, %v489
      %v491 = vrot.slane %v477, %v490
      %v492 = vcombine.low %v459, %v475
      %v493 = vcombine.high %v459, %v475
      %v495 = vunpack.c.l.s4 1934713408
      %v496 = vunpack.c.0.s8 %v495
      %v497 = vlaneseq
      %v498 = vshrl.u32 %v497, 7
      %v499 = vsub.s32 %v496, %v498
      %v500 = vrot.slane %v492, %v499
      %v502 = vunpack.c.l.s4 1934713408
      %v503 = vunpack.c.0.s8 %v502
      %v504 = vlaneseq
      %v505 = vshrl.u32 %v504, 7
      %v506 = vsub.s32 %v503, %v505
      %v507 = vrot.slane %v493, %v506
      %v508 = vcombine.high %v484, 0.0
      %v509 = vcombine.high %v491, 0.0
      %v510 = vcombine.high %v500, 0.0
      %v511 = vcombine.high %v507, 0.0
      %v512 = vcombine.low %v484, %v491
      %v514 = vunpack.c.l.s4 1983009808
      %v515 = vunpack.c.0.s8 %v514
      %v516 = vlaneseq
      %v517 = vshrl.u32 %v516, 7
      %v518 = vsub.s32 %v515, %v517
      %v519 = vrot.slane %v512, %v518
      %v520 = vcombine.low %v508, %v509
      %v522 = vunpack.c.l.s4 1983009808
      %v523 = vunpack.c.0.s8 %v522
      %v524 = vlaneseq
      %v525 = vshrl.u32 %v524, 7
      %v526 = vsub.s32 %v523, %v525
      %v527 = vrot.slane %v520, %v526
      %v528 = vcombine.low %v500, %v507
      %v530 = vunpack.c.l.s4 1983009808
      %v531 = vunpack.c.0.s8 %v530
      %v532 = vlaneseq
      %v533 = vshrl.u32 %v532, 7
      %v534 = vsub.s32 %v531, %v533
      %v535 = vrot.slane %v528, %v534
      %v536 = vcombine.low %v510, %v511
      %v538 = vunpack.c.l.s4 1983009808
      %v539 = vunpack.c.0.s8 %v538
      %v540 = vlaneseq
      %v541 = vshrl.u32 %v540, 7
      %v542 = vsub.s32 %v539, %v541
      %v543 = vrot.slane %v536, %v542
      %v544 = vcombine.low %v519, %v527
      %v545 = vcombine.high %v519, %v527
      %v547 = vunpack.c.l.s4 1934713408
      %v548 = vunpack.c.0.s8 %v547
      %v549 = vlaneseq
      %v550 = vshrl.u32 %v549, 7
      %v551 = vsub.s32 %v548, %v550
      %v552 = vrot.slane %v544, %v551
      %v554 = vunpack.c.l.s4 1934713408
      %v555 = vunpack.c.0.s8 %v554
      %v556 = vlaneseq
      %v557 = vshrl.u32 %v556, 7
      %v558 = vsub.s32 %v555, %v557
      %v559 = vrot.slane %v545, %v558
      %v560 = vcombine.low %v535, %v543
      %v561 = vcombine.high %v535, %v543
      %v563 = vunpack.c.l.s4 1934713408
      %v564 = vunpack.c.0.s8 %v563
      %v565 = vlaneseq
      %v566 = vshrl.u32 %v565, 7
      %v567 = vsub.s32 %v564, %v566
      %v568 = vrot.slane %v560, %v567
      %v570 = vunpack.c.l.s4 1934713408
      %v571 = vunpack.c.0.s8 %v570
      %v572 = vlaneseq
      %v573 = vshrl.u32 %v572, 7
      %v574 = vsub.s32 %v571, %v573
      %v575 = vrot.slane %v561, %v574
      %v576 = vcombine.low %v552, %v568
      %v577 = vcombine.high %v552, %v568
      %v578 = vcombine.low %v559, %v575
      %v579 = vcombine.high %v559, %v575
      %v580 = vpack.c.bf16 %v576, %v576
      %v581 = vpack.c.bf16 %v577, %v577
      %v582 = vpack.c.bf16 %v578, %v578
      %v583 = vpack.c.bf16 %v579, %v579
      %vm584 = vcmask 60416
      %585 = vst.msk [vmem:[%s292] sm:$0xf] %vm584, %v580
      %586 = vst.msk [vmem:[%s292 + $0x4] sm:$0xf] %vm584, %v581
      %587 = vst.msk [vmem:[%s292 + $0x8] sm:$0xf] %vm584, %v582
      %588 = vst.msk [vmem:[%s292 + $0xc] sm:$0xf] %vm584, %v583
      %590 = vrot.lane.b32.xlu0 %v429, 120
      %v591 = vpop.permute.xlu0 %590
      %593 = vrot.lane.b32.xlu0 %v429, 112
      %v594 = vpop.permute.xlu0 %593
      %596 = vrot.lane.b32.xlu0 %v429, 104
      %v597 = vpop.permute.xlu0 %596
      %v599 = vcombine.low %v429, %v594
      %v600 = vcombine.high %v429, %v594
      %v602 = vunpack.c.l.s4 1983009808
      %v603 = vunpack.c.0.s8 %v602
      %v604 = vlaneseq
      %v605 = vshrl.u32 %v604, 7
      %v606 = vsub.s32 %v603, %v605
      %v607 = vrot.slane %v599, %v606
      %v609 = vunpack.c.l.s4 1983009808
      %v610 = vunpack.c.0.s8 %v609
      %v611 = vlaneseq
      %v612 = vshrl.u32 %v611, 7
      %v613 = vsub.s32 %v610, %v612
      %v614 = vrot.slane %v600, %v613
      %v615 = vcombine.low %v591, %v597
      %v616 = vcombine.high %v591, %v597
      %v618 = vunpack.c.l.s4 1983009808
      %v619 = vunpack.c.0.s8 %v618
      %v620 = vlaneseq
      %v621 = vshrl.u32 %v620, 7
      %v622 = vsub.s32 %v619, %v621
      %v623 = vrot.slane %v615, %v622
      %v625 = vunpack.c.l.s4 1983009808
      %v626 = vunpack.c.0.s8 %v625
      %v627 = vlaneseq
      %v628 = vshrl.u32 %v627, 7
      %v629 = vsub.s32 %v626, %v628
      %v630 = vrot.slane %v616, %v629
      %v631 = vcombine.low %v607, %v623
      %v632 = vcombine.high %v607, %v623
      %v634 = vunpack.c.l.s4 1934713408
      %v635 = vunpack.c.0.s8 %v634
      %v636 = vlaneseq
      %v637 = vshrl.u32 %v636, 7
      %v638 = vsub.s32 %v635, %v637
      %v639 = vrot.slane %v631, %v638
      %v641 = vunpack.c.l.s4 1934713408
      %v642 = vunpack.c.0.s8 %v641
      %v643 = vlaneseq
      %v644 = vshrl.u32 %v643, 7
      %v645 = vsub.s32 %v642, %v644
      %v646 = vrot.slane %v632, %v645
      %v647 = vcombine.low %v614, %v630
      %v648 = vcombine.high %v614, %v630
      %v650 = vunpack.c.l.s4 1934713408
      %v651 = vunpack.c.0.s8 %v650
      %v652 = vlaneseq
      %v653 = vshrl.u32 %v652, 7
      %v654 = vsub.s32 %v651, %v653
      %v655 = vrot.slane %v647, %v654
      %v657 = vunpack.c.l.s4 1934713408
      %v658 = vunpack.c.0.s8 %v657
      %v659 = vlaneseq
      %v660 = vshrl.u32 %v659, 7
      %v661 = vsub.s32 %v658, %v660
      %v662 = vrot.slane %v648, %v661
      %v663 = vcombine.high %v639, 0.0
      %v664 = vcombine.high %v646, 0.0
      %v665 = vcombine.high %v655, 0.0
      %v666 = vcombine.high %v662, 0.0
      %v667 = vcombine.low %v639, %v646
      %v669 = vunpack.c.l.s4 1983009808
      %v670 = vunpack.c.0.s8 %v669
      %v671 = vlaneseq
      %v672 = vshrl.u32 %v671, 7
      %v673 = vsub.s32 %v670, %v672
      %v674 = vrot.slane %v667, %v673
      %v675 = vcombine.low %v663, %v664
      %v677 = vunpack.c.l.s4 1983009808
      %v678 = vunpack.c.0.s8 %v677
      %v679 = vlaneseq
      %v680 = vshrl.u32 %v679, 7
      %v681 = vsub.s32 %v678, %v680
      %v682 = vrot.slane %v675, %v681
      %v683 = vcombine.low %v655, %v662
      %v685 = vunpack.c.l.s4 1983009808
      %v686 = vunpack.c.0.s8 %v685
      %v687 = vlaneseq
      %v688 = vshrl.u32 %v687, 7
      %v689 = vsub.s32 %v686, %v688
      %v690 = vrot.slane %v683, %v689
      %v691 = vcombine.low %v665, %v666
      %v693 = vunpack.c.l.s4 1983009808
      %v694 = vunpack.c.0.s8 %v693
      %v695 = vlaneseq
      %v696 = vshrl.u32 %v695, 7
      %v697 = vsub.s32 %v694, %v696
      %v698 = vrot.slane %v691, %v697
      %v699 = vcombine.low %v674, %v682
      %v700 = vcombine.high %v674, %v682
      %v702 = vunpack.c.l.s4 1934713408
      %v703 = vunpack.c.0.s8 %v702
      %v704 = vlaneseq
      %v705 = vshrl.u32 %v704, 7
      %v706 = vsub.s32 %v703, %v705
      %v707 = vrot.slane %v699, %v706
      %v709 = vunpack.c.l.s4 1934713408
      %v710 = vunpack.c.0.s8 %v709
      %v711 = vlaneseq
      %v712 = vshrl.u32 %v711, 7
      %v713 = vsub.s32 %v710, %v712
      %v714 = vrot.slane %v700, %v713
      %v715 = vcombine.low %v690, %v698
      %v716 = vcombine.high %v690, %v698
      %v718 = vunpack.c.l.s4 1934713408
      %v719 = vunpack.c.0.s8 %v718
      %v720 = vlaneseq
      %v721 = vshrl.u32 %v720, 7
      %v722 = vsub.s32 %v719, %v721
      %v723 = vrot.slane %v715, %v722
      %v725 = vunpack.c.l.s4 1934713408
      %v726 = vunpack.c.0.s8 %v725
      %v727 = vlaneseq
      %v728 = vshrl.u32 %v727, 7
      %v729 = vsub.s32 %v726, %v728
      %v730 = vrot.slane %v716, %v729
      %v731 = vcombine.low %v707, %v723
      %v732 = vcombine.high %v707, %v723
      %v733 = vcombine.low %v714, %v730
      %v734 = vcombine.high %v714, %v730
      %v735 = vpack.c.bf16 %v731, %v731
      %v736 = vpack.c.bf16 %v732, %v732
      %v737 = vpack.c.bf16 %v733, %v733
      %v738 = vpack.c.bf16 %v734, %v734
      %739 = vst.msk [vmem:[%s300] sm:$0xf] %vm584, %v735
      %740 = vst.msk [vmem:[%s300 + $0x4] sm:$0xf] %vm584, %v736
      %741 = vst.msk [vmem:[%s300 + $0x8] sm:$0xf] %vm584, %v737
      %742 = vst.msk [vmem:[%s300 + $0xc] sm:$0xf] %vm584, %v738
      %p743 = scmp.lt.s32.totalorder %s22, 1
      %s744 = scalar_select %p743, %s22, 1
      %p745 = scmp.lt.s32.totalorder %s23, 0
      %s746 = scalar_select %p745, %s23, 0
      %s747 = smul.addr %s744, 4
      %s748 = sadd.s32 %s746, %s747
      %s749 = smul.addr %s748, 4
      %s750 = scalar_lea.vmem %s5, %s749
      %p751 = scmp.lt.s32.totalorder %s22, 1
      %s752 = scalar_select %p751, %s22, 1
      %p753 = scmp.lt.s32.totalorder %s23, 0
      %s754 = scalar_select %p753, %s23, 0
      %s755 = smul.addr %s752, 4
      %s756 = sadd.s32 %s754, %s755
      %s757 = smul.addr %s756, 4
      %s758 = scalar_lea.vmem %s6, %s757
      // Predicated region
      $region41: #{transformer_encoder.4} parent=39 // pred_check
        %p759 = pneg %p162
      $region42: #{transformer_encoder.4} parent=39 // pred_check_branch
        %761 = sbr.rel (%p759) target = $region44
      $region43: #{transformer_encoder.4} parent=39 // pred_region
        _
      $region44: #{transformer_encoder.4} parent=39 // pred_fallthru
        _
      // Predicated region
      $region45: #{transformer_encoder.4} parent=39 // pred_check
        %p762 = pneg %p190
      $region46: #{transformer_encoder.4} parent=39 // pred_check_branch
        %764 = sbr.rel (%p762) target = $region48
      $region47: #{transformer_encoder.4} parent=39 // pred_region
        _
      $region48: #{transformer_encoder.4} parent=39 // pred_fallthru
        _
    $region40: #{transformer_encoder.4} parent=5 // pred_fallthru
      _
    %p765 = scmp.le.s32.totalorder 2, %s13
    // Predicated region
    $region49: #{transformer_encoder.4} parent=5 // pred_check
      %p766 = pneg %p765
    $region50: #{transformer_encoder.4} parent=5 // pred_check_branch
      %768 = sbr.rel (%p766) target = $region52
    $region51: #{transformer_encoder.4} parent=5 // pred_region
      %s769 = ssub.s32 %s13, 2
      // Predicated region
      $region53: #{transformer_encoder.4} parent=51 // pred_check
        %p770 = pneg %p168
      $region54: #{transformer_encoder.4} parent=51 // pred_check_branch
        %772 = sbr.rel (%p770) target = $region56
      $region55: #{transformer_encoder.4} parent=51 // pred_region
        %p773 = scmp.lt.s32.totalorder %s24, 1
        %s774 = scalar_select %p773, %s24, 1
        %p775 = scmp.lt.s32.totalorder %s25, 0
        %s776 = scalar_select %p775, %s25, 0
        %s777 = smul.addr %s774, 4
        %s778 = sadd.s32 %s776, %s777
        %s779 = smul.addr %s778, 4
        %s780 = scalar_lea.vmem %s5, %s779
      $region56: #{transformer_encoder.4} parent=51 // pred_fallthru
        _
      // Predicated region
      $region57: #{transformer_encoder.4} parent=51 // pred_check
        %p781 = pneg %p196
      $region58: #{transformer_encoder.4} parent=51 // pred_check_branch
        %783 = sbr.rel (%p781) target = $region60
      $region59: #{transformer_encoder.4} parent=51 // pred_region
        %p784 = scmp.lt.s32.totalorder %s24, 1
        %s785 = scalar_select %p784, %s24, 1
        %p786 = scmp.lt.s32.totalorder %s25, 0
        %s787 = scalar_select %p786, %s25, 0
        %s788 = smul.addr %s785, 4
        %s789 = sadd.s32 %s787, %s788
        %s790 = smul.addr %s789, 4
        %s791 = scalar_lea.vmem %s6, %s790
      $region60: #{transformer_encoder.4} parent=51 // pred_fallthru
        _
    $region52: #{transformer_encoder.4} parent=5 // pred_fallthru
      _
  $region6: #{transformer_encoder.4} parent=0 // loop_footer
    %s17 = sadd.s32 1, %s13
  $region7: #{transformer_encoder.4} parent=0 // loop_footer_branch
    %12 = sbr.rel target = $region3
  $region8: #{transformer_encoder.4} parent=0 // loop_exit
    _

// kernel: transformer_encoder.5
$region0: #{transformer_encoder.5}
  #allocation0 [shape = 'u32[]', space=smem, size = 0x4, offset = 0x4, fixed_abs, tag = 'smem constant byte address 0x4 - core index']
  #allocation1 [shape = 'u32[144,128]{1,0:T(1,128)}', space=vmem, size = 0x12000, scoped, tag = 'internal scratch']
  #allocation2 [shape = 'bf16[4,8,8]{2,1,0:T(8,128)(2,1)}', space=vmem, size = 0x2000, scoped, tag = 'scratch operand']
  #allocation3 [shape = 'f32[4,8,1]{2,1,0:T(8,128)}', space=vmem, size = 0x4000, scoped, tag = 'scratch operand']
  #allocation4 [shape = 'f32[4,8,1]{2,1,0:T(8,128)}', space=vmem, size = 0x4000, scoped, tag = 'scratch operand']
  #allocation5 [shape = 'f32[4,8,8]{2,1,0:T(8,128)}', space=vmem, size = 0x4000, scoped, tag = 'scratch operand']
  %s0 = inlined_call_operand.vmem [shape: f32[2,8,32], index: 0, kind: input, shape index: {}]
  %s1 = inlined_call_operand.vmem [shape: bf16[2,4,8,8], index: 1, kind: input, shape index: {}]
  %s2 = inlined_call_operand.vmem [shape: bf16[2,4,8,8], index: 2, kind: input, shape index: {}]
  %s3 = inlined_call_operand.vmem [shape: bf16[32,32], index: 3, kind: input, shape index: {}]
  %s4 = inlined_call_operand.vmem [shape: f32[1,32], index: 4, kind: input, shape index: {}]
  %s5 = inlined_call_operand.vmem [shape: bf16[32,32], index: 5, kind: input, shape index: {}]
  %s6 = inlined_call_operand.vmem [shape: f32[1,32], index: 6, kind: input, shape index: {}]
  %s7 = inlined_call_operand.vmem [shape: bf16[32,64], index: 7, kind: input, shape index: {}]
  %s8 = inlined_call_operand.vmem [shape: f32[1,64], index: 8, kind: input, shape index: {}]
  %s9 = inlined_call_operand.vmem [shape: bf16[64,32], index: 9, kind: input, shape index: {}]
  %s10 = inlined_call_operand.vmem [shape: f32[1,32], index: 10, kind: input, shape index: {}]
  %s11 = inlined_call_operand.vmem [shape: f32[1,32], index: 11, kind: input, shape index: {}]
  %s12 = inlined_call_operand.vmem [shape: f32[1,32], index: 12, kind: input, shape index: {}]
  %s13 = inlined_call_operand.vmem [shape: f32[1,32], index: 13, kind: input, shape index: {}]
  %s14 = inlined_call_operand.vmem [shape: f32[1,32], index: 14, kind: input, shape index: {}]
  %s15 = inlined_call_operand.vmem [shape: f32[2,8,32], index: 15, kind: output, shape index: {}]
  %s16 = sld [smem:[#allocation0]]
  $region101: #{transformer_encoder.5} parent=0
    _
  %s18 = ssub.s32 1, %s16
  %s19 = scalar_select 0, %s18, %s16
  loop: start=0, step=1, limit=4
  $region2: #{transformer_encoder.5} parent=0 // loop_pre_header
    _
  $region3: #{transformer_encoder.5} parent=0 // loop_header
    %s21 = sphi 0, %s25
    %p22 = scmp.ge.s32.totalorder %s21, 4
    %s28 = sphi 0, %s47
    %s29 = sphi 0, %s43
    %s30 = sphi 0, %s39
    %s31 = sphi 0, %s28
    %s32 = sphi 0, %s29
    %s33 = sphi 0, %s30
    %s34 = sphi 0, %s31
    %s35 = sphi 0, %s32
    %s36 = sphi 0, %s33
    %s52 = sphi 0, %s54
    %s55 = sphi 0, %s52
    %s56 = sphi 0, %s55
    %s72 = sphi 0, %s56
    %s80 = sphi 0, %s82
    %s83 = sphi 0, %s80
    %s84 = sphi 0, %s83
    %s100 = sphi 0, %s84
    %s108 = sphi 0, %s110
    %s111 = sphi 0, %s108
    %s112 = sphi 0, %s111
    %s128 = sphi 0, %s112
    %s132 = sphi 0, %s132
    %s134 = sphi 0, %s132
    %s135 = sphi 0, %s134
    %s149 = sphi 0, %s135
    %s153 = sphi 0, %s153
    %s155 = sphi 0, %s153
    %s156 = sphi 0, %s155
    %s170 = sphi 0, %s156
    %s174 = sphi 0, %s174
    %s176 = sphi 0, %s174
    %s177 = sphi 0, %s176
    %s191 = sphi 0, %s177
    %s195 = sphi 0, %s195
    %s197 = sphi 0, %s195
    %s198 = sphi 0, %s197
    %s212 = sphi 0, %s198
    %s216 = sphi 0, %s216
    %s218 = sphi 0, %s216
    %s219 = sphi 0, %s218
    %s233 = sphi 0, %s219
    %s237 = sphi 0, %s237
    %s239 = sphi 0, %s237
    %s240 = sphi 0, %s239
    %s254 = sphi 0, %s240
    %s258 = sphi 0, %s258
    %s260 = sphi 0, %s258
    %s261 = sphi 0, %s260
    %s275 = sphi 0, %s261
    %s279 = sphi 0, %s279
    %s281 = sphi 0, %s279
    %s282 = sphi 0, %s281
    %s296 = sphi 0, %s282
    %s300 = sphi 0, %s300
    %s302 = sphi 0, %s300
    %s303 = sphi 0, %s302
    %s317 = sphi 0, %s303
    %s321 = sphi 0, %s321
    %s323 = sphi 0, %s321
    %s324 = sphi 0, %s323
    %s338 = sphi 0, %s324
    %s342 = sphi 0, %s342
    %s344 = sphi 0, %s342
    %s345 = sphi 0, %s344
    %s359 = sphi 0, %s345
    %s363 = sphi 0, %s363
    %s365 = sphi 0, %s363
    %s366 = sphi 0, %s365
    %s380 = sphi 0, %s366
    %s388 = sphi 0, %s390
    %s391 = sphi 0, %s388
    %s392 = sphi 0, %s391
    %s408 = sphi 0, %s392
  $region4: #{transformer_encoder.5} parent=0 // loop_header_branch
    %24 = sbr.rel (%p22) target = $region8
  $region5: #{transformer_encoder.5} parent=0 // loop_body
    %s26 = ssub.s32 %s21, 1
    %s27 = ssub.s32 %s21, 2
    %s37 = sadd.s32 1, %s30
    %p38 = scmp.ge.s32.totalorder %s37, 1
    %s39 = scalar_select %p38, 0, %s37
    %s40 = sadd.s32 1, %s29
    %s41 = scalar_select %p38, %s40, %s29
    %p42 = scmp.ge.s32.totalorder %s41, 1
    %s43 = scalar_select %p42, 0, %s41
    %s44 = sadd.s32 1, %s28
    %s45 = scalar_select %p42, %s44, %s28
    %p46 = scmp.ge.s32.totalorder %s45, 2
    %s47 = scalar_select %p46, 0, %s45
    %s48 = ssub.s32 %s28, %s47
    %s49 = ssub.s32 %s29, %s43
    %s50 = sor.u32 %s48, %s49
    %p51 = scmp.eq.s32.totalorder %s50, 0
    %s53 = sadd.s32 %s52, 1
    %s54 = scalar_select %p51, %s52, %s53
    %p57 = pneg %p51
    %p58 = scmp.eq.s32.totalorder %s21, 1
    %p59 = por %p57, %p58
    %p60 = scmp.ne.s32.totalorder %s52, %s55
    %p61 = scmp.eq.s32.totalorder %s21, 0
    %p62 = por %p60, %p61
    %p63 = scmp.ne.s32.totalorder %s52, %s55
    %p64 = scmp.eq.s32.totalorder %s26, 1
    %p65 = por %p63, %p64
    %p66 = scmp.ne.s32.totalorder %s55, %s56
    %p67 = scmp.eq.s32.totalorder %s26, 0
    %p68 = por %p66, %p67
    %p69 = scmp.ne.s32.totalorder %s55, %s56
    %p70 = scmp.eq.s32.totalorder %s27, 1
    %p71 = por %p69, %p70
    %p73 = scmp.ne.s32.totalorder %s56, %s72
    %p74 = scmp.eq.s32.totalorder %s27, 0
    %p75 = por %p73, %p74
    %s76 = ssub.s32 %s28, %s47
    %s77 = ssub.s32 %s30, %s39
    %s78 = sor.u32 %s76, %s77
    %p79 = scmp.eq.s32.totalorder %s78, 0
    %s81 = sadd.s32 %s80, 1
    %s82 = scalar_select %p79, %s80, %s81
    %p85 = pneg %p79
    %p86 = scmp.eq.s32.totalorder %s21, 1
    %p87 = por %p85, %p86
    %p88 = scmp.ne.s32.totalorder %s80, %s83
    %p89 = scmp.eq.s32.totalorder %s21, 0
    %p90 = por %p88, %p89
    %p91 = scmp.ne.s32.totalorder %s80, %s83
    %p92 = scmp.eq.s32.totalorder %s26, 1
    %p93 = por %p91, %p92
    %p94 = scmp.ne.s32.totalorder %s83, %s84
    %p95 = scmp.eq.s32.totalorder %s26, 0
    %p96 = por %p94, %p95
    %p97 = scmp.ne.s32.totalorder %s83, %s84
    %p98 = scmp.eq.s32.totalorder %s27, 1
    %p99 = por %p97, %p98
    %p101 = scmp.ne.s32.totalorder %s84, %s100
    %p102 = scmp.eq.s32.totalorder %s27, 0
    %p103 = por %p101, %p102
    %s104 = ssub.s32 %s28, %s47
    %s105 = ssub.s32 %s30, %s39
    %s106 = sor.u32 %s104, %s105
    %p107 = scmp.eq.s32.totalorder %s106, 0
    %s109 = sadd.s32 %s108, 1
    %s110 = scalar_select %p107, %s108, %s109
    %p113 = pneg %p107
    %p114 = scmp.eq.s32.totalorder %s21, 1
    %p115 = por %p113, %p114
    %p116 = scmp.ne.s32.totalorder %s108, %s111
    %p117 = scmp.eq.s32.totalorder %s21, 0
    %p118 = por %p116, %p117
    %p119 = scmp.ne.s32.totalorder %s108, %s111
    %p120 = scmp.eq.s32.totalorder %s26, 1
    %p121 = por %p119, %p120
    %p122 = scmp.ne.s32.totalorder %s111, %s112
    %p123 = scmp.eq.s32.totalorder %s26, 0
    %p124 = por %p122, %p123
    %p125 = scmp.ne.s32.totalorder %s111, %s112
    %p126 = scmp.eq.s32.totalorder %s27, 1
    %p127 = por %p125, %p126
    %p129 = scmp.ne.s32.totalorder %s112, %s128
    %p130 = scmp.eq.s32.totalorder %s27, 0
    %p131 = por %p129, %p130
    %s133 = sadd.s32 %s132, 1
    %p136 = scmp.eq.s32.totalorder %s21, 1
    %p137 = scmp.ne.s32.totalorder %s132, %s134
    %p138 = scmp.eq.s32.totalorder %s21, 0
    %p139 = por %p137, %p138
    %p140 = scmp.ne.s32.totalorder %s132, %s134
    %p141 = scmp.eq.s32.totalorder %s26, 1
    %p142 = por %p140, %p141
    %p143 = scmp.ne.s32.totalorder %s134, %s135
    %p144 = scmp.eq.s32.totalorder %s26, 0
    %p145 = por %p143, %p144
    %p146 = scmp.ne.s32.totalorder %s134, %s135
    %p147 = scmp.eq.s32.totalorder %s27, 1
    %p148 = por %p146, %p147
    %p150 = scmp.ne.s32.totalorder %s135, %s149
    %p151 = scmp.eq.s32.totalorder %s27, 0
    %p152 = por %p150, %p151
    %s154 = sadd.s32 %s153, 1
    %p157 = scmp.eq.s32.totalorder %s21, 1
    %p158 = scmp.ne.s32.totalorder %s153, %s155
    %p159 = scmp.eq.s32.totalorder %s21, 0
    %p160 = por %p158, %p159
    %p161 = scmp.ne.s32.totalorder %s153, %s155
    %p162 = scmp.eq.s32.totalorder %s26, 1
    %p163 = por %p161, %p162
    %p164 = scmp.ne.s32.totalorder %s155, %s156
    %p165 = scmp.eq.s32.totalorder %s26, 0
    %p166 = por %p164, %p165
    %p167 = scmp.ne.s32.totalorder %s155, %s156
    %p168 = scmp.eq.s32.totalorder %s27, 1
    %p169 = por %p167, %p168
    %p171 = scmp.ne.s32.totalorder %s156, %s170
    %p172 = scmp.eq.s32.totalorder %s27, 0
    %p173 = por %p171, %p172
    %s175 = sadd.s32 %s174, 1
    %p178 = scmp.eq.s32.totalorder %s21, 1
    %p179 = scmp.ne.s32.totalorder %s174, %s176
    %p180 = scmp.eq.s32.totalorder %s21, 0
    %p181 = por %p179, %p180
    %p182 = scmp.ne.s32.totalorder %s174, %s176
    %p183 = scmp.eq.s32.totalorder %s26, 1
    %p184 = por %p182, %p183
    %p185 = scmp.ne.s32.totalorder %s176, %s177
    %p186 = scmp.eq.s32.totalorder %s26, 0
    %p187 = por %p185, %p186
    %p188 = scmp.ne.s32.totalorder %s176, %s177
    %p189 = scmp.eq.s32.totalorder %s27, 1
    %p190 = por %p188, %p189
    %p192 = scmp.ne.s32.totalorder %s177, %s191
    %p193 = scmp.eq.s32.totalorder %s27, 0
    %p194 = por %p192, %p193
    %s196 = sadd.s32 %s195, 1
    %p199 = scmp.eq.s32.totalorder %s21, 1
    %p200 = scmp.ne.s32.totalorder %s195, %s197
    %p201 = scmp.eq.s32.totalorder %s21, 0
    %p202 = por %p200, %p201
    %p203 = scmp.ne.s32.totalorder %s195, %s197
    %p204 = scmp.eq.s32.totalorder %s26, 1
    %p205 = por %p203, %p204
    %p206 = scmp.ne.s32.totalorder %s197, %s198
    %p207 = scmp.eq.s32.totalorder %s26, 0
    %p208 = por %p206, %p207
    %p209 = scmp.ne.s32.totalorder %s197, %s198
    %p210 = scmp.eq.s32.totalorder %s27, 1
    %p211 = por %p209, %p210
    %p213 = scmp.ne.s32.totalorder %s198, %s212
    %p214 = scmp.eq.s32.totalorder %s27, 0
    %p215 = por %p213, %p214
    %s217 = sadd.s32 %s216, 1
    %p220 = scmp.eq.s32.totalorder %s21, 1
    %p221 = scmp.ne.s32.totalorder %s216, %s218
    %p222 = scmp.eq.s32.totalorder %s21, 0
    %p223 = por %p221, %p222
    %p224 = scmp.ne.s32.totalorder %s216, %s218
    %p225 = scmp.eq.s32.totalorder %s26, 1
    %p226 = por %p224, %p225
    %p227 = scmp.ne.s32.totalorder %s218, %s219
    %p228 = scmp.eq.s32.totalorder %s26, 0
    %p229 = por %p227, %p228
    %p230 = scmp.ne.s32.totalorder %s218, %s219
    %p231 = scmp.eq.s32.totalorder %s27, 1
    %p232 = por %p230, %p231
    %p234 = scmp.ne.s32.totalorder %s219, %s233
    %p235 = scmp.eq.s32.totalorder %s27, 0
    %p236 = por %p234, %p235
    %s238 = sadd.s32 %s237, 1
    %p241 = scmp.eq.s32.totalorder %s21, 1
    %p242 = scmp.ne.s32.totalorder %s237, %s239
    %p243 = scmp.eq.s32.totalorder %s21, 0
    %p244 = por %p242, %p243
    %p245 = scmp.ne.s32.totalorder %s237, %s239
    %p246 = scmp.eq.s32.totalorder %s26, 1
    %p247 = por %p245, %p246
    %p248 = scmp.ne.s32.totalorder %s239, %s240
    %p249 = scmp.eq.s32.totalorder %s26, 0
    %p250 = por %p248, %p249
    %p251 = scmp.ne.s32.totalorder %s239, %s240
    %p252 = scmp.eq.s32.totalorder %s27, 1
    %p253 = por %p251, %p252
    %p255 = scmp.ne.s32.totalorder %s240, %s254
    %p256 = scmp.eq.s32.totalorder %s27, 0
    %p257 = por %p255, %p256
    %s259 = sadd.s32 %s258, 1
    %p262 = scmp.eq.s32.totalorder %s21, 1
    %p263 = scmp.ne.s32.totalorder %s258, %s260
    %p264 = scmp.eq.s32.totalorder %s21, 0
    %p265 = por %p263, %p264
    %p266 = scmp.ne.s32.totalorder %s258, %s260
    %p267 = scmp.eq.s32.totalorder %s26, 1
    %p268 = por %p266, %p267
    %p269 = scmp.ne.s32.totalorder %s260, %s261
    %p270 = scmp.eq.s32.totalorder %s26, 0
    %p271 = por %p269, %p270
    %p272 = scmp.ne.s32.totalorder %s260, %s261
    %p273 = scmp.eq.s32.totalorder %s27, 1
    %p274 = por %p272, %p273
    %p276 = scmp.ne.s32.totalorder %s261, %s275
    %p277 = scmp.eq.s32.totalorder %s27, 0
    %p278 = por %p276, %p277
    %s280 = sadd.s32 %s279, 1
    %p283 = scmp.eq.s32.totalorder %s21, 1
    %p284 = scmp.ne.s32.totalorder %s279, %s281
    %p285 = scmp.eq.s32.totalorder %s21, 0
    %p286 = por %p284, %p285
    %p287 = scmp.ne.s32.totalorder %s279, %s281
    %p288 = scmp.eq.s32.totalorder %s26, 1
    %p289 = por %p287, %p288
    %p290 = scmp.ne.s32.totalorder %s281, %s282
    %p291 = scmp.eq.s32.totalorder %s26, 0
    %p292 = por %p290, %p291
    %p293 = scmp.ne.s32.totalorder %s281, %s282
    %p294 = scmp.eq.s32.totalorder %s27, 1
    %p295 = por %p293, %p294
    %p297 = scmp.ne.s32.totalorder %s282, %s296
    %p298 = scmp.eq.s32.totalorder %s27, 0
    %p299 = por %p297, %p298
    %s301 = sadd.s32 %s300, 1
    %p304 = scmp.eq.s32.totalorder %s21, 1
    %p305 = scmp.ne.s32.totalorder %s300, %s302
    %p306 = scmp.eq.s32.totalorder %s21, 0
    %p307 = por %p305, %p306
    %p308 = scmp.ne.s32.totalorder %s300, %s302
    %p309 = scmp.eq.s32.totalorder %s26, 1
    %p310 = por %p308, %p309
    %p311 = scmp.ne.s32.totalorder %s302, %s303
    %p312 = scmp.eq.s32.totalorder %s26, 0
    %p313 = por %p311, %p312
    %p314 = scmp.ne.s32.totalorder %s302, %s303
    %p315 = scmp.eq.s32.totalorder %s27, 1
    %p316 = por %p314, %p315
    %p318 = scmp.ne.s32.totalorder %s303, %s317
    %p319 = scmp.eq.s32.totalorder %s27, 0
    %p320 = por %p318, %p319
    %s322 = sadd.s32 %s321, 1
    %p325 = scmp.eq.s32.totalorder %s21, 1
    %p326 = scmp.ne.s32.totalorder %s321, %s323
    %p327 = scmp.eq.s32.totalorder %s21, 0
    %p328 = por %p326, %p327
    %p329 = scmp.ne.s32.totalorder %s321, %s323
    %p330 = scmp.eq.s32.totalorder %s26, 1
    %p331 = por %p329, %p330
    %p332 = scmp.ne.s32.totalorder %s323, %s324
    %p333 = scmp.eq.s32.totalorder %s26, 0
    %p334 = por %p332, %p333
    %p335 = scmp.ne.s32.totalorder %s323, %s324
    %p336 = scmp.eq.s32.totalorder %s27, 1
    %p337 = por %p335, %p336
    %p339 = scmp.ne.s32.totalorder %s324, %s338
    %p340 = scmp.eq.s32.totalorder %s27, 0
    %p341 = por %p339, %p340
    %s343 = sadd.s32 %s342, 1
    %p346 = scmp.eq.s32.totalorder %s21, 1
    %p347 = scmp.ne.s32.totalorder %s342, %s344
    %p348 = scmp.eq.s32.totalorder %s21, 0
    %p349 = por %p347, %p348
    %p350 = scmp.ne.s32.totalorder %s342, %s344
    %p351 = scmp.eq.s32.totalorder %s26, 1
    %p352 = por %p350, %p351
    %p353 = scmp.ne.s32.totalorder %s344, %s345
    %p354 = scmp.eq.s32.totalorder %s26, 0
    %p355 = por %p353, %p354
    %p356 = scmp.ne.s32.totalorder %s344, %s345
    %p357 = scmp.eq.s32.totalorder %s27, 1
    %p358 = por %p356, %p357
    %p360 = scmp.ne.s32.totalorder %s345, %s359
    %p361 = scmp.eq.s32.totalorder %s27, 0
    %p362 = por %p360, %p361
    %s364 = sadd.s32 %s363, 1
    %p367 = scmp.eq.s32.totalorder %s21, 1
    %p368 = scmp.ne.s32.totalorder %s363, %s365
    %p369 = scmp.eq.s32.totalorder %s21, 0
    %p370 = por %p368, %p369
    %p371 = scmp.ne.s32.totalorder %s363, %s365
    %p372 = scmp.eq.s32.totalorder %s26, 1
    %p373 = por %p371, %p372
    %p374 = scmp.ne.s32.totalorder %s365, %s366
    %p375 = scmp.eq.s32.totalorder %s26, 0
    %p376 = por %p374, %p375
    %p377 = scmp.ne.s32.totalorder %s365, %s366
    %p378 = scmp.eq.s32.totalorder %s27, 1
    %p379 = por %p377, %p378
    %p381 = scmp.ne.s32.totalorder %s366, %s380
    %p382 = scmp.eq.s32.totalorder %s27, 0
    %p383 = por %p381, %p382
    %s384 = ssub.s32 %s28, %s47
    %s385 = ssub.s32 %s29, %s43
    %s386 = sor.u32 %s384, %s385
    %p387 = scmp.eq.s32.totalorder %s386, 0
    %s389 = sadd.s32 %s388, 1
    %s390 = scalar_select %p387, %s388, %s389
    %p393 = pneg %p387
    %p394 = scmp.eq.s32.totalorder %s21, 1
    %p395 = por %p393, %p394
    %p396 = scmp.ne.s32.totalorder %s388, %s391
    %p397 = scmp.eq.s32.totalorder %s21, 0
    %p398 = por %p396, %p397
    %p399 = scmp.ne.s32.totalorder %s388, %s391
    %p400 = scmp.eq.s32.totalorder %s26, 1
    %p401 = por %p399, %p400
    %p402 = scmp.ne.s32.totalorder %s391, %s392
    %p403 = scmp.eq.s32.totalorder %s26, 0
    %p404 = por %p402, %p403
    %p405 = scmp.ne.s32.totalorder %s391, %s392
    %p406 = scmp.eq.s32.totalorder %s27, 1
    %p407 = por %p405, %p406
    %p409 = scmp.ne.s32.totalorder %s392, %s408
    %p410 = scmp.eq.s32.totalorder %s27, 0
    %p411 = por %p409, %p410
    %p412 = scmp.le.s32.totalorder 1, %s21
    %p413 = scmp.lt.s32.totalorder %s21, 3
    %p414 = pnand %p412, %p413
    %p415 = pneg %p414
    // Predicated region
    $region9: #{transformer_encoder.5} parent=5 // pred_check
      _
    $region10: #{transformer_encoder.5} parent=5 // pred_check_branch
      %417 = sbr.rel (%p414) target = $region12
    $region11: #{transformer_encoder.5} parent=5 // pred_region
      %s418 = ssub.s32 %s21, 1
      // Predicated region
      $region13: #{transformer_encoder.5} parent=11 // pred_check
        %p419 = pneg %p145
      $region14: #{transformer_encoder.5} parent=11 // pred_check_branch
        %421 = sbr.rel (%p419) target = $region16
      $region15: #{transformer_encoder.5} parent=11 // pred_region
        _
      $region16: #{transformer_encoder.5} parent=11 // pred_fallthru
        _
      // Predicated region
      $region17: #{transformer_encoder.5} parent=11 // pred_check
        %p422 = pneg %p166
      $region18: #{transformer_encoder.5} parent=11 // pred_check_branch
        %424 = sbr.rel (%p422) target = $region20
      $region19: #{transformer_encoder.5} parent=11 // pred_region
        _
      $region20: #{transformer_encoder.5} parent=11 // pred_fallthru
        _
      // Predicated region
      $region21: #{transformer_encoder.5} parent=11 // pred_check
        %p425 = pneg %p187
      $region22: #{transformer_encoder.5} parent=11 // pred_check_branch
        %427 = sbr.rel (%p425) target = $region24
      $region23: #{transformer_encoder.5} parent=11 // pred_region
        _
      $region24: #{transformer_encoder.5} parent=11 // pred_fallthru
        _
      // Predicated region
      $region25: #{transformer_encoder.5} parent=11 // pred_check
        %p428 = pneg %p208
      $region26: #{transformer_encoder.5} parent=11 // pred_check_branch
        %430 = sbr.rel (%p428) target = $region28
      $region27: #{transformer_encoder.5} parent=11 // pred_region
        _
      $region28: #{transformer_encoder.5} parent=11 // pred_fallthru
        _
      // Predicated region
      $region29: #{transformer_encoder.5} parent=11 // pred_check
        %p431 = pneg %p229
      $region30: #{transformer_encoder.5} parent=11 // pred_check_branch
        %433 = sbr.rel (%p431) target = $region32
      $region31: #{transformer_encoder.5} parent=11 // pred_region
        _
      $region32: #{transformer_encoder.5} parent=11 // pred_fallthru
        _
      // Predicated region
      $region33: #{transformer_encoder.5} parent=11 // pred_check
        %p434 = pneg %p250
      $region34: #{transformer_encoder.5} parent=11 // pred_check_branch
        %436 = sbr.rel (%p434) target = $region36
      $region35: #{transformer_encoder.5} parent=11 // pred_region
        _
      $region36: #{transformer_encoder.5} parent=11 // pred_fallthru
        _
      // Predicated region
      $region37: #{transformer_encoder.5} parent=11 // pred_check
        %p437 = pneg %p271
      $region38: #{transformer_encoder.5} parent=11 // pred_check_branch
        %439 = sbr.rel (%p437) target = $region40
      $region39: #{transformer_encoder.5} parent=11 // pred_region
        _
      $region40: #{transformer_encoder.5} parent=11 // pred_fallthru
        _
      // Predicated region
      $region41: #{transformer_encoder.5} parent=11 // pred_check
        %p440 = pneg %p292
      $region42: #{transformer_encoder.5} parent=11 // pred_check_branch
        %442 = sbr.rel (%p440) target = $region44
      $region43: #{transformer_encoder.5} parent=11 // pred_region
        _
      $region44: #{transformer_encoder.5} parent=11 // pred_fallthru
        _
      // Predicated region
      $region45: #{transformer_encoder.5} parent=11 // pred_check
        %p443 = pneg %p313
      $region46: #{transformer_encoder.5} parent=11 // pred_check_branch
        %445 = sbr.rel (%p443) target = $region48
      $region47: #{transformer_encoder.5} parent=11 // pred_region
        _
      $region48: #{transformer_encoder.5} parent=11 // pred_fallthru
        _
      // Predicated region
      $region49: #{transformer_encoder.5} parent=11 // pred_check
        %p446 = pneg %p334
      $region50: #{transformer_encoder.5} parent=11 // pred_check_branch
        %448 = sbr.rel (%p446) target = $region52
      $region51: #{transformer_encoder.5} parent=11 // pred_region
        _
      $region52: #{transformer_encoder.5} parent=11 // pred_fallthru
        _
      // Predicated region
      $region53: #{transformer_encoder.5} parent=11 // pred_check
        %p449 = pneg %p355
      $region54: #{transformer_encoder.5} parent=11 // pred_check_branch
        %451 = sbr.rel (%p449) target = $region56
      $region55: #{transformer_encoder.5} parent=11 // pred_region
        _
      $region56: #{transformer_encoder.5} parent=11 // pred_fallthru
        _
      // Predicated region
      $region57: #{transformer_encoder.5} parent=11 // pred_check
        %p452 = pneg %p376
      $region58: #{transformer_encoder.5} parent=11 // pred_check_branch
        %454 = sbr.rel (%p452) target = $region60
      $region59: #{transformer_encoder.5} parent=11 // pred_region
        _
      $region60: #{transformer_encoder.5} parent=11 // pred_fallthru
        _
    $region12: #{transformer_encoder.5} parent=5 // pred_fallthru
      _
    %p455 = scmp.lt.s32.totalorder %s21, 2
    // Predicated region
    $region61: #{transformer_encoder.5} parent=5 // pred_check
      %p456 = pneg %p455
    $region62: #{transformer_encoder.5} parent=5 // pred_check_branch
      %458 = sbr.rel (%p456) target = $region64
    $region63: #{transformer_encoder.5} parent=5 // pred_region
      // Predicated region
      $region65: #{transformer_encoder.5} parent=63 // pred_check
        %p459 = pneg %p62
      $region66: #{transformer_encoder.5} parent=63 // pred_check_branch
        %461 = sbr.rel (%p459) target = $region68
      $region67: #{transformer_encoder.5} parent=63 // pred_region
        %p462 = scmp.lt.s32.totalorder %s28, 1
        %s463 = scalar_select %p462, %s28, 1
        %p464 = scmp.lt.s32.totalorder %s29, 0
        %s465 = scalar_select %p464, %s29, 0
        %s466 = sadd.s32 %s465, %s463
        %s467 = smul.addr %s466, 8
        %s468 = scalar_lea.vmem %s0, %s467
      $region68: #{transformer_encoder.5} parent=63 // pred_fallthru
        _
      // Predicated region
      $region69: #{transformer_encoder.5} parent=63 // pred_check
        %p469 = pneg %p90
      $region70: #{transformer_encoder.5} parent=63 // pred_check_branch
        %471 = sbr.rel (%p469) target = $region72
      $region71: #{transformer_encoder.5} parent=63 // pred_region
        %p472 = scmp.lt.s32.totalorder %s28, 1
        %s473 = scalar_select %p472, %s28, 1
        %p474 = scmp.lt.s32.totalorder %s30, 0
        %s475 = scalar_select %p474, %s30, 0
        %s476 = smul.addr %s473, 4
        %s477 = sadd.s32 %s475, %s476
        %s478 = smul.addr %s477, 4
        %s479 = scalar_lea.vmem %s1, %s478
      $region72: #{transformer_encoder.5} parent=63 // pred_fallthru
        _
      // Predicated region
      $region73: #{transformer_encoder.5} parent=63 // pred_check
        %p480 = pneg %p118
      $region74: #{transformer_encoder.5} parent=63 // pred_check_branch
        %482 = sbr.rel (%p480) target = $region76
      $region75: #{transformer_encoder.5} parent=63 // pred_region
        %p483 = scmp.lt.s32.totalorder %s28, 1
        %s484 = scalar_select %p483, %s28, 1
        %p485 = scmp.lt.s32.totalorder %s30, 0
        %s486 = scalar_select %p485, %s30, 0
        %s487 = smul.addr %s484, 4
        %s488 = sadd.s32 %s486, %s487
        %s489 = smul.addr %s488, 4
        %s490 = scalar_lea.vmem %s2, %s489
      $region76: #{transformer_encoder.5} parent=63 // pred_fallthru
        _
    $region64: #{transformer_encoder.5} parent=5 // pred_fallthru
      _
    %p491 = scmp.le.s32.totalorder 1, %s21
    %p492 = scmp.lt.s32.totalorder %s21, 3
    %p493 = pnand %p491, %p492
    %p494 = pneg %p493
    // Predicated region
    $region77: #{transformer_encoder.5} parent=5 // pred_check
      _
    $region78: #{transformer_encoder.5} parent=5 // pred_check_branch
      %496 = sbr.rel (%p493) target = $region80
    $region79: #{transformer_encoder.5} parent=5 // pred_region
      %s497 = ssub.s32 %s21, 1
      %p498 = scmp.lt.s32.totalorder %s31, 1
      %s499 = scalar_select %p498, %s31, 1
      %p500 = scmp.lt.s32.totalorder %s32, 0
      %s501 = scalar_select %p500, %s32, 0
      %s502 = sadd.s32 %s501, %s499
      %s503 = smul.addr %s502, 8
      %s504 = scalar_lea.vmem %s0, %s503
      %p505 = pneg %p68
      %p506 = pneg %p65
      %p507 = scmp.lt.s32.totalorder %s31, 1
      %s508 = scalar_select %p507, %s31, 1
      %p509 = scmp.lt.s32.totalorder %s33, 0
      %s510 = scalar_select %p509, %s33, 0
      %s511 = smul.addr %s508, 4
      %s512 = sadd.s32 %s510, %s511
      %s513 = smul.addr %s512, 4
      %s514 = scalar_lea.vmem %s1, %s513
      %p515 = pneg %p96
      %p516 = pneg %p93
      %p517 = scmp.lt.s32.totalorder %s31, 1
      %s518 = scalar_select %p517, %s31, 1
      %p519 = scmp.lt.s32.totalorder %s33, 0
      %s520 = scalar_select %p519, %s33, 0
      %s521 = smul.addr %s518, 4
      %s522 = sadd.s32 %s520, %s521
      %s523 = smul.addr %s522, 4
      %s524 = scalar_lea.vmem %s2, %s523
      %p525 = pneg %p124
      %p526 = pneg %p121
      %p527 = pneg %p145
      %p528 = pneg %p142
      %p529 = pneg %p166
      %p530 = pneg %p163
      %p531 = pneg %p187
      %p532 = pneg %p184
      %p533 = pneg %p208
      %p534 = pneg %p205
      %p535 = pneg %p229
      %p536 = pneg %p226
      %p537 = pneg %p250
      %p538 = pneg %p247
      %p539 = pneg %p271
      %p540 = pneg %p268
      %p541 = pneg %p292
      %p542 = pneg %p289
      %p543 = pneg %p313
      %p544 = pneg %p310
      %p545 = pneg %p334
      %p546 = pneg %p331
      %p547 = pneg %p355
      %p548 = pneg %p352
      %p549 = pneg %p376
      %p550 = pneg %p373
      %p551 = pneg %p404
      %p552 = pneg %p401
      %p553 = scmp.lt.s32.totalorder %s31, 1
      %s554 = scalar_select %p553, %s31, 1
      %p555 = scmp.lt.s32.totalorder %s32, 0
      %s556 = scalar_select %p555, %s32, 0
      %s557 = sadd.s32 %s556, %s554
      %s558 = smul.addr %s557, 8
      %s559 = scalar_lea.vmem %s15, %s558
      %p560 = scmp.lt.s32.totalorder %s31, 1
      %s561 = scalar_select %p560, %s31, 1
      %p562 = scmp.lt.s32.totalorder %s32, 0
      %s563 = scalar_select %p562, %s32, 0
      %s564 = sadd.s32 %s563, %s561
      %s565 = smul.addr %s564, 8
      %s566 = scalar_lea.vmem %s0, %s565
      %p567 = scmp.lt.s32.totalorder %s31, 1
      %s568 = scalar_select %p567, %s31, 1
      %p569 = scmp.lt.s32.totalorder %s33, 0
      %s570 = scalar_select %p569, %s33, 0
      %s571 = smul.addr %s568, 4
      %s572 = sadd.s32 %s570, %s571
      %s573 = smul.addr %s572, 4
      %s574 = scalar_lea.vmem %s1, %s573
      %p575 = scmp.lt.s32.totalorder %s31, 1
      %s576 = scalar_select %p575, %s31, 1
      %p577 = scmp.lt.s32.totalorder %s33, 0
      %s578 = scalar_select %p577, %s33, 0
      %s579 = smul.addr %s576, 4
      %s580 = sadd.s32 %s578, %s579
      %s581 = smul.addr %s580, 4
      %s582 = scalar_lea.vmem %s2, %s581
      %p583 = scmp.lt.s32.totalorder %s31, 1
      %s584 = scalar_select %p583, %s31, 1
      %p585 = scmp.lt.s32.totalorder %s32, 0
      %s586 = scalar_select %p585, %s32, 0
      %s587 = sadd.s32 %s586, %s584
      %s588 = smul.addr %s587, 8
      %s589 = scalar_lea.vmem %s15, %s588
      %p591 = scmp.eq.s32.totalorder %s33, 0
      // Predicated region
      $region81: #{transformer_encoder.5} parent=79 // pred_check
        %p592 = pneg %p591
      $region82: #{transformer_encoder.5} parent=79 // pred_check_branch
        %594 = sbr.rel (%p592) target = $region84
      $region83: #{transformer_encoder.5} parent=79 // pred_region
        %v595 = vld [vmem:[%s566] sm:$0xff]
        %v596 = vpack.c.bf16 %v595, %v595
        %v597 = vld [vmem:[%s3] sm:$0xf]
        %v598 = vld [vmem:[%s3 + $0x4] sm:$0xf]
        %v599 = vld [vmem:[%s3 + $0x8] sm:$0xf]
        %v600 = vld [vmem:[%s3 + $0xc] sm:$0xf]
        %v601 = vld [vmem:[%s4] sm:$0x1]
        %v603 = vlaneseq
        %v604 = vshrl.u32 %v603, 7
        %v605 = vsub.s32 0, %v604
        %v606 = vrot.slane %v601, %v605
        %v612 = vunpack.c.l.b16 %v597
        %v613 = vunpack.c.l.b16 %v598
        %v614 = vunpack.c.l.b16 %v599
        %v615 = vunpack.c.l.b16 %v600
        %v616 = vpack.c.b16 %v613, %v612
        %v617 = vpack.c.b16 %v615, %v614
        %vm620 = vcmask 261120
        %v622 = vsel %vm620, %v596, 0
        %624 = vmatprep.subr.bf16.mxu0 0
        %625 = vmatpush1.bf16.msra.mxu0 %v616
        %626 = vmatprep.subr.bf16.mxu0 0
        %627 = vmatpush1.bf16.msra.mxu0 %v617
        %628 = vmatprep.subr.bf16.mxu0 0
        %629 = vmatpush1.bf16.msra.mxu0 0
        %630 = vmatprep.subr.bf16.mxu0 0
        %631 = vmatpush1.bf16.msra.mxu0 0
        %632 = vmatprep.subr.bf16.mxu0 0
        %633 = vmatpush1.bf16.msra.mxu0 0
        %634 = vmatprep.subr.bf16.mxu0 0
        %635 = vmatpush1.bf16.msra.mxu0 0
        %636 = vmatprep.subr.bf16.mxu0 0
        %637 = vmatpush1.bf16.msra.mxu0 0
        %638 = vmatprep.subr.bf16.mxu0 0
        %639 = vmatpush1.bf16.msra.mxu0 0
        %640 = vmatprep.subr.bf16.mxu0 0
        %641 = vmatpush1.bf16.msra.mxu0 0
        %642 = vmatprep.subr.bf16.mxu0 0
        %643 = vmatpush1.bf16.msra.mxu0 0
        %644 = vmatprep.subr.bf16.mxu0 0
        %645 = vmatpush1.bf16.msra.mxu0 0
        %646 = vmatprep.subr.bf16.mxu0 0
        %647 = vmatpush1.bf16.msra.mxu0 0
        %648 = vmatprep.subr.bf16.mxu0 0
        %649 = vmatpush1.bf16.msra.mxu0 0
        %650 = vmatprep.subr.bf16.mxu0 0
        %651 = vmatpush1.bf16.msra.mxu0 0
        %652 = vmatprep.subr.bf16.mxu0 0
        %653 = vmatpush1.bf16.msra.mxu0 0
        %654 = vmatprep.subr.bf16.mxu0 0
        %655 = vmatpush1.bf16.msra.mxu0 0
        %656 = vmatprep.mubr.bf16.mxu0 0
        %657 = vmatmul.mubr.bf16.gmra.mrb[0].mxu0 %v622
        %v658 = vpop.f32.mrb[0].mxu0
        %v659 = vadd.f32 %v606, %v658
        %v660 = vpop.f32.mrb[0].mxu0
        %v661 = vpop.f32.mrb[0].mxu0
        %v662 = vpop.f32.mrb[0].mxu0
        %663 = vdwg.mxu0
        %665 = vrot.lane.b32.xlu0 %v659, 120
        %v666 = vpop.permute.xlu0 %665
        %668 = vrot.lane.b32.xlu0 %v659, 112
        %v669 = vpop.permute.xlu0 %668
        %671 = vrot.lane.b32.xlu0 %v659, 104
        %v672 = vpop.permute.xlu0 %671
        %v674 = vcombine.low %v659, %v669
        %v675 = vcombine.high %v659, %v669
        %v677 = vunpack.c.l.s4 1983009808
        %v678 = vunpack.c.0.s8 %v677
        %v679 = vlaneseq
        %v680 = vshrl.u32 %v679, 7
        %v681 = vsub.s32 %v678, %v680
        %v682 = vrot.slane %v674, %v681
        %v684 = vunpack.c.l.s4 1983009808
        %v685 = vunpack.c.0.s8 %v684
        %v686 = vlaneseq
        %v687 = vshrl.u32 %v686, 7
        %v688 = vsub.s32 %v685, %v687
        %v689 = vrot.slane %v675, %v688
        %v690 = vcombine.low %v666, %v672
        %v691 = vcombine.high %v666, %v672
        %v693 = vunpack.c.l.s4 1983009808
        %v694 = vunpack.c.0.s8 %v693
        %v695 = vlaneseq
        %v696 = vshrl.u32 %v695, 7
        %v697 = vsub.s32 %v694, %v696
        %v698 = vrot.slane %v690, %v697
        %v700 = vunpack.c.l.s4 1983009808
        %v701 = vunpack.c.0.s8 %v700
        %v702 = vlaneseq
        %v703 = vshrl.u32 %v702, 7
        %v704 = vsub.s32 %v701, %v703
        %v705 = vrot.slane %v691, %v704
        %v706 = vcombine.low %v682, %v698
        %v707 = vcombine.high %v682, %v698
        %v709 = vunpack.c.l.s4 1934713408
        %v710 = vunpack.c.0.s8 %v709
        %v711 = vlaneseq
        %v712 = vshrl.u32 %v711, 7
        %v713 = vsub.s32 %v710, %v712
        %v714 = vrot.slane %v706, %v713
        %v716 = vunpack.c.l.s4 1934713408
        %v717 = vunpack.c.0.s8 %v716
        %v718 = vlaneseq
        %v719 = vshrl.u32 %v718, 7
        %v720 = vsub.s32 %v717, %v719
        %v721 = vrot.slane %v707, %v720
        %v722 = vcombine.low %v689, %v705
        %v723 = vcombine.high %v689, %v705
        %v725 = vunpack.c.l.s4 1934713408
        %v726 = vunpack.c.0.s8 %v725
        %v727 = vlaneseq
        %v728 = vshrl.u32 %v727, 7
        %v729 = vsub.s32 %v726, %v728
        %v730 = vrot.slane %v722, %v729
        %v732 = vunpack.c.l.s4 1934713408
        %v733 = vunpack.c.0.s8 %v732
        %v734 = vlaneseq
        %v735 = vshrl.u32 %v734, 7
        %v736 = vsub.s32 %v733, %v735
        %v737 = vrot.slane %v723, %v736
        %v738 = vcombine.high %v714, 0.0
        %v739 = vcombine.high %v721, 0.0
        %v740 = vcombine.high %v730, 0.0
        %v741 = vcombine.high %v737, 0.0
        %v742 = vcombine.low %v714, %v721
        %v744 = vunpack.c.l.s4 1983009808
        %v745 = vunpack.c.0.s8 %v744
        %v746 = vlaneseq
        %v747 = vshrl.u32 %v746, 7
        %v748 = vsub.s32 %v745, %v747
        %v749 = vrot.slane %v742, %v748
        %v750 = vcombine.low %v738, %v739
        %v752 = vunpack.c.l.s4 1983009808
        %v753 = vunpack.c.0.s8 %v752
        %v754 = vlaneseq
        %v755 = vshrl.u32 %v754, 7
        %v756 = vsub.s32 %v753, %v755
        %v757 = vrot.slane %v750, %v756
        %v758 = vcombine.low %v730, %v737
        %v760 = vunpack.c.l.s4 1983009808
        %v761 = vunpack.c.0.s8 %v760
        %v762 = vlaneseq
        %v763 = vshrl.u32 %v762, 7
        %v764 = vsub.s32 %v761, %v763
        %v765 = vrot.slane %v758, %v764
        %v766 = vcombine.low %v740, %v741
        %v768 = vunpack.c.l.s4 1983009808
        %v769 = vunpack.c.0.s8 %v768
        %v770 = vlaneseq
        %v771 = vshrl.u32 %v770, 7
        %v772 = vsub.s32 %v769, %v771
        %v773 = vrot.slane %v766, %v772
        %v774 = vcombine.low %v749, %v757
        %v775 = vcombine.high %v749, %v757
        %v777 = vunpack.c.l.s4 1934713408
        %v778 = vunpack.c.0.s8 %v777
        %v779 = vlaneseq
        %v780 = vshrl.u32 %v779, 7
        %v781 = vsub.s32 %v778, %v780
        %v782 = vrot.slane %v774, %v781
        %v784 = vunpack.c.l.s4 1934713408
        %v785 = vunpack.c.0.s8 %v784
        %v786 = vlaneseq
        %v787 = vshrl.u32 %v786, 7
        %v788 = vsub.s32 %v785, %v787
        %v789 = vrot.slane %v775, %v788
        %v790 = vcombine.low %v765, %v773
        %v791 = vcombine.high %v765, %v773
        %v793 = vunpack.c.l.s4 1934713408
        %v794 = vunpack.c.0.s8 %v793
        %v795 = vlaneseq
        %v796 = vshrl.u32 %v795, 7
        %v797 = vsub.s32 %v794, %v796
        %v798 = vrot.slane %v790, %v797
        %v800 = vunpack.c.l.s4 1934713408
        %v801 = vunpack.c.0.s8 %v800
        %v802 = vlaneseq
        %v803 = vshrl.u32 %v802, 7
        %v804 = vsub.s32 %v801, %v803
        %v805 = vrot.slane %v791, %v804
        %v806 = vcombine.low %v782, %v798
        %v807 = vcombine.high %v782, %v798
        %v808 = vcombine.low %v789, %v805
        %v809 = vcombine.high %v789, %v805
        %v810 = vpack.c.bf16 %v806, %v806
        %v811 = vpack.c.bf16 %v807, %v807
        %v812 = vpack.c.bf16 %v808, %v808
        %v813 = vpack.c.bf16 %v809, %v809
        %vm814 = vcmask 60416
        %815 = vst.msk [vmem:[#allocation2] sm:$0xf] %vm814, %v810
        %816 = vst.msk [vmem:[#allocation2 + $0x4] sm:$0xf] %vm814, %v811
        %817 = vst.msk [vmem:[#allocation2 + $0x8] sm:$0xf] %vm814, %v812
        %818 = vst.msk [vmem:[#allocation2 + $0xc] sm:$0xf] %vm814, %v813
        %vm819 = vcmask 7168
        %820 = vst.msk [vmem:[#allocation3] sm:$0xff] %vm819, -inf
        %821 = vst.msk [vmem:[#allocation3 + $0x8] sm:$0xff] %vm819, -inf
        %822 = vst.msk [vmem:[#allocation3 + $0x10] sm:$0xff] %vm819, -inf
        %823 = vst.msk [vmem:[#allocation3 + $0x18] sm:$0xff] %vm819, -inf
        %824 = vst.msk [vmem:[#allocation4] sm:$0xff] %vm819, 0.0
        %825 = vst.msk [vmem:[#allocation4 + $0x8] sm:$0xff] %vm819, 0.0
        %826 = vst.msk [vmem:[#allocation4 + $0x10] sm:$0xff] %vm819, 0.0
        %827 = vst.msk [vmem:[#allocation4 + $0x18] sm:$0xff] %vm819, 0.0
        %vm828 = vcmask 64512
        %829 = vst.msk [vmem:[#allocation5] sm:$0xff] %vm828, 0.0
        %830 = vst.msk [vmem:[#allocation5 + $0x8] sm:$0xff] %vm828, 0.0
        %831 = vst.msk [vmem:[#allocation5 + $0x10] sm:$0xff] %vm828, 0.0
        %832 = vst.msk [vmem:[#allocation5 + $0x18] sm:$0xff] %vm828, 0.0
      $region84: #{transformer_encoder.5} parent=79 // pred_fallthru
        _
      %v833 = vld [vmem:[#allocation2] sm:$0xf]
      %v834 = vld [vmem:[#allocation2 + $0x4] sm:$0xf]
      %v835 = vld [vmem:[#allocation2 + $0x8] sm:$0xf]
      %v836 = vld [vmem:[#allocation2 + $0xc] sm:$0xf]
      %v837 = vld [vmem:[%s574] sm:$0xf]
      %v838 = vld [vmem:[%s574 + $0x4] sm:$0xf]
      %v839 = vld [vmem:[%s574 + $0x8] sm:$0xf]
      %v840 = vld [vmem:[%s574 + $0xc] sm:$0xf]
      %vm841 = vcmask 64512
      %v843 = vsel %vm841, %v833, 0
      %v846 = vsel %vm841, %v837, 0
      %848 = vmatprep.subr.bf16.mxu0 0
      %849 = vmatpush1.bf16.xpose.msra.mxu0 %v846
      %850 = vmatprep.subr.bf16.mxu0 0
      %851 = vmatpush1.bf16.xpose.msra.mxu0 0
      %852 = vmatprep.subr.bf16.mxu0 0
      %853 = vmatpush1.bf16.xpose.msra.mxu0 0
      %854 = vmatprep.subr.bf16.mxu0 0
      %855 = vmatpush1.bf16.xpose.msra.mxu0 0
      %856 = vmatprep.subr.bf16.mxu0 0
      %857 = vmatpush1.bf16.xpose.msra.mxu0 0
      %858 = vmatprep.subr.bf16.mxu0 0
      %859 = vmatpush1.bf16.xpose.msra.mxu0 0
      %860 = vmatprep.subr.bf16.mxu0 0
      %861 = vmatpush1.bf16.xpose.msra.mxu0 0
      %862 = vmatprep.subr.bf16.mxu0 0
      %863 = vmatpush1.bf16.xpose.msra.mxu0 0
      %864 = vmatprep.subr.bf16.mxu0 0
      %865 = vmatpush1.bf16.xpose.msra.mxu0 0
      %866 = vmatprep.subr.bf16.mxu0 0
      %867 = vmatpush1.bf16.xpose.msra.mxu0 0
      %868 = vmatprep.subr.bf16.mxu0 0
      %869 = vmatpush1.bf16.xpose.msra.mxu0 0
      %870 = vmatprep.subr.bf16.mxu0 0
      %871 = vmatpush1.bf16.xpose.msra.mxu0 0
      %872 = vmatprep.subr.bf16.mxu0 0
      %873 = vmatpush1.bf16.xpose.msra.mxu0 0
      %874 = vmatprep.subr.bf16.mxu0 0
      %875 = vmatpush1.bf16.xpose.msra.mxu0 0
      %876 = vmatprep.subr.bf16.mxu0 0
      %877 = vmatpush1.bf16.xpose.msra.mxu0 0
      %878 = vmatprep.subr.bf16.mxu0 0
      %879 = vmatpush1.bf16.xpose.msra.mxu0 0
      %880 = vmatprep.mubr.bf16.mxu0 0
      %881 = vmatmul.mubr.bf16.gmra.mrb[0].mxu0 %v843
      %v882 = vpop.f32.mrb[0].mxu0
      %v883 = vadd.f32 0.0, %v882
      %v884 = vpop.f32.mrb[0].mxu0
      %v885 = vpop.f32.mrb[0].mxu0
      %v886 = vpop.f32.mrb[0].mxu0
      %887 = vdwg.mxu0
      %v889 = vsel %vm841, %v834, 0
      %v892 = vsel %vm841, %v838, 0
      %894 = vmatprep.subr.bf16.mxu0 0
      %895 = vmatpush1.bf16.xpose.msra.mxu0 %v892
      %896 = vmatprep.subr.bf16.mxu0 0
      %897 = vmatpush1.bf16.xpose.msra.mxu0 0
      %898 = vmatprep.subr.bf16.mxu0 0
      %899 = vmatpush1.bf16.xpose.msra.mxu0 0
      %900 = vmatprep.subr.bf16.mxu0 0
      %901 = vmatpush1.bf16.xpose.msra.mxu0 0
      %902 = vmatprep.subr.bf16.mxu0 0
      %903 = vmatpush1.bf16.xpose.msra.mxu0 0
      %904 = vmatprep.subr.bf16.mxu0 0
      %905 = vmatpush1.bf16.xpose.msra.mxu0 0
      %906 = vmatprep.subr.bf16.mxu0 0
      %907 = vmatpush1.bf16.xpose.msra.mxu0 0
      %908 = vmatprep.subr.bf16.mxu0 0
      %909 = vmatpush1.bf16.xpose.msra.mxu0 0
      %910 = vmatprep.subr.bf16.mxu0 0
      %911 = vmatpush1.bf16.xpose.msra.mxu0 0
      %912 = vmatprep.subr.bf16.mxu0 0
      %913 = vmatpush1.bf16.xpose.msra.mxu0 0
      %914 = vmatprep.subr.bf16.mxu0 0
      %915 = vmatpush1.bf16.xpose.msra.mxu0 0
      %916 = vmatprep.subr.bf16.mxu0 0
      %917 = vmatpush1.bf16.xpose.msra.mxu0 0
      %918 = vmatprep.subr.bf16.mxu0 0
      %919 = vmatpush1.bf16.xpose.msra.mxu0 0
      %920 = vmatprep.subr.bf16.mxu0 0
      %921 = vmatpush1.bf16.xpose.msra.mxu0 0
      %922 = vmatprep.subr.bf16.mxu0 0
      %923 = vmatpush1.bf16.xpose.msra.mxu0 0
      %924 = vmatprep.subr.bf16.mxu0 0
      %925 = vmatpush1.bf16.xpose.msra.mxu0 0
      %926 = vmatprep.mubr.bf16.mxu0 0
      %927 = vmatmul.mubr.bf16.gmra.mrb[0].mxu0 %v889
      %v928 = vpop.f32.mrb[0].mxu0
      %v929 = vadd.f32 0.0, %v928
      %v930 = vpop.f32.mrb[0].mxu0
      %v931 = vpop.f32.mrb[0].mxu0
      %v932 = vpop.f32.mrb[0].mxu0
      %933 = vdwg.mxu0
      %v935 = vsel %vm841, %v835, 0
      %v938 = vsel %vm841, %v839, 0
      %940 = vmatprep.subr.bf16.mxu0 0
      %941 = vmatpush1.bf16.xpose.msra.mxu0 %v938
      %942 = vmatprep.subr.bf16.mxu0 0
      %943 = vmatpush1.bf16.xpose.msra.mxu0 0
      %944 = vmatprep.subr.bf16.mxu0 0
      %945 = vmatpush1.bf16.xpose.msra.mxu0 0
      %946 = vmatprep.subr.bf16.mxu0 0
      %947 = vmatpush1.bf16.xpose.msra.mxu0 0
      %948 = vmatprep.subr.bf16.mxu0 0
      %949 = vmatpush1.bf16.xpose.msra.mxu0 0
      %950 = vmatprep.subr.bf16.mxu0 0
      %951 = vmatpush1.bf16.xpose.msra.mxu0 0
      %952 = vmatprep.subr.bf16.mxu0 0
      %953 = vmatpush1.bf16.xpose.msra.mxu0 0
      %954 = vmatprep.subr.bf16.mxu0 0
      %955 = vmatpush1.bf16.xpose.msra.mxu0 0
      %956 = vmatprep.subr.bf16.mxu0 0
      %957 = vmatpush1.bf16.xpose.msra.mxu0 0
      %958 = vmatprep.subr.bf16.mxu0 0
      %959 = vmatpush1.bf16.xpose.msra.mxu0 0
      %960 = vmatprep.subr.bf16.mxu0 0
      %961 = vmatpush1.bf16.xpose.msra.mxu0 0
      %962 = vmatprep.subr.bf16.mxu0 0
      %963 = vmatpush1.bf16.xpose.msra.mxu0 0
      %964 = vmatprep.subr.bf16.mxu0 0
      %965 = vmatpush1.bf16.xpose.msra.mxu0 0
      %966 = vmatprep.subr.bf16.mxu0 0
      %967 = vmatpush1.bf16.xpose.msra.mxu0 0
      %968 = vmatprep.subr.bf16.mxu0 0
      %969 = vmatpush1.bf16.xpose.msra.mxu0 0
      %970 = vmatprep.subr.bf16.mxu0 0
      %971 = vmatpush1.bf16.xpose.msra.mxu0 0
      %972 = vmatprep.mubr.bf16.mxu0 0
      %973 = vmatmul.mubr.bf16.gmra.mrb[0].mxu0 %v935
      %v974 = vpop.f32.mrb[0].mxu0
      %v975 = vadd.f32 0.0, %v974
      %v976 = vpop.f32.mrb[0].mxu0
      %v977 = vpop.f32.mrb[0].mxu0
      %v978 = vpop.f32.mrb[0].mxu0
      %979 = vdwg.mxu0
      %v981 = vsel %vm841, %v836, 0
      %v984 = vsel %vm841, %v840, 0
      %986 = vmatprep.subr.bf16.mxu0 0
      %987 = vmatpush1.bf16.xpose.msra.mxu0 %v984
      %988 = vmatprep.subr.bf16.mxu0 0
      %989 = vmatpush1.bf16.xpose.msra.mxu0 0
      %990 = vmatprep.subr.bf16.mxu0 0
      %991 = vmatpush1.bf16.xpose.msra.mxu0 0
      %992 = vmatprep.subr.bf16.mxu0 0
      %993 = vmatpush1.bf16.xpose.msra.mxu0 0
      %994 = vmatprep.subr.bf16.mxu0 0
      %995 = vmatpush1.bf16.xpose.msra.mxu0 0
      %996 = vmatprep.subr.bf16.mxu0 0
      %997 = vmatpush1.bf16.xpose.msra.mxu0 0
      %998 = vmatprep.subr.bf16.mxu0 0
      %999 = vmatpush1.bf16.xpose.msra.mxu0 0
      %1000 = vmatprep.subr.bf16.mxu0 0
      %1001 = vmatpush1.bf16.xpose.msra.mxu0 0
      %1002 = vmatprep.subr.bf16.mxu0 0
      %1003 = vmatpush1.bf16.xpose.msra.mxu0 0
      %1004 = vmatprep.subr.bf16.mxu0 0
      %1005 = vmatpush1.bf16.xpose.msra.mxu0 0
      %1006 = vmatprep.subr.bf16.mxu0 0
      %1007 = vmatpush1.bf16.xpose.msra.mxu0 0
      %1008 = vmatprep.subr.bf16.mxu0 0
      %1009 = vmatpush1.bf16.xpose.msra.mxu0 0
      %1010 = vmatprep.subr.bf16.mxu0 0
      %1011 = vmatpush1.bf16.xpose.msra.mxu0 0
      %1012 = vmatprep.subr.bf16.mxu0 0
      %1013 = vmatpush1.bf16.xpose.msra.mxu0 0
      %1014 = vmatprep.subr.bf16.mxu0 0
      %1015 = vmatpush1.bf16.xpose.msra.mxu0 0
      %1016 = vmatprep.subr.bf16.mxu0 0
      %1017 = vmatpush1.bf16.xpose.msra.mxu0 0
      %1018 = vmatprep.mubr.bf16.mxu0 0
      %1019 = vmatmul.mubr.bf16.gmra.mrb[0].mxu0 %v981
      %v1020 = vpop.f32.mrb[0].mxu0
      %v1021 = vadd.f32 0.0, %v1020
      %v1022 = vpop.f32.mrb[0].mxu0
      %v1023 = vpop.f32.mrb[0].mxu0
      %v1024 = vpop.f32.mrb[0].mxu0
      %1025 = vdwg.mxu0
      %v1026 = vld [vmem:[#allocation3] sm:$0xff]
      %v1027 = vld [vmem:[#allocation3 + $0x8] sm:$0xff]
      %v1028 = vld [vmem:[#allocation3 + $0x10] sm:$0xff]
      %v1029 = vld [vmem:[#allocation3 + $0x18] sm:$0xff]
      %v1030 = vsel %vm841, %v883, -inf
      %1031 = vmax.xlane.f32.xlu0 %v1030
      %v1032 = vpop.xlane.xlu0 %1031
      %v1033 = vsel %vm841, %v929, -inf
      %1034 = vmax.xlane.f32.xlu0 %v1033
      %v1035 = vpop.xlane.xlu0 %1034
      %v1036 = vsel %vm841, %v975, -inf
      %1037 = vmax.xlane.f32.xlu0 %v1036
      %v1038 = vpop.xlane.xlu0 %1037
      %v1039 = vsel %vm841, %v1021, -inf
      %1040 = vmax.xlane.f32.xlu0 %v1039
      %v1041 = vpop.xlane.xlu0 %1040
      %v1042 = vmax.f32 %v1026, %v1032
      %v1043 = vmax.f32 %v1027, %v1035
      %v1044 = vmax.f32 %v1028, %v1038
      %v1045 = vmax.f32 %v1029, %v1041
      %v1046 = vsub.f32 %v1026, %v1042
      %v1047 = vsub.f32 %v1027, %v1043
      %v1048 = vsub.f32 %v1028, %v1044
      %v1049 = vsub.f32 %v1029, %v1045
      %v1050 = vmul.f32 %v1046, 1.442695
      %v1051 = vpow.pop %v1050
      %v1052 = vmul.f32 %v1047, 1.442695
      %v1053 = vpow.pop %v1052
      %v1054 = vmul.f32 %v1048, 1.442695
      %v1055 = vpow.pop %v1054
      %v1056 = vmul.f32 %v1049, 1.442695
      %v1057 = vpow.pop %v1056
      %1059 = vset.pattern.permute.xlu0 0
      %1060 = vperm.xlu0 %1059, %v1042
      %v1061 = vpop.permute.xlu0 %1060
      %1064 = vset.pattern.permute.xlu0 0
      %1065 = vperm.xlu0 %1064, %v1043
      %v1066 = vpop.permute.xlu0 %1065
      %1069 = vset.pattern.permute.xlu0 0
      %1070 = vperm.xlu0 %1069, %v1044
      %v1071 = vpop.permute.xlu0 %1070
      %1074 = vset.pattern.permute.xlu0 0
      %1075 = vperm.xlu0 %1074, %v1045
      %v1076 = vpop.permute.xlu0 %1075
      %v1078 = vsub.f32 %v883, %v1061
      %v1079 = vsub.f32 %v929, %v1066
      %v1080 = vsub.f32 %v975, %v1071
      %v1081 = vsub.f32 %v1021, %v1076
      %v1082 = vmul.f32 %v1078, 1.442695
      %v1083 = vpow.pop %v1082
      %v1084 = vmul.f32 %v1079, 1.442695
      %v1085 = vpow.pop %v1084
      %v1086 = vmul.f32 %v1080, 1.442695
      %v1087 = vpow.pop %v1086
      %v1088 = vmul.f32 %v1081, 1.442695
      %v1089 = vpow.pop %v1088
      %v1090 = vld [vmem:[#allocation4] sm:$0xff]
      %v1091 = vld [vmem:[#allocation4 + $0x8] sm:$0xff]
      %v1092 = vld [vmem:[#allocation4 + $0x10] sm:$0xff]
      %v1093 = vld [vmem:[#allocation4 + $0x18] sm:$0xff]
      %v1094 = vmul.f32 %v1051, %v1090
      %v1095 = vmul.f32 %v1053, %v1091
      %v1096 = vmul.f32 %v1055, %v1092
      %v1097 = vmul.f32 %v1057, %v1093
      %v1098 = vsel %vm841, %v1083, 0.0
      %1099 = vadd.xlane.f32.xlu0 %v1098
      %v1100 = vpop.xlane.xlu0 %1099
      %v1101 = vsel %vm841, %v1085, 0.0
      %1102 = vadd.xlane.f32.xlu0 %v1101
      %v1103 = vpop.xlane.xlu0 %1102
      %v1104 = vsel %vm841, %v1087, 0.0
      %1105 = vadd.xlane.f32.xlu0 %v1104
      %v1106 = vpop.xlane.xlu0 %1105
      %v1107 = vsel %vm841, %v1089, 0.0
      %1108 = vadd.xlane.f32.xlu0 %v1107
      %v1109 = vpop.xlane.xlu0 %1108
      %v1110 = vadd.f32 %v1094, %v1100
      %v1111 = vadd.f32 %v1095, %v1103
      %v1112 = vadd.f32 %v1096, %v1106
      %v1113 = vadd.f32 %v1097, %v1109
      %vm1114 = vcmask 7168
      %1115 = vst.msk [vmem:[#allocation4] sm:$0xff] %vm1114, %v1110
      %1116 = vst.msk [vmem:[#allocation4 + $0x8] sm:$0xff] %vm1114, %v1111
      %1117 = vst.msk [vmem:[#allocation4 + $0x10] sm:$0xff] %vm1114, %v1112
      %1118 = vst.msk [vmem:[#allocation4 + $0x18] sm:$0xff] %vm1114, %v1113
      %v1119 = vld [vmem:[#allocation5] sm:$0xff]
      %v1120 = vld [vmem:[#allocation5 + $0x8] sm:$0xff]
      %v1121 = vld [vmem:[#allocation5 + $0x10] sm:$0xff]
      %v1122 = vld [vmem:[#allocation5 + $0x18] sm:$0xff]
      %1124 = vset.pattern.permute.xlu0 0
      %1125 = vperm.xlu0 %1124, %v1051
      %v1126 = vpop.permute.xlu0 %1125
      %1129 = vset.pattern.permute.xlu0 0
      %1130 = vperm.xlu0 %1129, %v1053
      %v1131 = vpop.permute.xlu0 %1130
      %1134 = vset.pattern.permute.xlu0 0
      %1135 = vperm.xlu0 %1134, %v1055
      %v1136 = vpop.permute.xlu0 %1135
      %1139 = vset.pattern.permute.xlu0 0
      %1140 = vperm.xlu0 %1139, %v1057
      %v1141 = vpop.permute.xlu0 %1140
      %v1143 = vmul.f32 %v1126, %v1119
      %v1144 = vmul.f32 %v1131, %v1120
      %v1145 = vmul.f32 %v1136, %v1121
      %v1146 = vmul.f32 %v1141, %v1122
      %v1147 = vpack.c.bf16 %v1083, %v1083
      %v1148 = vpack.c.bf16 %v1085, %v1085
      %v1149 = vpack.c.bf16 %v1087, %v1087
      %v1150 = vpack.c.bf16 %v1089, %v1089
      %v1151 = vld [vmem:[%s582] sm:$0xf]
      %v1152 = vld [vmem:[%s582 + $0x4] sm:$0xf]
      %v1153 = vld [vmem:[%s582 + $0x8] sm:$0xf]
      %v1154 = vld [vmem:[%s582 + $0xc] sm:$0xf]
      %v1156 = vsel %vm841, %v1147, 0
      %vm1158 = vcmask 1043456
      %v1160 = vsel %vm1158, %v1151, 0
      %1162 = vmatprep.subr.bf16.mxu0 0
      %1163 = vmatpush1.bf16.msra.mxu0 %v1160
      %1164 = vmatprep.subr.bf16.mxu0 0
      %1165 = vmatpush1.bf16.msra.mxu0 0
      %1166 = vmatprep.subr.bf16.mxu0 0
      %1167 = vmatpush1.bf16.msra.mxu0 0
      %1168 = vmatprep.subr.bf16.mxu0 0
      %1169 = vmatpush1.bf16.msra.mxu0 0
      %1170 = vmatprep.subr.bf16.mxu0 0
      %1171 = vmatpush1.bf16.msra.mxu0 0
      %1172 = vmatprep.subr.bf16.mxu0 0
      %1173 = vmatpush1.bf16.msra.mxu0 0
      %1174 = vmatprep.subr.bf16.mxu0 0
      %1175 = vmatpush1.bf16.msra.mxu0 0
      %1176 = vmatprep.subr.bf16.mxu0 0
      %1177 = vmatpush1.bf16.msra.mxu0 0
      %1178 = vmatprep.subr.bf16.mxu0 0
      %1179 = vmatpush1.bf16.msra.mxu0 0
      %1180 = vmatprep.subr.bf16.mxu0 0
      %1181 = vmatpush1.bf16.msra.mxu0 0
      %1182 = vmatprep.subr.bf16.mxu0 0
      %1183 = vmatpush1.bf16.msra.mxu0 0
      %1184 = vmatprep.subr.bf16.mxu0 0
      %1185 = vmatpush1.bf16.msra.mxu0 0
      %1186 = vmatprep.subr.bf16.mxu0 0
      %1187 = vmatpush1.bf16.msra.mxu0 0
      %1188 = vmatprep.subr.bf16.mxu0 0
      %1189 = vmatpush1.bf16.msra.mxu0 0
      %1190 = vmatprep.subr.bf16.mxu0 0
      %1191 = vmatpush1.bf16.msra.mxu0 0
      %1192 = vmatprep.subr.bf16.mxu0 0
      %1193 = vmatpush1.bf16.msra.mxu0 0
      %1194 = vmatprep.mubr.bf16.mxu0 0
      %1195 = vmatmul.mubr.bf16.gmra.mrb[0].mxu0 %v1156
      %v1196 = vpop.f32.mrb[0].mxu0
      %v1197 = vadd.f32 0.0, %v1196
      %v1198 = vpop.f32.mrb[0].mxu0
      %v1199 = vpop.f32.mrb[0].mxu0
      %v1200 = vpop.f32.mrb[0].mxu0
      %1201 = vdwg.mxu0
      %v1203 = vsel %vm841, %v1148, 0
      %v1206 = vsel %vm1158, %v1152, 0
      %1208 = vmatprep.subr.bf16.mxu0 0
      %1209 = vmatpush1.bf16.msra.mxu0 %v1206
      %1210 = vmatprep.subr.bf16.mxu0 0
      %1211 = vmatpush1.bf16.msra.mxu0 0
      %1212 = vmatprep.subr.bf16.mxu0 0
      %1213 = vmatpush1.bf16.msra.mxu0 0
      %1214 = vmatprep.subr.bf16.mxu0 0
      %1215 = vmatpush1.bf16.msra.mxu0 0
      %1216 = vmatprep.subr.bf16.mxu0 0
      %1217 = vmatpush1.bf16.msra.mxu0 0
      %1218 = vmatprep.subr.bf16.mxu0 0
      %1219 = vmatpush1.bf16.msra.mxu0 0
      %1220 = vmatprep.subr.bf16.mxu0 0
      %1221 = vmatpush1.bf16.msra.mxu0 0
      %1222 = vmatprep.subr.bf16.mxu0 0
      %1223 = vmatpush1.bf16.msra.mxu0 0
      %1224 = vmatprep.subr.bf16.mxu0 0
      %1225 = vmatpush1.bf16.msra.mxu0 0
      %1226 = vmatprep.subr.bf16.mxu0 0
      %1227 = vmatpush1.bf16.msra.mxu0 0
      %1228 = vmatprep.subr.bf16.mxu0 0
      %1229 = vmatpush1.bf16.msra.mxu0 0
      %1230 = vmatprep.subr.bf16.mxu0 0
      %1231 = vmatpush1.bf16.msra.mxu0 0
      %1232 = vmatprep.subr.bf16.mxu0 0
      %1233 = vmatpush1.bf16.msra.mxu0 0
      %1234 = vmatprep.subr.bf16.mxu0 0
      %1235 = vmatpush1.bf16.msra.mxu0 0
      %1236 = vmatprep.subr.bf16.mxu0 0
      %1237 = vmatpush1.bf16.msra.mxu0 0
      %1238 = vmatprep.subr.bf16.mxu0 0
      %1239 = vmatpush1.bf16.msra.mxu0 0
      %1240 = vmatprep.mubr.bf16.mxu0 0
      %1241 = vmatmul.mubr.bf16.gmra.mrb[0].mxu0 %v1203
      %v1242 = vpop.f32.mrb[0].mxu0
      %v1243 = vadd.f32 0.0, %v1242
      %v1244 = vpop.f32.mrb[0].mxu0
      %v1245 = vpop.f32.mrb[0].mxu0
      %v1246 = vpop.f32.mrb[0].mxu0
      %1247 = vdwg.mxu0
      %v1249 = vsel %vm841, %v1149, 0
      %v1252 = vsel %vm1158, %v1153, 0
      %1254 = vmatprep.subr.bf16.mxu0 0
      %1255 = vmatpush1.bf16.msra.mxu0 %v1252
      %1256 = vmatprep.subr.bf16.mxu0 0
      %1257 = vmatpush1.bf16.msra.mxu0 0
      %1258 = vmatprep.subr.bf16.mxu0 0
      %1259 = vmatpush1.bf16.msra.mxu0 0
      %1260 = vmatprep.subr.bf16.mxu0 0
      %1261 = vmatpush1.bf16.msra.mxu0 0
      %1262 = vmatprep.subr.bf16.mxu0 0
      %1263 = vmatpush1.bf16.msra.mxu0 0
      %1264 = vmatprep.subr.bf16.mxu0 0
      %1265 = vmatpush1.bf16.msra.mxu0 0
      %1266 = vmatprep.subr.bf16.mxu0 0
      %1267 = vmatpush1.bf16.msra.mxu0 0
      %1268 = vmatprep.subr.bf16.mxu0 0
      %1269 = vmatpush1.bf16.msra.mxu0 0
      %1270 = vmatprep.subr.bf16.mxu0 0
      %1271 = vmatpush1.bf16.msra.mxu0 0
      %1272 = vmatprep.subr.bf16.mxu0 0
      %1273 = vmatpush1.bf16.msra.mxu0 0
      %1274 = vmatprep.subr.bf16.mxu0 0
      %1275 = vmatpush1.bf16.msra.mxu0 0
      %1276 = vmatprep.subr.bf16.mxu0 0
      %1277 = vmatpush1.bf16.msra.mxu0 0
      %1278 = vmatprep.subr.bf16.mxu0 0
      %1279 = vmatpush1.bf16.msra.mxu0 0
      %1280 = vmatprep.subr.bf16.mxu0 0
      %1281 = vmatpush1.bf16.msra.mxu0 0
      %1282 = vmatprep.subr.bf16.mxu0 0
      %1283 = vmatpush1.bf16.msra.mxu0 0
      %1284 = vmatprep.subr.bf16.mxu0 0
      %1285 = vmatpush1.bf16.msra.mxu0 0
      %1286 = vmatprep.mubr.bf16.mxu0 0
      %1287 = vmatmul.mubr.bf16.gmra.mrb[0].mxu0 %v1249
      %v1288 = vpop.f32.mrb[0].mxu0
      %v1289 = vadd.f32 0.0, %v1288
      %v1290 = vpop.f32.mrb[0].mxu0
      %v1291 = vpop.f32.mrb[0].mxu0
      %v1292 = vpop.f32.mrb[0].mxu0
      %1293 = vdwg.mxu0
      %v1295 = vsel %vm841, %v1150, 0
      %v1298 = vsel %vm1158, %v1154, 0
      %1300 = vmatprep.subr.bf16.mxu0 0
      %1301 = vmatpush1.bf16.msra.mxu0 %v1298
      %1302 = vmatprep.subr.bf16.mxu0 0
      %1303 = vmatpush1.bf16.msra.mxu0 0
      %1304 = vmatprep.subr.bf16.mxu0 0
      %1305 = vmatpush1.bf16.msra.mxu0 0
      %1306 = vmatprep.subr.bf16.mxu0 0
      %1307 = vmatpush1.bf16.msra.mxu0 0
      %1308 = vmatprep.subr.bf16.mxu0 0
      %1309 = vmatpush1.bf16.msra.mxu0 0
      %1310 = vmatprep.subr.bf16.mxu0 0
      %1311 = vmatpush1.bf16.msra.mxu0 0
      %1312 = vmatprep.subr.bf16.mxu0 0
      %1313 = vmatpush1.bf16.msra.mxu0 0
      %1314 = vmatprep.subr.bf16.mxu0 0
      %1315 = vmatpush1.bf16.msra.mxu0 0
      %1316 = vmatprep.subr.bf16.mxu0 0
      %1317 = vmatpush1.bf16.msra.mxu0 0
      %1318 = vmatprep.subr.bf16.mxu0 0
      %1319 = vmatpush1.bf16.msra.mxu0 0
      %1320 = vmatprep.subr.bf16.mxu0 0
      %1321 = vmatpush1.bf16.msra.mxu0 0
      %1322 = vmatprep.subr.bf16.mxu0 0
      %1323 = vmatpush1.bf16.msra.mxu0 0
      %1324 = vmatprep.subr.bf16.mxu0 0
      %1325 = vmatpush1.bf16.msra.mxu0 0
      %1326 = vmatprep.subr.bf16.mxu0 0
      %1327 = vmatpush1.bf16.msra.mxu0 0
      %1328 = vmatprep.subr.bf16.mxu0 0
      %1329 = vmatpush1.bf16.msra.mxu0 0
      %1330 = vmatprep.subr.bf16.mxu0 0
      %1331 = vmatpush1.bf16.msra.mxu0 0
      %1332 = vmatprep.mubr.bf16.mxu0 0
      %1333 = vmatmul.mubr.bf16.gmra.mrb[0].mxu0 %v1295
      %v1334 = vpop.f32.mrb[0].mxu0
      %v1335 = vadd.f32 0.0, %v1334
      %v1336 = vpop.f32.mrb[0].mxu0
      %v1337 = vpop.f32.mrb[0].mxu0
      %v1338 = vpop.f32.mrb[0].mxu0
      %1339 = vdwg.mxu0
      %v1340 = vadd.f32 %v1143, %v1197
      %v1341 = vadd.f32 %v1144, %v1243
      %v1342 = vadd.f32 %v1145, %v1289
      %v1343 = vadd.f32 %v1146, %v1335
      %1344 = vst.msk [vmem:[#allocation5] sm:$0xff] %vm841, %v1340
      %1345 = vst.msk [vmem:[#allocation5 + $0x8] sm:$0xff] %vm841, %v1341
      %1346 = vst.msk [vmem:[#allocation5 + $0x10] sm:$0xff] %vm841, %v1342
      %1347 = vst.msk [vmem:[#allocation5 + $0x18] sm:$0xff] %vm841, %v1343
      %1348 = vst.msk [vmem:[#allocation3] sm:$0xff] %vm1114, %v1042
      %1349 = vst.msk [vmem:[#allocation3 + $0x8] sm:$0xff] %vm1114, %v1043
      %1350 = vst.msk [vmem:[#allocation3 + $0x10] sm:$0xff] %vm1114, %v1044
      %1351 = vst.msk [vmem:[#allocation3 + $0x18] sm:$0xff] %vm1114, %v1045
      // Predicated region
      $region85: #{transformer_encoder.5} parent=79 // pred_check
        %p1352 = pneg %p591
      $region86: #{transformer_encoder.5} parent=79 // pred_check_branch
        %1354 = sbr.rel (%p1352) target = $region88
      $region87: #{transformer_encoder.5} parent=79 // pred_region
        %v1355 = vld [vmem:[#allocation5] sm:$0xff]
        %v1356 = vld [vmem:[#allocation5 + $0x8] sm:$0xff]
        %v1357 = vld [vmem:[#allocation5 + $0x10] sm:$0xff]
        %v1358 = vld [vmem:[#allocation5 + $0x18] sm:$0xff]
        %v1359 = vld [vmem:[#allocation4] sm:$0xff]
        %v1360 = vld [vmem:[#allocation4 + $0x8] sm:$0xff]
        %v1361 = vld [vmem:[#allocation4 + $0x10] sm:$0xff]
        %v1362 = vld [vmem:[#allocation4 + $0x18] sm:$0xff]
        %v1363 = vrcp.pop %v1359
        %v1364 = vrcp.pop %v1360
        %v1365 = vrcp.pop %v1361
        %v1366 = vrcp.pop %v1362
        %1368 = vset.pattern.permute.xlu0 0
        %1369 = vperm.xlu0 %1368, %v1363
        %v1370 = vpop.permute.xlu0 %1369
        %1373 = vset.pattern.permute.xlu0 0
        %1374 = vperm.xlu0 %1373, %v1364
        %v1375 = vpop.permute.xlu0 %1374
        %1378 = vset.pattern.permute.xlu0 0
        %1379 = vperm.xlu0 %1378, %v1365
        %v1380 = vpop.permute.xlu0 %1379
        %1383 = vset.pattern.permute.xlu0 0
        %1384 = vperm.xlu0 %1383, %v1366
        %v1385 = vpop.permute.xlu0 %1384
        %v1387 = vmul.f32 %v1355, %v1370
        %v1388 = vmul.f32 %v1356, %v1375
        %v1389 = vmul.f32 %v1357, %v1380
        %v1390 = vmul.f32 %v1358, %v1385
        %v1391 = vcombine.low %v1387, %v1389
        %v1392 = vcombine.high %v1387, %v1389
        %v1394 = vunpack.c.l.s4 1983009808
        %v1395 = vunpack.c.0.s8 %v1394
        %v1396 = vlaneseq
        %v1397 = vshrl.u32 %v1396, 7
        %v1398 = vsub.s32 %v1395, %v1397
        %v1399 = vrot.slane %v1391, %v1398
        %v1401 = vunpack.c.l.s4 1983009808
        %v1402 = vunpack.c.0.s8 %v1401
        %v1403 = vlaneseq
        %v1404 = vshrl.u32 %v1403, 7
        %v1405 = vsub.s32 %v1402, %v1404
        %v1406 = vrot.slane %v1392, %v1405
        %v1407 = vcombine.low %v1388, %v1390
        %v1408 = vcombine.high %v1388, %v1390
        %v1410 = vunpack.c.l.s4 1983009808
        %v1411 = vunpack.c.0.s8 %v1410
        %v1412 = vlaneseq
        %v1413 = vshrl.u32 %v1412, 7
        %v1414 = vsub.s32 %v1411, %v1413
        %v1415 = vrot.slane %v1407, %v1414
        %v1417 = vunpack.c.l.s4 1983009808
        %v1418 = vunpack.c.0.s8 %v1417
        %v1419 = vlaneseq
        %v1420 = vshrl.u32 %v1419, 7
        %v1421 = vsub.s32 %v1418, %v1420
        %v1422 = vrot.slane %v1408, %v1421
        %v1423 = vcombine.low %v1399, %v1415
        %v1424 = vcombine.high %v1399, %v1415
        %v1426 = vunpack.c.l.s4 1934713408
        %v1427 = vunpack.c.0.s8 %v1426
        %v1428 = vlaneseq
        %v1429 = vshrl.u32 %v1428, 7
        %v1430 = vsub.s32 %v1427, %v1429
        %v1431 = vrot.slane %v1423, %v1430
        %v1433 = vunpack.c.l.s4 1934713408
        %v1434 = vunpack.c.0.s8 %v1433
        %v1435 = vlaneseq
        %v1436 = vshrl.u32 %v1435, 7
        %v1437 = vsub.s32 %v1434, %v1436
        %v1438 = vrot.slane %v1424, %v1437
        %v1439 = vcombine.low %v1406, %v1422
        %v1440 = vcombine.high %v1406, %v1422
        %v1442 = vunpack.c.l.s4 1934713408
        %v1443 = vunpack.c.0.s8 %v1442
        %v1444 = vlaneseq
        %v1445 = vshrl.u32 %v1444, 7
        %v1446 = vsub.s32 %v1443, %v1445
        %v1447 = vrot.slane %v1439, %v1446
        %v1449 = vunpack.c.l.s4 1934713408
        %v1450 = vunpack.c.0.s8 %v1449
        %v1451 = vlaneseq
        %v1452 = vshrl.u32 %v1451, 7
        %v1453 = vsub.s32 %v1450, %v1452
        %v1454 = vrot.slane %v1440, %v1453
        %v1455 = vcombine.high %v1431, 0.0
        %v1456 = vcombine.high %v1438, 0.0
        %v1457 = vcombine.high %v1447, 0.0
        %v1458 = vcombine.high %v1454, 0.0
        %v1459 = vcombine.low %v1431, %v1438
        %v1461 = vunpack.c.l.s4 1983009808
        %v1462 = vunpack.c.0.s8 %v1461
        %v1463 = vlaneseq
        %v1464 = vshrl.u32 %v1463, 7
        %v1465 = vsub.s32 %v1462, %v1464
        %v1466 = vrot.slane %v1459, %v1465
        %v1467 = vcombine.low %v1455, %v1456
        %v1469 = vunpack.c.l.s4 1983009808
        %v1470 = vunpack.c.0.s8 %v1469
        %v1471 = vlaneseq
        %v1472 = vshrl.u32 %v1471, 7
        %v1473 = vsub.s32 %v1470, %v1472
        %v1474 = vrot.slane %v1467, %v1473
        %v1475 = vcombine.low %v1447, %v1454
        %v1477 = vunpack.c.l.s4 1983009808
        %v1478 = vunpack.c.0.s8 %v1477
        %v1479 = vlaneseq
        %v1480 = vshrl.u32 %v1479, 7
        %v1481 = vsub.s32 %v1478, %v1480
        %v1482 = vrot.slane %v1475, %v1481
        %v1483 = vcombine.low %v1457, %v1458
        %v1485 = vunpack.c.l.s4 1983009808
        %v1486 = vunpack.c.0.s8 %v1485
        %v1487 = vlaneseq
        %v1488 = vshrl.u32 %v1487, 7
        %v1489 = vsub.s32 %v1486, %v1488
        %v1490 = vrot.slane %v1483, %v1489
        %v1491 = vcombine.low %v1466, %v1474
        %v1492 = vcombine.high %v1466, %v1474
        %v1494 = vunpack.c.l.s4 1934713408
        %v1495 = vunpack.c.0.s8 %v1494
        %v1496 = vlaneseq
        %v1497 = vshrl.u32 %v1496, 7
        %v1498 = vsub.s32 %v1495, %v1497
        %v1499 = vrot.slane %v1491, %v1498
        %v1501 = vunpack.c.l.s4 1934713408
        %v1502 = vunpack.c.0.s8 %v1501
        %v1503 = vlaneseq
        %v1504 = vshrl.u32 %v1503, 7
        %v1505 = vsub.s32 %v1502, %v1504
        %v1506 = vrot.slane %v1492, %v1505
        %v1507 = vcombine.low %v1482, %v1490
        %v1508 = vcombine.high %v1482, %v1490
        %v1510 = vunpack.c.l.s4 1934713408
        %v1511 = vunpack.c.0.s8 %v1510
        %v1512 = vlaneseq
        %v1513 = vshrl.u32 %v1512, 7
        %v1514 = vsub.s32 %v1511, %v1513
        %v1515 = vrot.slane %v1507, %v1514
        %v1517 = vunpack.c.l.s4 1934713408
        %v1518 = vunpack.c.0.s8 %v1517
        %v1519 = vlaneseq
        %v1520 = vshrl.u32 %v1519, 7
        %v1521 = vsub.s32 %v1518, %v1520
        %v1522 = vrot.slane %v1508, %v1521
        %v1523 = vcombine.low %v1499, %v1515
        %v1524 = vcombine.high %v1499, %v1515
        %v1525 = vcombine.low %v1506, %v1522
        %v1526 = vcombine.high %v1506, %v1522
        %1528 = vrot.lane.b32.xlu0 %v1524, 8
        %v1529 = vpop.permute.xlu0 %1528
        %1532 = vrot.lane.b32.xlu0 %v1525, 16
        %v1533 = vpop.permute.xlu0 %1532
        %1536 = vrot.lane.b32.xlu0 %v1526, 24
        %v1537 = vpop.permute.xlu0 %1536
        %v1539 = vsel %vm841, %v1523, %v1529
        %vm1540 = vcmask 130048
        %v1541 = vsel %vm1540, %v1539, %v1533
        %vm1542 = vcmask 195584
        %v1543 = vsel %vm1542, %v1541, %v1537
        %v1544 = vpack.c.bf16 %v1543, %v1543
        %v1545 = vld [vmem:[%s5] sm:$0xf]
        %v1546 = vld [vmem:[%s5 + $0x4] sm:$0xf]
        %v1547 = vld [vmem:[%s5 + $0x8] sm:$0xf]
        %v1548 = vld [vmem:[%s5 + $0xc] sm:$0xf]
        %v1549 = vld [vmem:[%s6] sm:$0x1]
        %v1551 = vlaneseq
        %v1552 = vshrl.u32 %v1551, 7
        %v1553 = vsub.s32 0, %v1552
        %v1554 = vrot.slane %v1549, %v1553
        %v1560 = vunpack.c.l.b16 %v1545
        %v1561 = vunpack.c.l.b16 %v1546
        %v1562 = vunpack.c.l.b16 %v1547
        %v1563 = vunpack.c.l.b16 %v1548
        %v1564 = vpack.c.b16 %v1561, %v1560
        %v1565 = vpack.c.b16 %v1563, %v1562
        %vm1568 = vcmask 261120
        %v1570 = vsel %vm1568, %v1544, 0
        %1572 = vmatprep.subr.bf16.mxu0 0
        %1573 = vmatpush1.bf16.msra.mxu0 %v1564
        %1574 = vmatprep.subr.bf16.mxu0 0
        %1575 = vmatpush1.bf16.msra.mxu0 %v1565
        %1576 = vmatprep.subr.bf16.mxu0 0
        %1577 = vmatpush1.bf16.msra.mxu0 0
        %1578 = vmatprep.subr.bf16.mxu0 0
        %1579 = vmatpush1.bf16.msra.mxu0 0
        %1580 = vmatprep.subr.bf16.mxu0 0
        %1581 = vmatpush1.bf16.msra.mxu0 0
        %1582 = vmatprep.subr.bf16.mxu0 0
        %1583 = vmatpush1.bf16.msra.mxu0 0
        %1584 = vmatprep.subr.bf16.mxu0 0
        %1585 = vmatpush1.bf16.msra.mxu0 0
        %1586 = vmatprep.subr.bf16.mxu0 0
        %1587 = vmatpush1.bf16.msra.mxu0 0
        %1588 = vmatprep.subr.bf16.mxu0 0
        %1589 = vmatpush1.bf16.msra.mxu0 0
        %1590 = vmatprep.subr.bf16.mxu0 0
        %1591 = vmatpush1.bf16.msra.mxu0 0
        %1592 = vmatprep.subr.bf16.mxu0 0
        %1593 = vmatpush1.bf16.msra.mxu0 0
        %1594 = vmatprep.subr.bf16.mxu0 0
        %1595 = vmatpush1.bf16.msra.mxu0 0
        %1596 = vmatprep.subr.bf16.mxu0 0
        %1597 = vmatpush1.bf16.msra.mxu0 0
        %1598 = vmatprep.subr.bf16.mxu0 0
        %1599 = vmatpush1.bf16.msra.mxu0 0
        %1600 = vmatprep.subr.bf16.mxu0 0
        %1601 = vmatpush1.bf16.msra.mxu0 0
        %1602 = vmatprep.subr.bf16.mxu0 0
        %1603 = vmatpush1.bf16.msra.mxu0 0
        %1604 = vmatprep.mubr.bf16.mxu0 0
        %1605 = vmatmul.mubr.bf16.gmra.mrb[0].mxu0 %v1570
        %v1606 = vpop.f32.mrb[0].mxu0
        %v1607 = vadd.f32 %v1554, %v1606
        %v1608 = vpop.f32.mrb[0].mxu0
        %v1609 = vpop.f32.mrb[0].mxu0
        %v1610 = vpop.f32.mrb[0].mxu0
        %1611 = vdwg.mxu0
        %v1612 = vld [vmem:[%s566] sm:$0xff]
        %v1613 = vadd.f32 %v1612, %v1607
        %v1614 = vld [vmem:[%s11] sm:$0x1]
        %v1615 = vld [vmem:[%s12] sm:$0x1]
        %v1616 = vsel %vm1568, %v1613, 0.0
        %1617 = vadd.xlane.f32.xlu0 %v1616
        %v1618 = vpop.xlane.xlu0 %1617
        %v1619 = vrcp.pop 32.0
        %v1620 = vmul.f32 %v1618, %v1619
        %v1621 = vsub.f32 %v1613, %v1620
        %v1622 = vmul.f32 %v1621, %v1621
        %v1623 = vsel %vm1568, %v1622, 0.0
        %1624 = vadd.xlane.f32.xlu0 %v1623
        %v1625 = vpop.xlane.xlu0 %1624
        %v1626 = vmul.f32 %v1625, %v1619
        %v1627 = vadd.f32 %v1626, 1e-05
        %v1628 = vrsqrt.pop %v1627
        %v1629 = vmul.f32 %v1621, %v1628
        %v1631 = vlaneseq
        %v1632 = vshrl.u32 %v1631, 7
        %v1633 = vsub.s32 0, %v1632
        %v1634 = vrot.slane %v1614, %v1633
        %v1636 = vmul.f32 %v1629, %v1634
        %v1638 = vlaneseq
        %v1639 = vshrl.u32 %v1638, 7
        %v1640 = vsub.s32 0, %v1639
        %v1641 = vrot.slane %v1615, %v1640
        %v1643 = vadd.f32 %v1636, %v1641
        %v1644 = vpack.c.bf16 %v1643, %v1643
        %v1645 = vld [vmem:[%s7] sm:$0xf]
        %v1646 = vld [vmem:[%s7 + $0x4] sm:$0xf]
        %v1647 = vld [vmem:[%s7 + $0x8] sm:$0xf]
        %v1648 = vld [vmem:[%s7 + $0xc] sm:$0xf]
        %v1649 = vld [vmem:[%s8] sm:$0x1]
        %v1651 = vlaneseq
        %v1652 = vshrl.u32 %v1651, 7
        %v1653 = vsub.s32 0, %v1652
        %v1654 = vrot.slane %v1649, %v1653
        %v1660 = vunpack.c.l.b16 %v1645
        %v1661 = vunpack.c.l.b16 %v1646
        %v1662 = vunpack.c.l.b16 %v1647
        %v1663 = vunpack.c.l.b16 %v1648
        %v1664 = vpack.c.b16 %v1661, %v1660
        %v1665 = vpack.c.b16 %v1663, %v1662
        %v1669 = vsel %vm1568, %v1644, 0
        %1671 = vmatprep.subr.bf16.mxu0 0
        %1672 = vmatpush1.bf16.msra.mxu0 %v1664
        %1673 = vmatprep.subr.bf16.mxu0 0
        %1674 = vmatpush1.bf16.msra.mxu0 %v1665
        %1675 = vmatprep.subr.bf16.mxu0 0
        %1676 = vmatpush1.bf16.msra.mxu0 0
        %1677 = vmatprep.subr.bf16.mxu0 0
        %1678 = vmatpush1.bf16.msra.mxu0 0
        %1679 = vmatprep.subr.bf16.mxu0 0
        %1680 = vmatpush1.bf16.msra.mxu0 0
        %1681 = vmatprep.subr.bf16.mxu0 0
        %1682 = vmatpush1.bf16.msra.mxu0 0
        %1683 = vmatprep.subr.bf16.mxu0 0
        %1684 = vmatpush1.bf16.msra.mxu0 0
        %1685 = vmatprep.subr.bf16.mxu0 0
        %1686 = vmatpush1.bf16.msra.mxu0 0
        %1687 = vmatprep.subr.bf16.mxu0 0
        %1688 = vmatpush1.bf16.msra.mxu0 0
        %1689 = vmatprep.subr.bf16.mxu0 0
        %1690 = vmatpush1.bf16.msra.mxu0 0
        %1691 = vmatprep.subr.bf16.mxu0 0
        %1692 = vmatpush1.bf16.msra.mxu0 0
        %1693 = vmatprep.subr.bf16.mxu0 0
        %1694 = vmatpush1.bf16.msra.mxu0 0
        %1695 = vmatprep.subr.bf16.mxu0 0
        %1696 = vmatpush1.bf16.msra.mxu0 0
        %1697 = vmatprep.subr.bf16.mxu0 0
        %1698 = vmatpush1.bf16.msra.mxu0 0
        %1699 = vmatprep.subr.bf16.mxu0 0
        %1700 = vmatpush1.bf16.msra.mxu0 0
        %1701 = vmatprep.subr.bf16.mxu0 0
        %1702 = vmatpush1.bf16.msra.mxu0 0
        %1703 = vmatprep.mubr.bf16.mxu0 0
        %1704 = vmatmul.mubr.bf16.gmra.mrb[0].mxu0 %v1669
        %v1705 = vpop.f32.mrb[0].mxu0
        %v1706 = vadd.f32 %v1654, %v1705
        %v1707 = vpop.f32.mrb[0].mxu0
        %v1708 = vpop.f32.mrb[0].mxu0
        %v1709 = vpop.f32.mrb[0].mxu0
        %1710 = vdwg.mxu0
        %v1711 = vmax.f32 %v1706, 0.0
        %v1712 = vpack.c.bf16 %v1711, %v1711
        %v1713 = vld [vmem:[%s9] sm:$0xf]
        %v1714 = vld [vmem:[%s9 + $0x4] sm:$0xf]
        %v1715 = vld [vmem:[%s9 + $0x8] sm:$0xf]
        %v1716 = vld [vmem:[%s9 + $0xc] sm:$0xf]
        %v1717 = vld [vmem:[%s9 + $0x10] sm:$0xf]
        %v1718 = vld [vmem:[%s9 + $0x14] sm:$0xf]
        %v1719 = vld [vmem:[%s9 + $0x18] sm:$0xf]
        %v1720 = vld [vmem:[%s9 + $0x1c] sm:$0xf]
        %v1721 = vld [vmem:[%s10] sm:$0x1]
        %v1723 = vlaneseq
        %v1724 = vshrl.u32 %v1723, 7
        %v1725 = vsub.s32 0, %v1724
        %v1726 = vrot.slane %v1721, %v1725
        %v1736 = vunpack.c.l.b16 %v1713
        %v1737 = vunpack.c.l.b16 %v1714
        %v1738 = vunpack.c.l.b16 %v1715
        %v1739 = vunpack.c.l.b16 %v1716
        %v1740 = vunpack.c.l.b16 %v1717
        %v1741 = vunpack.c.l.b16 %v1718
        %v1742 = vunpack.c.l.b16 %v1719
        %v1743 = vunpack.c.l.b16 %v1720
        %v1744 = vpack.c.b16 %v1737, %v1736
        %v1745 = vpack.c.b16 %v1739, %v1738
        %v1746 = vpack.c.b16 %v1741, %v1740
        %v1747 = vpack.c.b16 %v1743, %v1742
        %vm1752 = vcmask 523264
        %v1754 = vsel %vm1752, %v1712, 0
        %1756 = vmatprep.subr.bf16.mxu0 0
        %1757 = vmatpush1.bf16.msra.mxu0 %v1744
        %1758 = vmatprep.subr.bf16.mxu0 0
        %1759 = vmatpush1.bf16.msra.mxu0 %v1745
        %1760 = vmatprep.subr.bf16.mxu0 0
        %1761 = vmatpush1.bf16.msra.mxu0 %v1746
        %1762 = vmatprep.subr.bf16.mxu0 0
        %1763 = vmatpush1.bf16.msra.mxu0 %v1747
        %1764 = vmatprep.subr.bf16.mxu0 0
        %1765 = vmatpush1.bf16.msra.mxu0 0
        %1766 = vmatprep.subr.bf16.mxu0 0
        %1767 = vmatpush1.bf16.msra.mxu0 0
        %1768 = vmatprep.subr.bf16.mxu0 0
        %1769 = vmatpush1.bf16.msra.mxu0 0
        %1770 = vmatprep.subr.bf16.mxu0 0
        %1771 = vmatpush1.bf16.msra.mxu0 0
        %1772 = vmatprep.subr.bf16.mxu0 0
        %1773 = vmatpush1.bf16.msra.mxu0 0
        %1774 = vmatprep.subr.bf16.mxu0 0
        %1775 = vmatpush1.bf16.msra.mxu0 0
        %1776 = vmatprep.subr.bf16.mxu0 0
        %1777 = vmatpush1.bf16.msra.mxu0 0
        %1778 = vmatprep.subr.bf16.mxu0 0
        %1779 = vmatpush1.bf16.msra.mxu0 0
        %1780 = vmatprep.subr.bf16.mxu0 0
        %1781 = vmatpush1.bf16.msra.mxu0 0
        %1782 = vmatprep.subr.bf16.mxu0 0
        %1783 = vmatpush1.bf16.msra.mxu0 0
        %1784 = vmatprep.subr.bf16.mxu0 0
        %1785 = vmatpush1.bf16.msra.mxu0 0
        %1786 = vmatprep.subr.bf16.mxu0 0
        %1787 = vmatpush1.bf16.msra.mxu0 0
        %1788 = vmatprep.mubr.bf16.mxu0 0
        %1789 = vmatmul.mubr.bf16.gmra.mrb[0].mxu0 %v1754
        %v1790 = vpop.f32.mrb[0].mxu0
        %v1791 = vadd.f32 %v1726, %v1790
        %v1792 = vpop.f32.mrb[0].mxu0
        %v1793 = vpop.f32.mrb[0].mxu0
        %v1794 = vpop.f32.mrb[0].mxu0
        %1795 = vdwg.mxu0
        %v1796 = vadd.f32 %v1643, %v1791
        %v1797 = vld [vmem:[%s13] sm:$0x1]
        %v1798 = vld [vmem:[%s14] sm:$0x1]
        %v1799 = vsel %vm1568, %v1796, 0.0
        %1800 = vadd.xlane.f32.xlu0 %v1799
        %v1801 = vpop.xlane.xlu0 %1800
        %v1802 = vmul.f32 %v1801, %v1619
        %v1803 = vsub.f32 %v1796, %v1802
        %v1804 = vmul.f32 %v1803, %v1803
        %v1805 = vsel %vm1568, %v1804, 0.0
        %1806 = vadd.xlane.f32.xlu0 %v1805
        %v1807 = vpop.xlane.xlu0 %1806
        %v1808 = vmul.f32 %v1807, %v1619
        %v1809 = vadd.f32 %v1808, 1e-05
        %v1810 = vrsqrt.pop %v1809
        %v1811 = vmul.f32 %v1803, %v1810
        %v1813 = vlaneseq
        %v1814 = vshrl.u32 %v1813, 7
        %v1815 = vsub.s32 0, %v1814
        %v1816 = vrot.slane %v1797, %v1815
        %v1818 = vmul.f32 %v1811, %v1816
        %v1820 = vlaneseq
        %v1821 = vshrl.u32 %v1820, 7
        %v1822 = vsub.s32 0, %v1821
        %v1823 = vrot.slane %v1798, %v1822
        %v1825 = vadd.f32 %v1818, %v1823
        %1826 = vst.msk [vmem:[%s589] sm:$0xff] %vm1568, %v1825
      $region88: #{transformer_encoder.5} parent=79 // pred_fallthru
        _
      %p1827 = scmp.lt.s32.totalorder %s31, 1
      %s1828 = scalar_select %p1827, %s31, 1
      %p1829 = scmp.lt.s32.totalorder %s32, 0
      %s1830 = scalar_select %p1829, %s32, 0
      %s1831 = sadd.s32 %s1830, %s1828
      %s1832 = smul.addr %s1831, 8
      %s1833 = scalar_lea.vmem %s15, %s1832
      // Predicated region
      $region89: #{transformer_encoder.5} parent=79 // pred_check
        %p1834 = pneg %p401
      $region90: #{transformer_encoder.5} parent=79 // pred_check_branch
        %1836 = sbr.rel (%p1834) target = $region92
      $region91: #{transformer_encoder.5} parent=79 // pred_region
        _
      $region92: #{transformer_encoder.5} parent=79 // pred_fallthru
        _
    $region80: #{transformer_encoder.5} parent=5 // pred_fallthru
      _
    %p1837 = scmp.le.s32.totalorder 2, %s21
    // Predicated region
    $region93: #{transformer_encoder.5} parent=5 // pred_check
      %p1838 = pneg %p1837
    $region94: #{transformer_encoder.5} parent=5 // pred_check_branch
      %1840 = sbr.rel (%p1838) target = $region96
    $region95: #{transformer_encoder.5} parent=5 // pred_region
      %s1841 = ssub.s32 %s21, 2
      // Predicated region
      $region97: #{transformer_encoder.5} parent=95 // pred_check
        %p1842 = pneg %p407
      $region98: #{transformer_encoder.5} parent=95 // pred_check_branch
        %1844 = sbr.rel (%p1842) target = $region100
      $region99: #{transformer_encoder.5} parent=95 // pred_region
        %p1845 = scmp.lt.s32.totalorder %s34, 1
        %s1846 = scalar_select %p1845, %s34, 1
        %p1847 = scmp.lt.s32.totalorder %s35, 0
        %s1848 = scalar_select %p1847, %s35, 0
        %s1849 = sadd.s32 %s1848, %s1846
        %s1850 = smul.addr %s1849, 8
        %s1851 = scalar_lea.vmem %s15, %s1850
      $region100: #{transformer_encoder.5} parent=95 // pred_fallthru
        _
    $region96: #{transformer_encoder.5} parent=5 // pred_fallthru
      _
  $region6: #{transformer_encoder.5} parent=0 // loop_footer
    %s25 = sadd.s32 1, %s21
  $region7: #{transformer_encoder.5} parent=0 // loop_footer_branch
    %20 = sbr.rel target = $region3
  $region8: #{transformer_encoder.5} parent=0 // loop_exit
    _

// kernel: transformer_encoder.7
$region0: #{transformer_encoder.7}
  #allocation0 [shape = 'u32[]', space=smem, size = 0x4, offset = 0x4, fixed_abs, tag = 'smem constant byte address 0x4 - core index']
  #allocation1 [shape = 'u32[144,128]{1,0:T(1,128)}', space=vmem, size = 0x12000, scoped, tag = 'internal scratch']
  #allocation2 [shape = 'bf16[4,8,8]{2,1,0:T(8,128)(2,1)}', space=vmem, size = 0x2000, scoped, tag = 'scratch operand']
  #allocation3 [shape = 'f32[4,8,1]{2,1,0:T(8,128)}', space=vmem, size = 0x4000, scoped, tag = 'scratch operand']
  #allocation4 [shape = 'f32[4,8,1]{2,1,0:T(8,128)}', space=vmem, size = 0x4000, scoped, tag = 'scratch operand']
  #allocation5 [shape = 'f32[4,8,8]{2,1,0:T(8,128)}', space=vmem, size = 0x4000, scoped, tag = 'scratch operand']
  %s0 = inlined_call_operand.vmem [shape: f32[2,8,32], index: 0, kind: input, shape index: {}]
  %s1 = inlined_call_operand.vmem [shape: bf16[2,4,8,8], index: 1, kind: input, shape index: {}]
  %s2 = inlined_call_operand.vmem [shape: bf16[2,4,8,8], index: 2, kind: input, shape index: {}]
  %s3 = inlined_call_operand.vmem [shape: bf16[32,32], index: 3, kind: input, shape index: {}]
  %s4 = inlined_call_operand.vmem [shape: f32[1,32], index: 4, kind: input, shape index: {}]
  %s5 = inlined_call_operand.vmem [shape: bf16[32,32], index: 5, kind: input, shape index: {}]
  %s6 = inlined_call_operand.vmem [shape: f32[1,32], index: 6, kind: input, shape index: {}]
  %s7 = inlined_call_operand.vmem [shape: bf16[32,64], index: 7, kind: input, shape index: {}]
  %s8 = inlined_call_operand.vmem [shape: f32[1,64], index: 8, kind: input, shape index: {}]
  %s9 = inlined_call_operand.vmem [shape: bf16[64,32], index: 9, kind: input, shape index: {}]
  %s10 = inlined_call_operand.vmem [shape: f32[1,32], index: 10, kind: input, shape index: {}]
  %s11 = inlined_call_operand.vmem [shape: f32[1,32], index: 11, kind: input, shape index: {}]
  %s12 = inlined_call_operand.vmem [shape: f32[1,32], index: 12, kind: input, shape index: {}]
  %s13 = inlined_call_operand.vmem [shape: f32[1,32], index: 13, kind: input, shape index: {}]
  %s14 = inlined_call_operand.vmem [shape: f32[1,32], index: 14, kind: input, shape index: {}]
  %s15 = inlined_call_operand.hbm [shape: f32[2,8,32], index: 15, kind: output, shape index: {}]
  %s16 = sld [smem:[#allocation0]]
  $region101: #{transformer_encoder.7} parent=0
    _
  %s18 = ssub.s32 1, %s16
  %s19 = scalar_select 0, %s18, %s16
  $region1: #{transformer_encoder.7} parent=0
    #allocation6 [shape = 'u8[8192]{0}', space=vmem, size = 0x2000, scoped, tag = 'output window, operand 0']
    #allocation7 [shape = 's32[2]{0}', space=sflag, size = 0x8, scoped, tag = 'scoped memory for transformer_encoder.7']
    %20 = vsyncpa [#allocation7], 0
    %s21 = scalar_lea.sflag [#allocation7], 1
    %22 = vsyncpa %s21, 0
    loop: start=0, step=1, limit=4
    $region2: #{transformer_encoder.7} parent=1 // loop_pre_header
      _
    $region3: #{transformer_encoder.7} parent=1 // loop_header
      %s24 = sphi 0, %s28
      %p25 = scmp.ge.s32.totalorder %s24, 4
      %s31 = sphi 0, %s50
      %s32 = sphi 0, %s46
      %s33 = sphi 0, %s42
      %s34 = sphi 0, %s31
      %s35 = sphi 0, %s32
      %s36 = sphi 0, %s33
      %s37 = sphi 0, %s34
      %s38 = sphi 0, %s35
      %s39 = sphi 0, %s36
      %s55 = sphi 0, %s57
      %s58 = sphi 0, %s55
      %s59 = sphi 0, %s58
      %s75 = sphi 0, %s59
      %s83 = sphi 0, %s85
      %s86 = sphi 0, %s83
      %s87 = sphi 0, %s86
      %s103 = sphi 0, %s87
      %s111 = sphi 0, %s113
      %s114 = sphi 0, %s111
      %s115 = sphi 0, %s114
      %s131 = sphi 0, %s115
      %s135 = sphi 0, %s135
      %s137 = sphi 0, %s135
      %s138 = sphi 0, %s137
      %s152 = sphi 0, %s138
      %s156 = sphi 0, %s156
      %s158 = sphi 0, %s156
      %s159 = sphi 0, %s158
      %s173 = sphi 0, %s159
      %s177 = sphi 0, %s177
      %s179 = sphi 0, %s177
      %s180 = sphi 0, %s179
      %s194 = sphi 0, %s180
      %s198 = sphi 0, %s198
      %s200 = sphi 0, %s198
      %s201 = sphi 0, %s200
      %s215 = sphi 0, %s201
      %s219 = sphi 0, %s219
      %s221 = sphi 0, %s219
      %s222 = sphi 0, %s221
      %s236 = sphi 0, %s222
      %s240 = sphi 0, %s240
      %s242 = sphi 0, %s240
      %s243 = sphi 0, %s242
      %s257 = sphi 0, %s243
      %s261 = sphi 0, %s261
      %s263 = sphi 0, %s261
      %s264 = sphi 0, %s263
      %s278 = sphi 0, %s264
      %s282 = sphi 0, %s282
      %s284 = sphi 0, %s282
      %s285 = sphi 0, %s284
      %s299 = sphi 0, %s285
      %s303 = sphi 0, %s303
      %s305 = sphi 0, %s303
      %s306 = sphi 0, %s305
      %s320 = sphi 0, %s306
      %s324 = sphi 0, %s324
      %s326 = sphi 0, %s324
      %s327 = sphi 0, %s326
      %s341 = sphi 0, %s327
      %s345 = sphi 0, %s345
      %s347 = sphi 0, %s345
      %s348 = sphi 0, %s347
      %s362 = sphi 0, %s348
      %s366 = sphi 0, %s366
      %s368 = sphi 0, %s366
      %s369 = sphi 0, %s368
      %s383 = sphi 0, %s369
      %s391 = sphi 0, %s393
      %s394 = sphi 0, %s391
      %s395 = sphi 0, %s394
      %s411 = sphi 0, %s395
    $region4: #{transformer_encoder.7} parent=1 // loop_header_branch
      %27 = sbr.rel (%p25) target = $region8
    $region5: #{transformer_encoder.7} parent=1 // loop_body
      %s29 = ssub.s32 %s24, 1
      %s30 = ssub.s32 %s24, 2
      %s40 = sadd.s32 1, %s33
      %p41 = scmp.ge.s32.totalorder %s40, 1
      %s42 = scalar_select %p41, 0, %s40
      %s43 = sadd.s32 1, %s32
      %s44 = scalar_select %p41, %s43, %s32
      %p45 = scmp.ge.s32.totalorder %s44, 1
      %s46 = scalar_select %p45, 0, %s44
      %s47 = sadd.s32 1, %s31
      %s48 = scalar_select %p45, %s47, %s31
      %p49 = scmp.ge.s32.totalorder %s48, 2
      %s50 = scalar_select %p49, 0, %s48
      %s51 = ssub.s32 %s31, %s50
      %s52 = ssub.s32 %s32, %s46
      %s53 = sor.u32 %s51, %s52
      %p54 = scmp.eq.s32.totalorder %s53, 0
      %s56 = sadd.s32 %s55, 1
      %s57 = scalar_select %p54, %s55, %s56
      %p60 = pneg %p54
      %p61 = scmp.eq.s32.totalorder %s24, 1
      %p62 = por %p60, %p61
      %p63 = scmp.ne.s32.totalorder %s55, %s58
      %p64 = scmp.eq.s32.totalorder %s24, 0
      %p65 = por %p63, %p64
      %p66 = scmp.ne.s32.totalorder %s55, %s58
      %p67 = scmp.eq.s32.totalorder %s29, 1
      %p68 = por %p66, %p67
      %p69 = scmp.ne.s32.totalorder %s58, %s59
      %p70 = scmp.eq.s32.totalorder %s29, 0
      %p71 = por %p69, %p70
      %p72 = scmp.ne.s32.totalorder %s58, %s59
      %p73 = scmp.eq.s32.totalorder %s30, 1
      %p74 = por %p72, %p73
      %p76 = scmp.ne.s32.totalorder %s59, %s75
      %p77 = scmp.eq.s32.totalorder %s30, 0
      %p78 = por %p76, %p77
      %s79 = ssub.s32 %s31, %s50
      %s80 = ssub.s32 %s33, %s42
      %s81 = sor.u32 %s79, %s80
      %p82 = scmp.eq.s32.totalorder %s81, 0
      %s84 = sadd.s32 %s83, 1
      %s85 = scalar_select %p82, %s83, %s84
      %p88 = pneg %p82
      %p89 = scmp.eq.s32.totalorder %s24, 1
      %p90 = por %p88, %p89
      %p91 = scmp.ne.s32.totalorder %s83, %s86
      %p92 = scmp.eq.s32.totalorder %s24, 0
      %p93 = por %p91, %p92
      %p94 = scmp.ne.s32.totalorder %s83, %s86
      %p95 = scmp.eq.s32.totalorder %s29, 1
      %p96 = por %p94, %p95
      %p97 = scmp.ne.s32.totalorder %s86, %s87
      %p98 = scmp.eq.s32.totalorder %s29, 0
      %p99 = por %p97, %p98
      %p100 = scmp.ne.s32.totalorder %s86, %s87
      %p101 = scmp.eq.s32.totalorder %s30, 1
      %p102 = por %p100, %p101
      %p104 = scmp.ne.s32.totalorder %s87, %s103
      %p105 = scmp.eq.s32.totalorder %s30, 0
      %p106 = por %p104, %p105
      %s107 = ssub.s32 %s31, %s50
      %s108 = ssub.s32 %s33, %s42
      %s109 = sor.u32 %s107, %s108
      %p110 = scmp.eq.s32.totalorder %s109, 0
      %s112 = sadd.s32 %s111, 1
      %s113 = scalar_select %p110, %s111, %s112
      %p116 = pneg %p110
      %p117 = scmp.eq.s32.totalorder %s24, 1
      %p118 = por %p116, %p117
      %p119 = scmp.ne.s32.totalorder %s111, %s114
      %p120 = scmp.eq.s32.totalorder %s24, 0
      %p121 = por %p119, %p120
      %p122 = scmp.ne.s32.totalorder %s111, %s114
      %p123 = scmp.eq.s32.totalorder %s29, 1
      %p124 = por %p122, %p123
      %p125 = scmp.ne.s32.totalorder %s114, %s115
      %p126 = scmp.eq.s32.totalorder %s29, 0
      %p127 = por %p125, %p126
      %p128 = scmp.ne.s32.totalorder %s114, %s115
      %p129 = scmp.eq.s32.totalorder %s30, 1
      %p130 = por %p128, %p129
      %p132 = scmp.ne.s32.totalorder %s115, %s131
      %p133 = scmp.eq.s32.totalorder %s30, 0
      %p134 = por %p132, %p133
      %s136 = sadd.s32 %s135, 1
      %p139 = scmp.eq.s32.totalorder %s24, 1
      %p140 = scmp.ne.s32.totalorder %s135, %s137
      %p141 = scmp.eq.s32.totalorder %s24, 0
      %p142 = por %p140, %p141
      %p143 = scmp.ne.s32.totalorder %s135, %s137
      %p144 = scmp.eq.s32.totalorder %s29, 1
      %p145 = por %p143, %p144
      %p146 = scmp.ne.s32.totalorder %s137, %s138
      %p147 = scmp.eq.s32.totalorder %s29, 0
      %p148 = por %p146, %p147
      %p149 = scmp.ne.s32.totalorder %s137, %s138
      %p150 = scmp.eq.s32.totalorder %s30, 1
      %p151 = por %p149, %p150
      %p153 = scmp.ne.s32.totalorder %s138, %s152
      %p154 = scmp.eq.s32.totalorder %s30, 0
      %p155 = por %p153, %p154
      %s157 = sadd.s32 %s156, 1
      %p160 = scmp.eq.s32.totalorder %s24, 1
      %p161 = scmp.ne.s32.totalorder %s156, %s158
      %p162 = scmp.eq.s32.totalorder %s24, 0
      %p163 = por %p161, %p162
      %p164 = scmp.ne.s32.totalorder %s156, %s158
      %p165 = scmp.eq.s32.totalorder %s29, 1
      %p166 = por %p164, %p165
      %p167 = scmp.ne.s32.totalorder %s158, %s159
      %p168 = scmp.eq.s32.totalorder %s29, 0
      %p169 = por %p167, %p168
      %p170 = scmp.ne.s32.totalorder %s158, %s159
      %p171 = scmp.eq.s32.totalorder %s30, 1
      %p172 = por %p170, %p171
      %p174 = scmp.ne.s32.totalorder %s159, %s173
      %p175 = scmp.eq.s32.totalorder %s30, 0
      %p176 = por %p174, %p175
      %s178 = sadd.s32 %s177, 1
      %p181 = scmp.eq.s32.totalorder %s24, 1
      %p182 = scmp.ne.s32.totalorder %s177, %s179
      %p183 = scmp.eq.s32.totalorder %s24, 0
      %p184 = por %p182, %p183
      %p185 = scmp.ne.s32.totalorder %s177, %s179
      %p186 = scmp.eq.s32.totalorder %s29, 1
      %p187 = por %p185, %p186
      %p188 = scmp.ne.s32.totalorder %s179, %s180
      %p189 = scmp.eq.s32.totalorder %s29, 0
      %p190 = por %p188, %p189
      %p191 = scmp.ne.s32.totalorder %s179, %s180
      %p192 = scmp.eq.s32.totalorder %s30, 1
      %p193 = por %p191, %p192
      %p195 = scmp.ne.s32.totalorder %s180, %s194
      %p196 = scmp.eq.s32.totalorder %s30, 0
      %p197 = por %p195, %p196
      %s199 = sadd.s32 %s198, 1
      %p202 = scmp.eq.s32.totalorder %s24, 1
      %p203 = scmp.ne.s32.totalorder %s198, %s200
      %p204 = scmp.eq.s32.totalorder %s24, 0
      %p205 = por %p203, %p204
      %p206 = scmp.ne.s32.totalorder %s198, %s200
      %p207 = scmp.eq.s32.totalorder %s29, 1
      %p208 = por %p206, %p207
      %p209 = scmp.ne.s32.totalorder %s200, %s201
      %p210 = scmp.eq.s32.totalorder %s29, 0
      %p211 = por %p209, %p210
      %p212 = scmp.ne.s32.totalorder %s200, %s201
      %p213 = scmp.eq.s32.totalorder %s30, 1
      %p214 = por %p212, %p213
      %p216 = scmp.ne.s32.totalorder %s201, %s215
      %p217 = scmp.eq.s32.totalorder %s30, 0
      %p218 = por %p216, %p217
      %s220 = sadd.s32 %s219, 1
      %p223 = scmp.eq.s32.totalorder %s24, 1
      %p224 = scmp.ne.s32.totalorder %s219, %s221
      %p225 = scmp.eq.s32.totalorder %s24, 0
      %p226 = por %p224, %p225
      %p227 = scmp.ne.s32.totalorder %s219, %s221
      %p228 = scmp.eq.s32.totalorder %s29, 1
      %p229 = por %p227, %p228
      %p230 = scmp.ne.s32.totalorder %s221, %s222
      %p231 = scmp.eq.s32.totalorder %s29, 0
      %p232 = por %p230, %p231
      %p233 = scmp.ne.s32.totalorder %s221, %s222
      %p234 = scmp.eq.s32.totalorder %s30, 1
      %p235 = por %p233, %p234
      %p237 = scmp.ne.s32.totalorder %s222, %s236
      %p238 = scmp.eq.s32.totalorder %s30, 0
      %p239 = por %p237, %p238
      %s241 = sadd.s32 %s240, 1
      %p244 = scmp.eq.s32.totalorder %s24, 1
      %p245 = scmp.ne.s32.totalorder %s240, %s242
      %p246 = scmp.eq.s32.totalorder %s24, 0
      %p247 = por %p245, %p246
      %p248 = scmp.ne.s32.totalorder %s240, %s242
      %p249 = scmp.eq.s32.totalorder %s29, 1
      %p250 = por %p248, %p249
      %p251 = scmp.ne.s32.totalorder %s242, %s243
      %p252 = scmp.eq.s32.totalorder %s29, 0
      %p253 = por %p251, %p252
      %p254 = scmp.ne.s32.totalorder %s242, %s243
      %p255 = scmp.eq.s32.totalorder %s30, 1
      %p256 = por %p254, %p255
      %p258 = scmp.ne.s32.totalorder %s243, %s257
      %p259 = scmp.eq.s32.totalorder %s30, 0
      %p260 = por %p258, %p259
      %s262 = sadd.s32 %s261, 1
      %p265 = scmp.eq.s32.totalorder %s24, 1
      %p266 = scmp.ne.s32.totalorder %s261, %s263
      %p267 = scmp.eq.s32.totalorder %s24, 0
      %p268 = por %p266, %p267
      %p269 = scmp.ne.s32.totalorder %s261, %s263
      %p270 = scmp.eq.s32.totalorder %s29, 1
      %p271 = por %p269, %p270
      %p272 = scmp.ne.s32.totalorder %s263, %s264
      %p273 = scmp.eq.s32.totalorder %s29, 0
      %p274 = por %p272, %p273
      %p275 = scmp.ne.s32.totalorder %s263, %s264
      %p276 = scmp.eq.s32.totalorder %s30, 1
      %p277 = por %p275, %p276
      %p279 = scmp.ne.s32.totalorder %s264, %s278
      %p280 = scmp.eq.s32.totalorder %s30, 0
      %p281 = por %p279, %p280
      %s283 = sadd.s32 %s282, 1
      %p286 = scmp.eq.s32.totalorder %s24, 1
      %p287 = scmp.ne.s32.totalorder %s282, %s284
      %p288 = scmp.eq.s32.totalorder %s24, 0
      %p289 = por %p287, %p288
      %p290 = scmp.ne.s32.totalorder %s282, %s284
      %p291 = scmp.eq.s32.totalorder %s29, 1
      %p292 = por %p290, %p291
      %p293 = scmp.ne.s32.totalorder %s284, %s285
      %p294 = scmp.eq.s32.totalorder %s29, 0
      %p295 = por %p293, %p294
      %p296 = scmp.ne.s32.totalorder %s284, %s285
      %p297 = scmp.eq.s32.totalorder %s30, 1
      %p298 = por %p296, %p297
      %p300 = scmp.ne.s32.totalorder %s285, %s299
      %p301 = scmp.eq.s32.totalorder %s30, 0
      %p302 = por %p300, %p301
      %s304 = sadd.s32 %s303, 1
      %p307 = scmp.eq.s32.totalorder %s24, 1
      %p308 = scmp.ne.s32.totalorder %s303, %s305
      %p309 = scmp.eq.s32.totalorder %s24, 0
      %p310 = por %p308, %p309
      %p311 = scmp.ne.s32.totalorder %s303, %s305
      %p312 = scmp.eq.s32.totalorder %s29, 1
      %p313 = por %p311, %p312
      %p314 = scmp.ne.s32.totalorder %s305, %s306
      %p315 = scmp.eq.s32.totalorder %s29, 0
      %p316 = por %p314, %p315
      %p317 = scmp.ne.s32.totalorder %s305, %s306
      %p318 = scmp.eq.s32.totalorder %s30, 1
      %p319 = por %p317, %p318
      %p321 = scmp.ne.s32.totalorder %s306, %s320
      %p322 = scmp.eq.s32.totalorder %s30, 0
      %p323 = por %p321, %p322
      %s325 = sadd.s32 %s324, 1
      %p328 = scmp.eq.s32.totalorder %s24, 1
      %p329 = scmp.ne.s32.totalorder %s324, %s326
      %p330 = scmp.eq.s32.totalorder %s24, 0
      %p331 = por %p329, %p330
      %p332 = scmp.ne.s32.totalorder %s324, %s326
      %p333 = scmp.eq.s32.totalorder %s29, 1
      %p334 = por %p332, %p333
      %p335 = scmp.ne.s32.totalorder %s326, %s327
      %p336 = scmp.eq.s32.totalorder %s29, 0
      %p337 = por %p335, %p336
      %p338 = scmp.ne.s32.totalorder %s326, %s327
      %p339 = scmp.eq.s32.totalorder %s30, 1
      %p340 = por %p338, %p339
      %p342 = scmp.ne.s32.totalorder %s327, %s341
      %p343 = scmp.eq.s32.totalorder %s30, 0
      %p344 = por %p342, %p343
      %s346 = sadd.s32 %s345, 1
      %p349 = scmp.eq.s32.totalorder %s24, 1
      %p350 = scmp.ne.s32.totalorder %s345, %s347
      %p351 = scmp.eq.s32.totalorder %s24, 0
      %p352 = por %p350, %p351
      %p353 = scmp.ne.s32.totalorder %s345, %s347
      %p354 = scmp.eq.s32.totalorder %s29, 1
      %p355 = por %p353, %p354
      %p356 = scmp.ne.s32.totalorder %s347, %s348
      %p357 = scmp.eq.s32.totalorder %s29, 0
      %p358 = por %p356, %p357
      %p359 = scmp.ne.s32.totalorder %s347, %s348
      %p360 = scmp.eq.s32.totalorder %s30, 1
      %p361 = por %p359, %p360
      %p363 = scmp.ne.s32.totalorder %s348, %s362
      %p364 = scmp.eq.s32.totalorder %s30, 0
      %p365 = por %p363, %p364
      %s367 = sadd.s32 %s366, 1
      %p370 = scmp.eq.s32.totalorder %s24, 1
      %p371 = scmp.ne.s32.totalorder %s366, %s368
      %p372 = scmp.eq.s32.totalorder %s24, 0
      %p373 = por %p371, %p372
      %p374 = scmp.ne.s32.totalorder %s366, %s368
      %p375 = scmp.eq.s32.totalorder %s29, 1
      %p376 = por %p374, %p375
      %p377 = scmp.ne.s32.totalorder %s368, %s369
      %p378 = scmp.eq.s32.totalorder %s29, 0
      %p379 = por %p377, %p378
      %p380 = scmp.ne.s32.totalorder %s368, %s369
      %p381 = scmp.eq.s32.totalorder %s30, 1
      %p382 = por %p380, %p381
      %p384 = scmp.ne.s32.totalorder %s369, %s383
      %p385 = scmp.eq.s32.totalorder %s30, 0
      %p386 = por %p384, %p385
      %s387 = ssub.s32 %s31, %s50
      %s388 = ssub.s32 %s32, %s46
      %s389 = sor.u32 %s387, %s388
      %p390 = scmp.eq.s32.totalorder %s389, 0
      %s392 = sadd.s32 %s391, 1
      %s393 = scalar_select %p390, %s391, %s392
      %p396 = pneg %p390
      %p397 = scmp.eq.s32.totalorder %s24, 1
      %p398 = por %p396, %p397
      %p399 = scmp.ne.s32.totalorder %s391, %s394
      %p400 = scmp.eq.s32.totalorder %s24, 0
      %p401 = por %p399, %p400
      %p402 = scmp.ne.s32.totalorder %s391, %s394
      %p403 = scmp.eq.s32.totalorder %s29, 1
      %p404 = por %p402, %p403
      %p405 = scmp.ne.s32.totalorder %s394, %s395
      %p406 = scmp.eq.s32.totalorder %s29, 0
      %p407 = por %p405, %p406
      %p408 = scmp.ne.s32.totalorder %s394, %s395
      %p409 = scmp.eq.s32.totalorder %s30, 1
      %p410 = por %p408, %p409
      %p412 = scmp.ne.s32.totalorder %s395, %s411
      %p413 = scmp.eq.s32.totalorder %s30, 0
      %p414 = por %p412, %p413
      %p415 = scmp.le.s32.totalorder 1, %s24
      %p416 = scmp.lt.s32.totalorder %s24, 3
      %p417 = pnand %p415, %p416
      %p418 = pneg %p417
      // Predicated region
      $region9: #{transformer_encoder.7} parent=5 // pred_check
        _
      $region10: #{transformer_encoder.7} parent=5 // pred_check_branch
        %420 = sbr.rel (%p417) target = $region12
      $region11: #{transformer_encoder.7} parent=5 // pred_region
        %s421 = ssub.s32 %s24, 1
        // Predicated region
        $region13: #{transformer_encoder.7} parent=11 // pred_check
          %p422 = pneg %p148
        $region14: #{transformer_encoder.7} parent=11 // pred_check_branch
          %424 = sbr.rel (%p422) target = $region16
        $region15: #{transformer_encoder.7} parent=11 // pred_region
          _
        $region16: #{transformer_encoder.7} parent=11 // pred_fallthru
          _
        // Predicated region
        $region17: #{transformer_encoder.7} parent=11 // pred_check
          %p425 = pneg %p169
        $region18: #{transformer_encoder.7} parent=11 // pred_check_branch
          %427 = sbr.rel (%p425) target = $region20
        $region19: #{transformer_encoder.7} parent=11 // pred_region
          _
        $region20: #{transformer_encoder.7} parent=11 // pred_fallthru
          _
        // Predicated region
        $region21: #{transformer_encoder.7} parent=11 // pred_check
          %p428 = pneg %p190
        $region22: #{transformer_encoder.7} parent=11 // pred_check_branch
          %430 = sbr.rel (%p428) target = $region24
        $region23: #{transformer_encoder.7} parent=11 // pred_region
          _
        $region24: #{transformer_encoder.7} parent=11 // pred_fallthru
          _
        // Predicated region
        $region25: #{transformer_encoder.7} parent=11 // pred_check
          %p431 = pneg %p211
        $region26: #{transformer_encoder.7} parent=11 // pred_check_branch
          %433 = sbr.rel (%p431) target = $region28
        $region27: #{transformer_encoder.7} parent=11 // pred_region
          _
        $region28: #{transformer_encoder.7} parent=11 // pred_fallthru
          _
        // Predicated region
        $region29: #{transformer_encoder.7} parent=11 // pred_check
          %p434 = pneg %p232
        $region30: #{transformer_encoder.7} parent=11 // pred_check_branch
          %436 = sbr.rel (%p434) target = $region32
        $region31: #{transformer_encoder.7} parent=11 // pred_region
          _
        $region32: #{transformer_encoder.7} parent=11 // pred_fallthru
          _
        // Predicated region
        $region33: #{transformer_encoder.7} parent=11 // pred_check
          %p437 = pneg %p253
        $region34: #{transformer_encoder.7} parent=11 // pred_check_branch
          %439 = sbr.rel (%p437) target = $region36
        $region35: #{transformer_encoder.7} parent=11 // pred_region
          _
        $region36: #{transformer_encoder.7} parent=11 // pred_fallthru
          _
        // Predicated region
        $region37: #{transformer_encoder.7} parent=11 // pred_check
          %p440 = pneg %p274
        $region38: #{transformer_encoder.7} parent=11 // pred_check_branch
          %442 = sbr.rel (%p440) target = $region40
        $region39: #{transformer_encoder.7} parent=11 // pred_region
          _
        $region40: #{transformer_encoder.7} parent=11 // pred_fallthru
          _
        // Predicated region
        $region41: #{transformer_encoder.7} parent=11 // pred_check
          %p443 = pneg %p295
        $region42: #{transformer_encoder.7} parent=11 // pred_check_branch
          %445 = sbr.rel (%p443) target = $region44
        $region43: #{transformer_encoder.7} parent=11 // pred_region
          _
        $region44: #{transformer_encoder.7} parent=11 // pred_fallthru
          _
        // Predicated region
        $region45: #{transformer_encoder.7} parent=11 // pred_check
          %p446 = pneg %p316
        $region46: #{transformer_encoder.7} parent=11 // pred_check_branch
          %448 = sbr.rel (%p446) target = $region48
        $region47: #{transformer_encoder.7} parent=11 // pred_region
          _
        $region48: #{transformer_encoder.7} parent=11 // pred_fallthru
          _
        // Predicated region
        $region49: #{transformer_encoder.7} parent=11 // pred_check
          %p449 = pneg %p337
        $region50: #{transformer_encoder.7} parent=11 // pred_check_branch
          %451 = sbr.rel (%p449) target = $region52
        $region51: #{transformer_encoder.7} parent=11 // pred_region
          _
        $region52: #{transformer_encoder.7} parent=11 // pred_fallthru
          _
        // Predicated region
        $region53: #{transformer_encoder.7} parent=11 // pred_check
          %p452 = pneg %p358
        $region54: #{transformer_encoder.7} parent=11 // pred_check_branch
          %454 = sbr.rel (%p452) target = $region56
        $region55: #{transformer_encoder.7} parent=11 // pred_region
          _
        $region56: #{transformer_encoder.7} parent=11 // pred_fallthru
          _
        // Predicated region
        $region57: #{transformer_encoder.7} parent=11 // pred_check
          %p455 = pneg %p379
        $region58: #{transformer_encoder.7} parent=11 // pred_check_branch
          %457 = sbr.rel (%p455) target = $region60
        $region59: #{transformer_encoder.7} parent=11 // pred_region
          _
        $region60: #{transformer_encoder.7} parent=11 // pred_fallthru
          _
      $region12: #{transformer_encoder.7} parent=5 // pred_fallthru
        _
      %p458 = scmp.lt.s32.totalorder %s24, 2
      // Predicated region
      $region61: #{transformer_encoder.7} parent=5 // pred_check
        %p459 = pneg %p458
      $region62: #{transformer_encoder.7} parent=5 // pred_check_branch
        %461 = sbr.rel (%p459) target = $region64
      $region63: #{transformer_encoder.7} parent=5 // pred_region
        // Predicated region
        $region65: #{transformer_encoder.7} parent=63 // pred_check
          %p462 = pneg %p65
        $region66: #{transformer_encoder.7} parent=63 // pred_check_branch
          %464 = sbr.rel (%p462) target = $region68
        $region67: #{transformer_encoder.7} parent=63 // pred_region
          %p465 = scmp.lt.s32.totalorder %s31, 1
          %s466 = scalar_select %p465, %s31, 1
          %p467 = scmp.lt.s32.totalorder %s32, 0
          %s468 = scalar_select %p467, %s32, 0
          %s469 = sadd.s32 %s468, %s466
          %s470 = smul.addr %s469, 8
          %s471 = scalar_lea.vmem %s0, %s470
        $region68: #{transformer_encoder.7} parent=63 // pred_fallthru
          _
        // Predicated region
        $region69: #{transformer_encoder.7} parent=63 // pred_check
          %p472 = pneg %p93
        $region70: #{transformer_encoder.7} parent=63 // pred_check_branch
          %474 = sbr.rel (%p472) target = $region72
        $region71: #{transformer_encoder.7} parent=63 // pred_region
          %p475 = scmp.lt.s32.totalorder %s31, 1
          %s476 = scalar_select %p475, %s31, 1
          %p477 = scmp.lt.s32.totalorder %s33, 0
          %s478 = scalar_select %p477, %s33, 0
          %s479 = smul.addr %s476, 4
          %s480 = sadd.s32 %s478, %s479
          %s481 = smul.addr %s480, 4
          %s482 = scalar_lea.vmem %s1, %s481
        $region72: #{transformer_encoder.7} parent=63 // pred_fallthru
          _
        // Predicated region
        $region73: #{transformer_encoder.7} parent=63 // pred_check
          %p483 = pneg %p121
        $region74: #{transformer_encoder.7} parent=63 // pred_check_branch
          %485 = sbr.rel (%p483) target = $region76
        $region75: #{transformer_encoder.7} parent=63 // pred_region
          %p486 = scmp.lt.s32.totalorder %s31, 1
          %s487 = scalar_select %p486, %s31, 1
          %p488 = scmp.lt.s32.totalorder %s33, 0
          %s489 = scalar_select %p488, %s33, 0
          %s490 = smul.addr %s487, 4
          %s491 = sadd.s32 %s489, %s490
          %s492 = smul.addr %s491, 4
          %s493 = scalar_lea.vmem %s2, %s492
        $region76: #{transformer_encoder.7} parent=63 // pred_fallthru
          _
      $region64: #{transformer_encoder.7} parent=5 // pred_fallthru
        _
      %p494 = scmp.le.s32.totalorder 1, %s24
      %p495 = scmp.lt.s32.totalorder %s24, 3
      %p496 = pnand %p494, %p495
      %p497 = pneg %p496
      // Predicated region
      $region77: #{transformer_encoder.7} parent=5 // pred_check
        _
      $region78: #{transformer_encoder.7} parent=5 // pred_check_branch
        %499 = sbr.rel (%p496) target = $region80
      $region79: #{transformer_encoder.7} parent=5 // pred_region
        %s500 = ssub.s32 %s24, 1
        %p501 = scmp.lt.s32.totalorder %s34, 1
        %s502 = scalar_select %p501, %s34, 1
        %p503 = scmp.lt.s32.totalorder %s35, 0
        %s504 = scalar_select %p503, %s35, 0
        %s505 = sadd.s32 %s504, %s502
        %s506 = smul.addr %s505, 8
        %s507 = scalar_lea.vmem %s0, %s506
        %p508 = pneg %p71
        %p509 = pneg %p68
        %p510 = scmp.lt.s32.totalorder %s34, 1
        %s511 = scalar_select %p510, %s34, 1
        %p512 = scmp.lt.s32.totalorder %s36, 0
        %s513 = scalar_select %p512, %s36, 0
        %s514 = smul.addr %s511, 4
        %s515 = sadd.s32 %s513, %s514
        %s516 = smul.addr %s515, 4
        %s517 = scalar_lea.vmem %s1, %s516
        %p518 = pneg %p99
        %p519 = pneg %p96
        %p520 = scmp.lt.s32.totalorder %s34, 1
        %s521 = scalar_select %p520, %s34, 1
        %p522 = scmp.lt.s32.totalorder %s36, 0
        %s523 = scalar_select %p522, %s36, 0
        %s524 = smul.addr %s521, 4
        %s525 = sadd.s32 %s523, %s524
        %s526 = smul.addr %s525, 4
        %s527 = scalar_lea.vmem %s2, %s526
        %p528 = pneg %p127
        %p529 = pneg %p124
        %p530 = pneg %p148
        %p531 = pneg %p145
        %p532 = pneg %p169
        %p533 = pneg %p166
        %p534 = pneg %p190
        %p535 = pneg %p187
        %p536 = pneg %p211
        %p537 = pneg %p208
        %p538 = pneg %p232
        %p539 = pneg %p229
        %p540 = pneg %p253
        %p541 = pneg %p250
        %p542 = pneg %p274
        %p543 = pneg %p271
        %p544 = pneg %p295
        %p545 = pneg %p292
        %p546 = pneg %p316
        %p547 = pneg %p313
        %p548 = pneg %p337
        %p549 = pneg %p334
        %p550 = pneg %p358
        %p551 = pneg %p355
        %p552 = pneg %p379
        %p553 = pneg %p376
        %p554 = pneg %p407
        %p555 = pneg %p404
        %s556 = sand.u32 %s394, 1
        %s557 = scalar_lea.sflag [#allocation7], %s556
        %s558 = sand.u32 %s394, 1
        %s559 = smul.addr %s558, 8
        %s560 = scalar_lea.vmem [#allocation6], %s559
        %p561 = scmp.lt.s32.totalorder %s34, 1
        %s562 = scalar_select %p561, %s34, 1
        %p563 = scmp.lt.s32.totalorder %s35, 0
        %s564 = scalar_select %p563, %s35, 0
        %s565 = sadd.s32 %s564, %s562
        %s566 = smul.addr %s565, 8
        %s567 = scalar_lea.vmem %s0, %s566
        %p568 = scmp.lt.s32.totalorder %s34, 1
        %s569 = scalar_select %p568, %s34, 1
        %p570 = scmp.lt.s32.totalorder %s36, 0
        %s571 = scalar_select %p570, %s36, 0
        %s572 = smul.addr %s569, 4
        %s573 = sadd.s32 %s571, %s572
        %s574 = smul.addr %s573, 4
        %s575 = scalar_lea.vmem %s1, %s574
        %p576 = scmp.lt.s32.totalorder %s34, 1
        %s577 = scalar_select %p576, %s34, 1
        %p578 = scmp.lt.s32.totalorder %s36, 0
        %s579 = scalar_select %p578, %s36, 0
        %s580 = smul.addr %s577, 4
        %s581 = sadd.s32 %s579, %s580
        %s582 = smul.addr %s581, 4
        %s583 = scalar_lea.vmem %s2, %s582
        %p585 = scmp.eq.s32.totalorder %s36, 0
        // Predicated region
        $region81: #{transformer_encoder.7} parent=79 // pred_check
          %p586 = pneg %p585
        $region82: #{transformer_encoder.7} parent=79 // pred_check_branch
          %588 = sbr.rel (%p586) target = $region84
        $region83: #{transformer_encoder.7} parent=79 // pred_region
          %v589 = vld [vmem:[%s567] sm:$0xff]
          %v590 = vpack.c.bf16 %v589, %v589
          %v591 = vld [vmem:[%s3] sm:$0xf]
          %v592 = vld [vmem:[%s3 + $0x4] sm:$0xf]
          %v593 = vld [vmem:[%s3 + $0x8] sm:$0xf]
          %v594 = vld [vmem:[%s3 + $0xc] sm:$0xf]
          %v595 = vld [vmem:[%s4] sm:$0x1]
          %v597 = vlaneseq
          %v598 = vshrl.u32 %v597, 7
          %v599 = vsub.s32 0, %v598
          %v600 = vrot.slane %v595, %v599
          %v606 = vunpack.c.l.b16 %v591
          %v607 = vunpack.c.l.b16 %v592
          %v608 = vunpack.c.l.b16 %v593
          %v609 = vunpack.c.l.b16 %v594
          %v610 = vpack.c.b16 %v607, %v606
          %v611 = vpack.c.b16 %v609, %v608
          %vm614 = vcmask 261120
          %v616 = vsel %vm614, %v590, 0
          %618 = vmatprep.subr.bf16.mxu0 0
          %619 = vmatpush1.bf16.msra.mxu0 %v610
          %620 = vmatprep.subr.bf16.mxu0 0
          %621 = vmatpush1.bf16.msra.mxu0 %v611
          %622 = vmatprep.subr.bf16.mxu0 0
          %623 = vmatpush1.bf16.msra.mxu0 0
          %624 = vmatprep.subr.bf16.mxu0 0
          %625 = vmatpush1.bf16.msra.mxu0 0
          %626 = vmatprep.subr.bf16.mxu0 0
          %627 = vmatpush1.bf16.msra.mxu0 0
          %628 = vmatprep.subr.bf16.mxu0 0
          %629 = vmatpush1.bf16.msra.mxu0 0
          %630 = vmatprep.subr.bf16.mxu0 0
          %631 = vmatpush1.bf16.msra.mxu0 0
          %632 = vmatprep.subr.bf16.mxu0 0
          %633 = vmatpush1.bf16.msra.mxu0 0
          %634 = vmatprep.subr.bf16.mxu0 0
          %635 = vmatpush1.bf16.msra.mxu0 0
          %636 = vmatprep.subr.bf16.mxu0 0
          %637 = vmatpush1.bf16.msra.mxu0 0
          %638 = vmatprep.subr.bf16.mxu0 0
          %639 = vmatpush1.bf16.msra.mxu0 0
          %640 = vmatprep.subr.bf16.mxu0 0
          %641 = vmatpush1.bf16.msra.mxu0 0
          %642 = vmatprep.subr.bf16.mxu0 0
          %643 = vmatpush1.bf16.msra.mxu0 0
          %644 = vmatprep.subr.bf16.mxu0 0
          %645 = vmatpush1.bf16.msra.mxu0 0
          %646 = vmatprep.subr.bf16.mxu0 0
          %647 = vmatpush1.bf16.msra.mxu0 0
          %648 = vmatprep.subr.bf16.mxu0 0
          %649 = vmatpush1.bf16.msra.mxu0 0
          %650 = vmatprep.mubr.bf16.mxu0 0
          %651 = vmatmul.mubr.bf16.gmra.mrb[0].mxu0 %v616
          %v652 = vpop.f32.mrb[0].mxu0
          %v653 = vadd.f32 %v600, %v652
          %v654 = vpop.f32.mrb[0].mxu0
          %v655 = vpop.f32.mrb[0].mxu0
          %v656 = vpop.f32.mrb[0].mxu0
          %657 = vdwg.mxu0
          %659 = vrot.lane.b32.xlu0 %v653, 120
          %v660 = vpop.permute.xlu0 %659
          %662 = vrot.lane.b32.xlu0 %v653, 112
          %v663 = vpop.permute.xlu0 %662
          %665 = vrot.lane.b32.xlu0 %v653, 104
          %v666 = vpop.permute.xlu0 %665
          %v668 = vcombine.low %v653, %v663
          %v669 = vcombine.high %v653, %v663
          %v671 = vunpack.c.l.s4 1983009808
          %v672 = vunpack.c.0.s8 %v671
          %v673 = vlaneseq
          %v674 = vshrl.u32 %v673, 7
          %v675 = vsub.s32 %v672, %v674
          %v676 = vrot.slane %v668, %v675
          %v678 = vunpack.c.l.s4 1983009808
          %v679 = vunpack.c.0.s8 %v678
          %v680 = vlaneseq
          %v681 = vshrl.u32 %v680, 7
          %v682 = vsub.s32 %v679, %v681
          %v683 = vrot.slane %v669, %v682
          %v684 = vcombine.low %v660, %v666
          %v685 = vcombine.high %v660, %v666
          %v687 = vunpack.c.l.s4 1983009808
          %v688 = vunpack.c.0.s8 %v687
          %v689 = vlaneseq
          %v690 = vshrl.u32 %v689, 7
          %v691 = vsub.s32 %v688, %v690
          %v692 = vrot.slane %v684, %v691
          %v694 = vunpack.c.l.s4 1983009808
          %v695 = vunpack.c.0.s8 %v694
          %v696 = vlaneseq
          %v697 = vshrl.u32 %v696, 7
          %v698 = vsub.s32 %v695, %v697
          %v699 = vrot.slane %v685, %v698
          %v700 = vcombine.low %v676, %v692
          %v701 = vcombine.high %v676, %v692
          %v703 = vunpack.c.l.s4 1934713408
          %v704 = vunpack.c.0.s8 %v703
          %v705 = vlaneseq
          %v706 = vshrl.u32 %v705, 7
          %v707 = vsub.s32 %v704, %v706
          %v708 = vrot.slane %v700, %v707
          %v710 = vunpack.c.l.s4 1934713408
          %v711 = vunpack.c.0.s8 %v710
          %v712 = vlaneseq
          %v713 = vshrl.u32 %v712, 7
          %v714 = vsub.s32 %v711, %v713
          %v715 = vrot.slane %v701, %v714
          %v716 = vcombine.low %v683, %v699
          %v717 = vcombine.high %v683, %v699
          %v719 = vunpack.c.l.s4 1934713408
          %v720 = vunpack.c.0.s8 %v719
          %v721 = vlaneseq
          %v722 = vshrl.u32 %v721, 7
          %v723 = vsub.s32 %v720, %v722
          %v724 = vrot.slane %v716, %v723
          %v726 = vunpack.c.l.s4 1934713408
          %v727 = vunpack.c.0.s8 %v726
          %v728 = vlaneseq
          %v729 = vshrl.u32 %v728, 7
          %v730 = vsub.s32 %v727, %v729
          %v731 = vrot.slane %v717, %v730
          %v732 = vcombine.high %v708, 0.0
          %v733 = vcombine.high %v715, 0.0
          %v734 = vcombine.high %v724, 0.0
          %v735 = vcombine.high %v731, 0.0
          %v736 = vcombine.low %v708, %v715
          %v738 = vunpack.c.l.s4 1983009808
          %v739 = vunpack.c.0.s8 %v738
          %v740 = vlaneseq
          %v741 = vshrl.u32 %v740, 7
          %v742 = vsub.s32 %v739, %v741
          %v743 = vrot.slane %v736, %v742
          %v744 = vcombine.low %v732, %v733
          %v746 = vunpack.c.l.s4 1983009808
          %v747 = vunpack.c.0.s8 %v746
          %v748 = vlaneseq
          %v749 = vshrl.u32 %v748, 7
          %v750 = vsub.s32 %v747, %v749
          %v751 = vrot.slane %v744, %v750
          %v752 = vcombine.low %v724, %v731
          %v754 = vunpack.c.l.s4 1983009808
          %v755 = vunpack.c.0.s8 %v754
          %v756 = vlaneseq
          %v757 = vshrl.u32 %v756, 7
          %v758 = vsub.s32 %v755, %v757
          %v759 = vrot.slane %v752, %v758
          %v760 = vcombine.low %v734, %v735
          %v762 = vunpack.c.l.s4 1983009808
          %v763 = vunpack.c.0.s8 %v762
          %v764 = vlaneseq
          %v765 = vshrl.u32 %v764, 7
          %v766 = vsub.s32 %v763, %v765
          %v767 = vrot.slane %v760, %v766
          %v768 = vcombine.low %v743, %v751
          %v769 = vcombine.high %v743, %v751
          %v771 = vunpack.c.l.s4 1934713408
          %v772 = vunpack.c.0.s8 %v771
          %v773 = vlaneseq
          %v774 = vshrl.u32 %v773, 7
          %v775 = vsub.s32 %v772, %v774
          %v776 = vrot.slane %v768, %v775
          %v778 = vunpack.c.l.s4 1934713408
          %v779 = vunpack.c.0.s8 %v778
          %v780 = vlaneseq
          %v781 = vshrl.u32 %v780, 7
          %v782 = vsub.s32 %v779, %v781
          %v783 = vrot.slane %v769, %v782
          %v784 = vcombine.low %v759, %v767
          %v785 = vcombine.high %v759, %v767
          %v787 = vunpack.c.l.s4 1934713408
          %v788 = vunpack.c.0.s8 %v787
          %v789 = vlaneseq
          %v790 = vshrl.u32 %v789, 7
          %v791 = vsub.s32 %v788, %v790
          %v792 = vrot.slane %v784, %v791
          %v794 = vunpack.c.l.s4 1934713408
          %v795 = vunpack.c.0.s8 %v794
          %v796 = vlaneseq
          %v797 = vshrl.u32 %v796, 7
          %v798 = vsub.s32 %v795, %v797
          %v799 = vrot.slane %v785, %v798
          %v800 = vcombine.low %v776, %v792
          %v801 = vcombine.high %v776, %v792
          %v802 = vcombine.low %v783, %v799
          %v803 = vcombine.high %v783, %v799
          %v804 = vpack.c.bf16 %v800, %v800
          %v805 = vpack.c.bf16 %v801, %v801
          %v806 = vpack.c.bf16 %v802, %v802
          %v807 = vpack.c.bf16 %v803, %v803
          %vm808 = vcmask 60416
          %809 = vst.msk [vmem:[#allocation2] sm:$0xf] %vm808, %v804
          %810 = vst.msk [vmem:[#allocation2 + $0x4] sm:$0xf] %vm808, %v805
          %811 = vst.msk [vmem:[#allocation2 + $0x8] sm:$0xf] %vm808, %v806
          %812 = vst.msk [vmem:[#allocation2 + $0xc] sm:$0xf] %vm808, %v807
          %vm813 = vcmask 7168
          %814 = vst.msk [vmem:[#allocation3] sm:$0xff] %vm813, -inf
          %815 = vst.msk [vmem:[#allocation3 + $0x8] sm:$0xff] %vm813, -inf
          %816 = vst.msk [vmem:[#allocation3 + $0x10] sm:$0xff] %vm813, -inf
          %817 = vst.msk [vmem:[#allocation3 + $0x18] sm:$0xff] %vm813, -inf
          %818 = vst.msk [vmem:[#allocation4] sm:$0xff] %vm813, 0.0
          %819 = vst.msk [vmem:[#allocation4 + $0x8] sm:$0xff] %vm813, 0.0
          %820 = vst.msk [vmem:[#allocation4 + $0x10] sm:$0xff] %vm813, 0.0
          %821 = vst.msk [vmem:[#allocation4 + $0x18] sm:$0xff] %vm813, 0.0
          %vm822 = vcmask 64512
          %823 = vst.msk [vmem:[#allocation5] sm:$0xff] %vm822, 0.0
          %824 = vst.msk [vmem:[#allocation5 + $0x8] sm:$0xff] %vm822, 0.0
          %825 = vst.msk [vmem:[#allocation5 + $0x10] sm:$0xff] %vm822, 0.0
          %826 = vst.msk [vmem:[#allocation5 + $0x18] sm:$0xff] %vm822, 0.0
        $region84: #{transformer_encoder.7} parent=79 // pred_fallthru
          _
        %v827 = vld [vmem:[#allocation2] sm:$0xf]
        %v828 = vld [vmem:[#allocation2 + $0x4] sm:$0xf]
        %v829 = vld [vmem:[#allocation2 + $0x8] sm:$0xf]
        %v830 = vld [vmem:[#allocation2 + $0xc] sm:$0xf]
        %v831 = vld [vmem:[%s575] sm:$0xf]
        %v832 = vld [vmem:[%s575 + $0x4] sm:$0xf]
        %v833 = vld [vmem:[%s575 + $0x8] sm:$0xf]
        %v834 = vld [vmem:[%s575 + $0xc] sm:$0xf]
        %vm835 = vcmask 64512
        %v837 = vsel %vm835, %v827, 0
        %v840 = vsel %vm835, %v831, 0
        %842 = vmatprep.subr.bf16.mxu0 0
        %843 = vmatpush1.bf16.xpose.msra.mxu0 %v840
        %844 = vmatprep.subr.bf16.mxu0 0
        %845 = vmatpush1.bf16.xpose.msra.mxu0 0
        %846 = vmatprep.subr.bf16.mxu0 0
        %847 = vmatpush1.bf16.xpose.msra.mxu0 0
        %848 = vmatprep.subr.bf16.mxu0 0
        %849 = vmatpush1.bf16.xpose.msra.mxu0 0
        %850 = vmatprep.subr.bf16.mxu0 0
        %851 = vmatpush1.bf16.xpose.msra.mxu0 0
        %852 = vmatprep.subr.bf16.mxu0 0
        %853 = vmatpush1.bf16.xpose.msra.mxu0 0
        %854 = vmatprep.subr.bf16.mxu0 0
        %855 = vmatpush1.bf16.xpose.msra.mxu0 0
        %856 = vmatprep.subr.bf16.mxu0 0
        %857 = vmatpush1.bf16.xpose.msra.mxu0 0
        %858 = vmatprep.subr.bf16.mxu0 0
        %859 = vmatpush1.bf16.xpose.msra.mxu0 0
        %860 = vmatprep.subr.bf16.mxu0 0
        %861 = vmatpush1.bf16.xpose.msra.mxu0 0
        %862 = vmatprep.subr.bf16.mxu0 0
        %863 = vmatpush1.bf16.xpose.msra.mxu0 0
        %864 = vmatprep.subr.bf16.mxu0 0
        %865 = vmatpush1.bf16.xpose.msra.mxu0 0
        %866 = vmatprep.subr.bf16.mxu0 0
        %867 = vmatpush1.bf16.xpose.msra.mxu0 0
        %868 = vmatprep.subr.bf16.mxu0 0
        %869 = vmatpush1.bf16.xpose.msra.mxu0 0
        %870 = vmatprep.subr.bf16.mxu0 0
        %871 = vmatpush1.bf16.xpose.msra.mxu0 0
        %872 = vmatprep.subr.bf16.mxu0 0
        %873 = vmatpush1.bf16.xpose.msra.mxu0 0
        %874 = vmatprep.mubr.bf16.mxu0 0
        %875 = vmatmul.mubr.bf16.gmra.mrb[0].mxu0 %v837
        %v876 = vpop.f32.mrb[0].mxu0
        %v877 = vadd.f32 0.0, %v876
        %v878 = vpop.f32.mrb[0].mxu0
        %v879 = vpop.f32.mrb[0].mxu0
        %v880 = vpop.f32.mrb[0].mxu0
        %881 = vdwg.mxu0
        %v883 = vsel %vm835, %v828, 0
        %v886 = vsel %vm835, %v832, 0
        %888 = vmatprep.subr.bf16.mxu0 0
        %889 = vmatpush1.bf16.xpose.msra.mxu0 %v886
        %890 = vmatprep.subr.bf16.mxu0 0
        %891 = vmatpush1.bf16.xpose.msra.mxu0 0
        %892 = vmatprep.subr.bf16.mxu0 0
        %893 = vmatpush1.bf16.xpose.msra.mxu0 0
        %894 = vmatprep.subr.bf16.mxu0 0
        %895 = vmatpush1.bf16.xpose.msra.mxu0 0
        %896 = vmatprep.subr.bf16.mxu0 0
        %897 = vmatpush1.bf16.xpose.msra.mxu0 0
        %898 = vmatprep.subr.bf16.mxu0 0
        %899 = vmatpush1.bf16.xpose.msra.mxu0 0
        %900 = vmatprep.subr.bf16.mxu0 0
        %901 = vmatpush1.bf16.xpose.msra.mxu0 0
        %902 = vmatprep.subr.bf16.mxu0 0
        %903 = vmatpush1.bf16.xpose.msra.mxu0 0
        %904 = vmatprep.subr.bf16.mxu0 0
        %905 = vmatpush1.bf16.xpose.msra.mxu0 0
        %906 = vmatprep.subr.bf16.mxu0 0
        %907 = vmatpush1.bf16.xpose.msra.mxu0 0
        %908 = vmatprep.subr.bf16.mxu0 0
        %909 = vmatpush1.bf16.xpose.msra.mxu0 0
        %910 = vmatprep.subr.bf16.mxu0 0
        %911 = vmatpush1.bf16.xpose.msra.mxu0 0
        %912 = vmatprep.subr.bf16.mxu0 0
        %913 = vmatpush1.bf16.xpose.msra.mxu0 0
        %914 = vmatprep.subr.bf16.mxu0 0
        %915 = vmatpush1.bf16.xpose.msra.mxu0 0
        %916 = vmatprep.subr.bf16.mxu0 0
        %917 = vmatpush1.bf16.xpose.msra.mxu0 0
        %918 = vmatprep.subr.bf16.mxu0 0
        %919 = vmatpush1.bf16.xpose.msra.mxu0 0
        %920 = vmatprep.mubr.bf16.mxu0 0
        %921 = vmatmul.mubr.bf16.gmra.mrb[0].mxu0 %v883
        %v922 = vpop.f32.mrb[0].mxu0
        %v923 = vadd.f32 0.0, %v922
        %v924 = vpop.f32.mrb[0].mxu0
        %v925 = vpop.f32.mrb[0].mxu0
        %v926 = vpop.f32.mrb[0].mxu0
        %927 = vdwg.mxu0
        %v929 = vsel %vm835, %v829, 0
        %v932 = vsel %vm835, %v833, 0
        %934 = vmatprep.subr.bf16.mxu0 0
        %935 = vmatpush1.bf16.xpose.msra.mxu0 %v932
        %936 = vmatprep.subr.bf16.mxu0 0
        %937 = vmatpush1.bf16.xpose.msra.mxu0 0
        %938 = vmatprep.subr.bf16.mxu0 0
        %939 = vmatpush1.bf16.xpose.msra.mxu0 0
        %940 = vmatprep.subr.bf16.mxu0 0
        %941 = vmatpush1.bf16.xpose.msra.mxu0 0
        %942 = vmatprep.subr.bf16.mxu0 0
        %943 = vmatpush1.bf16.xpose.msra.mxu0 0
        %944 = vmatprep.subr.bf16.mxu0 0
        %945 = vmatpush1.bf16.xpose.msra.mxu0 0
        %946 = vmatprep.subr.bf16.mxu0 0
        %947 = vmatpush1.bf16.xpose.msra.mxu0 0
        %948 = vmatprep.subr.bf16.mxu0 0
        %949 = vmatpush1.bf16.xpose.msra.mxu0 0
        %950 = vmatprep.subr.bf16.mxu0 0
        %951 = vmatpush1.bf16.xpose.msra.mxu0 0
        %952 = vmatprep.subr.bf16.mxu0 0
        %953 = vmatpush1.bf16.xpose.msra.mxu0 0
        %954 = vmatprep.subr.bf16.mxu0 0
        %955 = vmatpush1.bf16.xpose.msra.mxu0 0
        %956 = vmatprep.subr.bf16.mxu0 0
        %957 = vmatpush1.bf16.xpose.msra.mxu0 0
        %958 = vmatprep.subr.bf16.mxu0 0
        %959 = vmatpush1.bf16.xpose.msra.mxu0 0
        %960 = vmatprep.subr.bf16.mxu0 0
        %961 = vmatpush1.bf16.xpose.msra.mxu0 0
        %962 = vmatprep.subr.bf16.mxu0 0
        %963 = vmatpush1.bf16.xpose.msra.mxu0 0
        %964 = vmatprep.subr.bf16.mxu0 0
        %965 = vmatpush1.bf16.xpose.msra.mxu0 0
        %966 = vmatprep.mubr.bf16.mxu0 0
        %967 = vmatmul.mubr.bf16.gmra.mrb[0].mxu0 %v929
        %v968 = vpop.f32.mrb[0].mxu0
        %v969 = vadd.f32 0.0, %v968
        %v970 = vpop.f32.mrb[0].mxu0
        %v971 = vpop.f32.mrb[0].mxu0
        %v972 = vpop.f32.mrb[0].mxu0
        %973 = vdwg.mxu0
        %v975 = vsel %vm835, %v830, 0
        %v978 = vsel %vm835, %v834, 0
        %980 = vmatprep.subr.bf16.mxu0 0
        %981 = vmatpush1.bf16.xpose.msra.mxu0 %v978
        %982 = vmatprep.subr.bf16.mxu0 0
        %983 = vmatpush1.bf16.xpose.msra.mxu0 0
        %984 = vmatprep.subr.bf16.mxu0 0
        %985 = vmatpush1.bf16.xpose.msra.mxu0 0
        %986 = vmatprep.subr.bf16.mxu0 0
        %987 = vmatpush1.bf16.xpose.msra.mxu0 0
        %988 = vmatprep.subr.bf16.mxu0 0
        %989 = vmatpush1.bf16.xpose.msra.mxu0 0
        %990 = vmatprep.subr.bf16.mxu0 0
        %991 = vmatpush1.bf16.xpose.msra.mxu0 0
        %992 = vmatprep.subr.bf16.mxu0 0
        %993 = vmatpush1.bf16.xpose.msra.mxu0 0
        %994 = vmatprep.subr.bf16.mxu0 0
        %995 = vmatpush1.bf16.xpose.msra.mxu0 0
        %996 = vmatprep.subr.bf16.mxu0 0
        %997 = vmatpush1.bf16.xpose.msra.mxu0 0
        %998 = vmatprep.subr.bf16.mxu0 0
        %999 = vmatpush1.bf16.xpose.msra.mxu0 0
        %1000 = vmatprep.subr.bf16.mxu0 0
        %1001 = vmatpush1.bf16.xpose.msra.mxu0 0
        %1002 = vmatprep.subr.bf16.mxu0 0
        %1003 = vmatpush1.bf16.xpose.msra.mxu0 0
        %1004 = vmatprep.subr.bf16.mxu0 0
        %1005 = vmatpush1.bf16.xpose.msra.mxu0 0
        %1006 = vmatprep.subr.bf16.mxu0 0
        %1007 = vmatpush1.bf16.xpose.msra.mxu0 0
        %1008 = vmatprep.subr.bf16.mxu0 0
        %1009 = vmatpush1.bf16.xpose.msra.mxu0 0
        %1010 = vmatprep.subr.bf16.mxu0 0
        %1011 = vmatpush1.bf16.xpose.msra.mxu0 0
        %1012 = vmatprep.mubr.bf16.mxu0 0
        %1013 = vmatmul.mubr.bf16.gmra.mrb[0].mxu0 %v975
        %v1014 = vpop.f32.mrb[0].mxu0
        %v1015 = vadd.f32 0.0, %v1014
        %v1016 = vpop.f32.mrb[0].mxu0
        %v1017 = vpop.f32.mrb[0].mxu0
        %v1018 = vpop.f32.mrb[0].mxu0
        %1019 = vdwg.mxu0
        %v1020 = vld [vmem:[#allocation3] sm:$0xff]
        %v1021 = vld [vmem:[#allocation3 + $0x8] sm:$0xff]
        %v1022 = vld [vmem:[#allocation3 + $0x10] sm:$0xff]
        %v1023 = vld [vmem:[#allocation3 + $0x18] sm:$0xff]
        %v1024 = vsel %vm835, %v877, -inf
        %1025 = vmax.xlane.f32.xlu0 %v1024
        %v1026 = vpop.xlane.xlu0 %1025
        %v1027 = vsel %vm835, %v923, -inf
        %1028 = vmax.xlane.f32.xlu0 %v1027
        %v1029 = vpop.xlane.xlu0 %1028
        %v1030 = vsel %vm835, %v969, -inf
        %1031 = vmax.xlane.f32.xlu0 %v1030
        %v1032 = vpop.xlane.xlu0 %1031
        %v1033 = vsel %vm835, %v1015, -inf
        %1034 = vmax.xlane.f32.xlu0 %v1033
        %v1035 = vpop.xlane.xlu0 %1034
        %v1036 = vmax.f32 %v1020, %v1026
        %v1037 = vmax.f32 %v1021, %v1029
        %v1038 = vmax.f32 %v1022, %v1032
        %v1039 = vmax.f32 %v1023, %v1035
        %v1040 = vsub.f32 %v1020, %v1036
        %v1041 = vsub.f32 %v1021, %v1037
        %v1042 = vsub.f32 %v1022, %v1038
        %v1043 = vsub.f32 %v1023, %v1039
        %v1044 = vmul.f32 %v1040, 1.442695
        %v1045 = vpow.pop %v1044
        %v1046 = vmul.f32 %v1041, 1.442695
        %v1047 = vpow.pop %v1046
        %v1048 = vmul.f32 %v1042, 1.442695
        %v1049 = vpow.pop %v1048
        %v1050 = vmul.f32 %v1043, 1.442695
        %v1051 = vpow.pop %v1050
        %1053 = vset.pattern.permute.xlu0 0
        %1054 = vperm.xlu0 %1053, %v1036
        %v1055 = vpop.permute.xlu0 %1054
        %1058 = vset.pattern.permute.xlu0 0
        %1059 = vperm.xlu0 %1058, %v1037
        %v1060 = vpop.permute.xlu0 %1059
        %1063 = vset.pattern.permute.xlu0 0
        %1064 = vperm.xlu0 %1063, %v1038
        %v1065 = vpop.permute.xlu0 %1064
        %1068 = vset.pattern.permute.xlu0 0
        %1069 = vperm.xlu0 %1068, %v1039
        %v1070 = vpop.permute.xlu0 %1069
        %v1072 = vsub.f32 %v877, %v1055
        %v1073 = vsub.f32 %v923, %v1060
        %v1074 = vsub.f32 %v969, %v1065
        %v1075 = vsub.f32 %v1015, %v1070
        %v1076 = vmul.f32 %v1072, 1.442695
        %v1077 = vpow.pop %v1076
        %v1078 = vmul.f32 %v1073, 1.442695
        %v1079 = vpow.pop %v1078
        %v1080 = vmul.f32 %v1074, 1.442695
        %v1081 = vpow.pop %v1080
        %v1082 = vmul.f32 %v1075, 1.442695
        %v1083 = vpow.pop %v1082
        %v1084 = vld [vmem:[#allocation4] sm:$0xff]
        %v1085 = vld [vmem:[#allocation4 + $0x8] sm:$0xff]
        %v1086 = vld [vmem:[#allocation4 + $0x10] sm:$0xff]
        %v1087 = vld [vmem:[#allocation4 + $0x18] sm:$0xff]
        %v1088 = vmul.f32 %v1045, %v1084
        %v1089 = vmul.f32 %v1047, %v1085
        %v1090 = vmul.f32 %v1049, %v1086
        %v1091 = vmul.f32 %v1051, %v1087
        %v1092 = vsel %vm835, %v1077, 0.0
        %1093 = vadd.xlane.f32.xlu0 %v1092
        %v1094 = vpop.xlane.xlu0 %1093
        %v1095 = vsel %vm835, %v1079, 0.0
        %1096 = vadd.xlane.f32.xlu0 %v1095
        %v1097 = vpop.xlane.xlu0 %1096
        %v1098 = vsel %vm835, %v1081, 0.0
        %1099 = vadd.xlane.f32.xlu0 %v1098
        %v1100 = vpop.xlane.xlu0 %1099
        %v1101 = vsel %vm835, %v1083, 0.0
        %1102 = vadd.xlane.f32.xlu0 %v1101
        %v1103 = vpop.xlane.xlu0 %1102
        %v1104 = vadd.f32 %v1088, %v1094
        %v1105 = vadd.f32 %v1089, %v1097
        %v1106 = vadd.f32 %v1090, %v1100
        %v1107 = vadd.f32 %v1091, %v1103
        %vm1108 = vcmask 7168
        %1109 = vst.msk [vmem:[#allocation4] sm:$0xff] %vm1108, %v1104
        %1110 = vst.msk [vmem:[#allocation4 + $0x8] sm:$0xff] %vm1108, %v1105
        %1111 = vst.msk [vmem:[#allocation4 + $0x10] sm:$0xff] %vm1108, %v1106
        %1112 = vst.msk [vmem:[#allocation4 + $0x18] sm:$0xff] %vm1108, %v1107
        %v1113 = vld [vmem:[#allocation5] sm:$0xff]
        %v1114 = vld [vmem:[#allocation5 + $0x8] sm:$0xff]
        %v1115 = vld [vmem:[#allocation5 + $0x10] sm:$0xff]
        %v1116 = vld [vmem:[#allocation5 + $0x18] sm:$0xff]
        %1118 = vset.pattern.permute.xlu0 0
        %1119 = vperm.xlu0 %1118, %v1045
        %v1120 = vpop.permute.xlu0 %1119
        %1123 = vset.pattern.permute.xlu0 0
        %1124 = vperm.xlu0 %1123, %v1047
        %v1125 = vpop.permute.xlu0 %1124
        %1128 = vset.pattern.permute.xlu0 0
        %1129 = vperm.xlu0 %1128, %v1049
        %v1130 = vpop.permute.xlu0 %1129
        %1133 = vset.pattern.permute.xlu0 0
        %1134 = vperm.xlu0 %1133, %v1051
        %v1135 = vpop.permute.xlu0 %1134
        %v1137 = vmul.f32 %v1120, %v1113
        %v1138 = vmul.f32 %v1125, %v1114
        %v1139 = vmul.f32 %v1130, %v1115
        %v1140 = vmul.f32 %v1135, %v1116
        %v1141 = vpack.c.bf16 %v1077, %v1077
        %v1142 = vpack.c.bf16 %v1079, %v1079
        %v1143 = vpack.c.bf16 %v1081, %v1081
        %v1144 = vpack.c.bf16 %v1083, %v1083
        %v1145 = vld [vmem:[%s583] sm:$0xf]
        %v1146 = vld [vmem:[%s583 + $0x4] sm:$0xf]
        %v1147 = vld [vmem:[%s583 + $0x8] sm:$0xf]
        %v1148 = vld [vmem:[%s583 + $0xc] sm:$0xf]
        %v1150 = vsel %vm835, %v1141, 0
        %vm1152 = vcmask 1043456
        %v1154 = vsel %vm1152, %v1145, 0
        %1156 = vmatprep.subr.bf16.mxu0 0
        %1157 = vmatpush1.bf16.msra.mxu0 %v1154
        %1158 = vmatprep.subr.bf16.mxu0 0
        %1159 = vmatpush1.bf16.msra.mxu0 0
        %1160 = vmatprep.subr.bf16.mxu0 0
        %1161 = vmatpush1.bf16.msra.mxu0 0
        %1162 = vmatprep.subr.bf16.mxu0 0
        %1163 = vmatpush1.bf16.msra.mxu0 0
        %1164 = vmatprep.subr.bf16.mxu0 0
        %1165 = vmatpush1.bf16.msra.mxu0 0
        %1166 = vmatprep.subr.bf16.mxu0 0
        %1167 = vmatpush1.bf16.msra.mxu0 0
        %1168 = vmatprep.subr.bf16.mxu0 0
        %1169 = vmatpush1.bf16.msra.mxu0 0
        %1170 = vmatprep.subr.bf16.mxu0 0
        %1171 = vmatpush1.bf16.msra.mxu0 0
        %1172 = vmatprep.subr.bf16.mxu0 0
        %1173 = vmatpush1.bf16.msra.mxu0 0
        %1174 = vmatprep.subr.bf16.mxu0 0
        %1175 = vmatpush1.bf16.msra.mxu0 0
        %1176 = vmatprep.subr.bf16.mxu0 0
        %1177 = vmatpush1.bf16.msra.mxu0 0
        %1178 = vmatprep.subr.bf16.mxu0 0
        %1179 = vmatpush1.bf16.msra.mxu0 0
        %1180 = vmatprep.subr.bf16.mxu0 0
        %1181 = vmatpush1.bf16.msra.mxu0 0
        %1182 = vmatprep.subr.bf16.mxu0 0
        %1183 = vmatpush1.bf16.msra.mxu0 0
        %1184 = vmatprep.subr.bf16.mxu0 0
        %1185 = vmatpush1.bf16.msra.mxu0 0
        %1186 = vmatprep.subr.bf16.mxu0 0
        %1187 = vmatpush1.bf16.msra.mxu0 0
        %1188 = vmatprep.mubr.bf16.mxu0 0
        %1189 = vmatmul.mubr.bf16.gmra.mrb[0].mxu0 %v1150
        %v1190 = vpop.f32.mrb[0].mxu0
        %v1191 = vadd.f32 0.0, %v1190
        %v1192 = vpop.f32.mrb[0].mxu0
        %v1193 = vpop.f32.mrb[0].mxu0
        %v1194 = vpop.f32.mrb[0].mxu0
        %1195 = vdwg.mxu0
        %v1197 = vsel %vm835, %v1142, 0
        %v1200 = vsel %vm1152, %v1146, 0
        %1202 = vmatprep.subr.bf16.mxu0 0
        %1203 = vmatpush1.bf16.msra.mxu0 %v1200
        %1204 = vmatprep.subr.bf16.mxu0 0
        %1205 = vmatpush1.bf16.msra.mxu0 0
        %1206 = vmatprep.subr.bf16.mxu0 0
        %1207 = vmatpush1.bf16.msra.mxu0 0
        %1208 = vmatprep.subr.bf16.mxu0 0
        %1209 = vmatpush1.bf16.msra.mxu0 0
        %1210 = vmatprep.subr.bf16.mxu0 0
        %1211 = vmatpush1.bf16.msra.mxu0 0
        %1212 = vmatprep.subr.bf16.mxu0 0
        %1213 = vmatpush1.bf16.msra.mxu0 0
        %1214 = vmatprep.subr.bf16.mxu0 0
        %1215 = vmatpush1.bf16.msra.mxu0 0
        %1216 = vmatprep.subr.bf16.mxu0 0
        %1217 = vmatpush1.bf16.msra.mxu0 0
        %1218 = vmatprep.subr.bf16.mxu0 0
        %1219 = vmatpush1.bf16.msra.mxu0 0
        %1220 = vmatprep.subr.bf16.mxu0 0
        %1221 = vmatpush1.bf16.msra.mxu0 0
        %1222 = vmatprep.subr.bf16.mxu0 0
        %1223 = vmatpush1.bf16.msra.mxu0 0
        %1224 = vmatprep.subr.bf16.mxu0 0
        %1225 = vmatpush1.bf16.msra.mxu0 0
        %1226 = vmatprep.subr.bf16.mxu0 0
        %1227 = vmatpush1.bf16.msra.mxu0 0
        %1228 = vmatprep.subr.bf16.mxu0 0
        %1229 = vmatpush1.bf16.msra.mxu0 0
        %1230 = vmatprep.subr.bf16.mxu0 0
        %1231 = vmatpush1.bf16.msra.mxu0 0
        %1232 = vmatprep.subr.bf16.mxu0 0
        %1233 = vmatpush1.bf16.msra.mxu0 0
        %1234 = vmatprep.mubr.bf16.mxu0 0
        %1235 = vmatmul.mubr.bf16.gmra.mrb[0].mxu0 %v1197
        %v1236 = vpop.f32.mrb[0].mxu0
        %v1237 = vadd.f32 0.0, %v1236
        %v1238 = vpop.f32.mrb[0].mxu0
        %v1239 = vpop.f32.mrb[0].mxu0
        %v1240 = vpop.f32.mrb[0].mxu0
        %1241 = vdwg.mxu0
        %v1243 = vsel %vm835, %v1143, 0
        %v1246 = vsel %vm1152, %v1147, 0
        %1248 = vmatprep.subr.bf16.mxu0 0
        %1249 = vmatpush1.bf16.msra.mxu0 %v1246
        %1250 = vmatprep.subr.bf16.mxu0 0
        %1251 = vmatpush1.bf16.msra.mxu0 0
        %1252 = vmatprep.subr.bf16.mxu0 0
        %1253 = vmatpush1.bf16.msra.mxu0 0
        %1254 = vmatprep.subr.bf16.mxu0 0
        %1255 = vmatpush1.bf16.msra.mxu0 0
        %1256 = vmatprep.subr.bf16.mxu0 0
        %1257 = vmatpush1.bf16.msra.mxu0 0
        %1258 = vmatprep.subr.bf16.mxu0 0
        %1259 = vmatpush1.bf16.msra.mxu0 0
        %1260 = vmatprep.subr.bf16.mxu0 0
        %1261 = vmatpush1.bf16.msra.mxu0 0
        %1262 = vmatprep.subr.bf16.mxu0 0
        %1263 = vmatpush1.bf16.msra.mxu0 0
        %1264 = vmatprep.subr.bf16.mxu0 0
        %1265 = vmatpush1.bf16.msra.mxu0 0
        %1266 = vmatprep.subr.bf16.mxu0 0
        %1267 = vmatpush1.bf16.msra.mxu0 0
        %1268 = vmatprep.subr.bf16.mxu0 0
        %1269 = vmatpush1.bf16.msra.mxu0 0
        %1270 = vmatprep.subr.bf16.mxu0 0
        %1271 = vmatpush1.bf16.msra.mxu0 0
        %1272 = vmatprep.subr.bf16.mxu0 0
        %1273 = vmatpush1.bf16.msra.mxu0 0
        %1274 = vmatprep.subr.bf16.mxu0 0
        %1275 = vmatpush1.bf16.msra.mxu0 0
        %1276 = vmatprep.subr.bf16.mxu0 0
        %1277 = vmatpush1.bf16.msra.mxu0 0
        %1278 = vmatprep.subr.bf16.mxu0 0
        %1279 = vmatpush1.bf16.msra.mxu0 0
        %1280 = vmatprep.mubr.bf16.mxu0 0
        %1281 = vmatmul.mubr.bf16.gmra.mrb[0].mxu0 %v1243
        %v1282 = vpop.f32.mrb[0].mxu0
        %v1283 = vadd.f32 0.0, %v1282
        %v1284 = vpop.f32.mrb[0].mxu0
        %v1285 = vpop.f32.mrb[0].mxu0
        %v1286 = vpop.f32.mrb[0].mxu0
        %1287 = vdwg.mxu0
        %v1289 = vsel %vm835, %v1144, 0
        %v1292 = vsel %vm1152, %v1148, 0
        %1294 = vmatprep.subr.bf16.mxu0 0
        %1295 = vmatpush1.bf16.msra.mxu0 %v1292
        %1296 = vmatprep.subr.bf16.mxu0 0
        %1297 = vmatpush1.bf16.msra.mxu0 0
        %1298 = vmatprep.subr.bf16.mxu0 0
        %1299 = vmatpush1.bf16.msra.mxu0 0
        %1300 = vmatprep.subr.bf16.mxu0 0
        %1301 = vmatpush1.bf16.msra.mxu0 0
        %1302 = vmatprep.subr.bf16.mxu0 0
        %1303 = vmatpush1.bf16.msra.mxu0 0
        %1304 = vmatprep.subr.bf16.mxu0 0
        %1305 = vmatpush1.bf16.msra.mxu0 0
        %1306 = vmatprep.subr.bf16.mxu0 0
        %1307 = vmatpush1.bf16.msra.mxu0 0
        %1308 = vmatprep.subr.bf16.mxu0 0
        %1309 = vmatpush1.bf16.msra.mxu0 0
        %1310 = vmatprep.subr.bf16.mxu0 0
        %1311 = vmatpush1.bf16.msra.mxu0 0
        %1312 = vmatprep.subr.bf16.mxu0 0
        %1313 = vmatpush1.bf16.msra.mxu0 0
        %1314 = vmatprep.subr.bf16.mxu0 0
        %1315 = vmatpush1.bf16.msra.mxu0 0
        %1316 = vmatprep.subr.bf16.mxu0 0
        %1317 = vmatpush1.bf16.msra.mxu0 0
        %1318 = vmatprep.subr.bf16.mxu0 0
        %1319 = vmatpush1.bf16.msra.mxu0 0
        %1320 = vmatprep.subr.bf16.mxu0 0
        %1321 = vmatpush1.bf16.msra.mxu0 0
        %1322 = vmatprep.subr.bf16.mxu0 0
        %1323 = vmatpush1.bf16.msra.mxu0 0
        %1324 = vmatprep.subr.bf16.mxu0 0
        %1325 = vmatpush1.bf16.msra.mxu0 0
        %1326 = vmatprep.mubr.bf16.mxu0 0
        %1327 = vmatmul.mubr.bf16.gmra.mrb[0].mxu0 %v1289
        %v1328 = vpop.f32.mrb[0].mxu0
        %v1329 = vadd.f32 0.0, %v1328
        %v1330 = vpop.f32.mrb[0].mxu0
        %v1331 = vpop.f32.mrb[0].mxu0
        %v1332 = vpop.f32.mrb[0].mxu0
        %1333 = vdwg.mxu0
        %v1334 = vadd.f32 %v1137, %v1191
        %v1335 = vadd.f32 %v1138, %v1237
        %v1336 = vadd.f32 %v1139, %v1283
        %v1337 = vadd.f32 %v1140, %v1329
        %1338 = vst.msk [vmem:[#allocation5] sm:$0xff] %vm835, %v1334
        %1339 = vst.msk [vmem:[#allocation5 + $0x8] sm:$0xff] %vm835, %v1335
        %1340 = vst.msk [vmem:[#allocation5 + $0x10] sm:$0xff] %vm835, %v1336
        %1341 = vst.msk [vmem:[#allocation5 + $0x18] sm:$0xff] %vm835, %v1337
        %1342 = vst.msk [vmem:[#allocation3] sm:$0xff] %vm1108, %v1036
        %1343 = vst.msk [vmem:[#allocation3 + $0x8] sm:$0xff] %vm1108, %v1037
        %1344 = vst.msk [vmem:[#allocation3 + $0x10] sm:$0xff] %vm1108, %v1038
        %1345 = vst.msk [vmem:[#allocation3 + $0x18] sm:$0xff] %vm1108, %v1039
        // Predicated region
        $region85: #{transformer_encoder.7} parent=79 // pred_check
          %p1346 = pneg %p585
        $region86: #{transformer_encoder.7} parent=79 // pred_check_branch
          %1348 = sbr.rel (%p1346) target = $region88
        $region87: #{transformer_encoder.7} parent=79 // pred_region
          %v1349 = vld [vmem:[#allocation5] sm:$0xff]
          %v1350 = vld [vmem:[#allocation5 + $0x8] sm:$0xff]
          %v1351 = vld [vmem:[#allocation5 + $0x10] sm:$0xff]
          %v1352 = vld [vmem:[#allocation5 + $0x18] sm:$0xff]
          %v1353 = vld [vmem:[#allocation4] sm:$0xff]
          %v1354 = vld [vmem:[#allocation4 + $0x8] sm:$0xff]
          %v1355 = vld [vmem:[#allocation4 + $0x10] sm:$0xff]
          %v1356 = vld [vmem:[#allocation4 + $0x18] sm:$0xff]
          %v1357 = vrcp.pop %v1353
          %v1358 = vrcp.pop %v1354
          %v1359 = vrcp.pop %v1355
          %v1360 = vrcp.pop %v1356
          %1362 = vset.pattern.permute.xlu0 0
          %1363 = vperm.xlu0 %1362, %v1357
          %v1364 = vpop.permute.xlu0 %1363
          %1367 = vset.pattern.permute.xlu0 0
          %1368 = vperm.xlu0 %1367, %v1358
          %v1369 = vpop.permute.xlu0 %1368
          %1372 = vset.pattern.permute.xlu0 0
          %1373 = vperm.xlu0 %1372, %v1359
          %v1374 = vpop.permute.xlu0 %1373
          %1377 = vset.pattern.permute.xlu0 0
          %1378 = vperm.xlu0 %1377, %v1360
          %v1379 = vpop.permute.xlu0 %1378
          %v1381 = vmul.f32 %v1349, %v1364
          %v1382 = vmul.f32 %v1350, %v1369
          %v1383 = vmul.f32 %v1351, %v1374
          %v1384 = vmul.f32 %v1352, %v1379
          %v1385 = vcombine.low %v1381, %v1383
          %v1386 = vcombine.high %v1381, %v1383
          %v1388 = vunpack.c.l.s4 1983009808
          %v1389 = vunpack.c.0.s8 %v1388
          %v1390 = vlaneseq
          %v1391 = vshrl.u32 %v1390, 7
          %v1392 = vsub.s32 %v1389, %v1391
          %v1393 = vrot.slane %v1385, %v1392
          %v1395 = vunpack.c.l.s4 1983009808
          %v1396 = vunpack.c.0.s8 %v1395
          %v1397 = vlaneseq
          %v1398 = vshrl.u32 %v1397, 7
          %v1399 = vsub.s32 %v1396, %v1398
          %v1400 = vrot.slane %v1386, %v1399
          %v1401 = vcombine.low %v1382, %v1384
          %v1402 = vcombine.high %v1382, %v1384
          %v1404 = vunpack.c.l.s4 1983009808
          %v1405 = vunpack.c.0.s8 %v1404
          %v1406 = vlaneseq
          %v1407 = vshrl.u32 %v1406, 7
          %v1408 = vsub.s32 %v1405, %v1407
          %v1409 = vrot.slane %v1401, %v1408
          %v1411 = vunpack.c.l.s4 1983009808
          %v1412 = vunpack.c.0.s8 %v1411
          %v1413 = vlaneseq
          %v1414 = vshrl.u32 %v1413, 7
          %v1415 = vsub.s32 %v1412, %v1414
          %v1416 = vrot.slane %v1402, %v1415
          %v1417 = vcombine.low %v1393, %v1409
          %v1418 = vcombine.high %v1393, %v1409
          %v1420 = vunpack.c.l.s4 1934713408
          %v1421 = vunpack.c.0.s8 %v1420
          %v1422 = vlaneseq
          %v1423 = vshrl.u32 %v1422, 7
          %v1424 = vsub.s32 %v1421, %v1423
          %v1425 = vrot.slane %v1417, %v1424
          %v1427 = vunpack.c.l.s4 1934713408
          %v1428 = vunpack.c.0.s8 %v1427
          %v1429 = vlaneseq
          %v1430 = vshrl.u32 %v1429, 7
          %v1431 = vsub.s32 %v1428, %v1430
          %v1432 = vrot.slane %v1418, %v1431
          %v1433 = vcombine.low %v1400, %v1416
          %v1434 = vcombine.high %v1400, %v1416
          %v1436 = vunpack.c.l.s4 1934713408
          %v1437 = vunpack.c.0.s8 %v1436
          %v1438 = vlaneseq
          %v1439 = vshrl.u32 %v1438, 7
          %v1440 = vsub.s32 %v1437, %v1439
          %v1441 = vrot.slane %v1433, %v1440
          %v1443 = vunpack.c.l.s4 1934713408
          %v1444 = vunpack.c.0.s8 %v1443
          %v1445 = vlaneseq
          %v1446 = vshrl.u32 %v1445, 7
          %v1447 = vsub.s32 %v1444, %v1446
          %v1448 = vrot.slane %v1434, %v1447
          %v1449 = vcombine.high %v1425, 0.0
          %v1450 = vcombine.high %v1432, 0.0
          %v1451 = vcombine.high %v1441, 0.0
          %v1452 = vcombine.high %v1448, 0.0
          %v1453 = vcombine.low %v1425, %v1432
          %v1455 = vunpack.c.l.s4 1983009808
          %v1456 = vunpack.c.0.s8 %v1455
          %v1457 = vlaneseq
          %v1458 = vshrl.u32 %v1457, 7
          %v1459 = vsub.s32 %v1456, %v1458
          %v1460 = vrot.slane %v1453, %v1459
          %v1461 = vcombine.low %v1449, %v1450
          %v1463 = vunpack.c.l.s4 1983009808
          %v1464 = vunpack.c.0.s8 %v1463
          %v1465 = vlaneseq
          %v1466 = vshrl.u32 %v1465, 7
          %v1467 = vsub.s32 %v1464, %v1466
          %v1468 = vrot.slane %v1461, %v1467
          %v1469 = vcombine.low %v1441, %v1448
          %v1471 = vunpack.c.l.s4 1983009808
          %v1472 = vunpack.c.0.s8 %v1471
          %v1473 = vlaneseq
          %v1474 = vshrl.u32 %v1473, 7
          %v1475 = vsub.s32 %v1472, %v1474
          %v1476 = vrot.slane %v1469, %v1475
          %v1477 = vcombine.low %v1451, %v1452
          %v1479 = vunpack.c.l.s4 1983009808
          %v1480 = vunpack.c.0.s8 %v1479
          %v1481 = vlaneseq
          %v1482 = vshrl.u32 %v1481, 7
          %v1483 = vsub.s32 %v1480, %v1482
          %v1484 = vrot.slane %v1477, %v1483
          %v1485 = vcombine.low %v1460, %v1468
          %v1486 = vcombine.high %v1460, %v1468
          %v1488 = vunpack.c.l.s4 1934713408
          %v1489 = vunpack.c.0.s8 %v1488
          %v1490 = vlaneseq
          %v1491 = vshrl.u32 %v1490, 7
          %v1492 = vsub.s32 %v1489, %v1491
          %v1493 = vrot.slane %v1485, %v1492
          %v1495 = vunpack.c.l.s4 1934713408
          %v1496 = vunpack.c.0.s8 %v1495
          %v1497 = vlaneseq
          %v1498 = vshrl.u32 %v1497, 7
          %v1499 = vsub.s32 %v1496, %v1498
          %v1500 = vrot.slane %v1486, %v1499
          %v1501 = vcombine.low %v1476, %v1484
          %v1502 = vcombine.high %v1476, %v1484
          %v1504 = vunpack.c.l.s4 1934713408
          %v1505 = vunpack.c.0.s8 %v1504
          %v1506 = vlaneseq
          %v1507 = vshrl.u32 %v1506, 7
          %v1508 = vsub.s32 %v1505, %v1507
          %v1509 = vrot.slane %v1501, %v1508
          %v1511 = vunpack.c.l.s4 1934713408
          %v1512 = vunpack.c.0.s8 %v1511
          %v1513 = vlaneseq
          %v1514 = vshrl.u32 %v1513, 7
          %v1515 = vsub.s32 %v1512, %v1514
          %v1516 = vrot.slane %v1502, %v1515
          %v1517 = vcombine.low %v1493, %v1509
          %v1518 = vcombine.high %v1493, %v1509
          %v1519 = vcombine.low %v1500, %v1516
          %v1520 = vcombine.high %v1500, %v1516
          %1522 = vrot.lane.b32.xlu0 %v1518, 8
          %v1523 = vpop.permute.xlu0 %1522
          %1526 = vrot.lane.b32.xlu0 %v1519, 16
          %v1527 = vpop.permute.xlu0 %1526
          %1530 = vrot.lane.b32.xlu0 %v1520, 24
          %v1531 = vpop.permute.xlu0 %1530
          %v1533 = vsel %vm835, %v1517, %v1523
          %vm1534 = vcmask 130048
          %v1535 = vsel %vm1534, %v1533, %v1527
          %vm1536 = vcmask 195584
          %v1537 = vsel %vm1536, %v1535, %v1531
          %v1538 = vpack.c.bf16 %v1537, %v1537
          %v1539 = vld [vmem:[%s5] sm:$0xf]
          %v1540 = vld [vmem:[%s5 + $0x4] sm:$0xf]
          %v1541 = vld [vmem:[%s5 + $0x8] sm:$0xf]
          %v1542 = vld [vmem:[%s5 + $0xc] sm:$0xf]
          %v1543 = vld [vmem:[%s6] sm:$0x1]
          %v1545 = vlaneseq
          %v1546 = vshrl.u32 %v1545, 7
          %v1547 = vsub.s32 0, %v1546
          %v1548 = vrot.slane %v1543, %v1547
          %v1554 = vunpack.c.l.b16 %v1539
          %v1555 = vunpack.c.l.b16 %v1540
          %v1556 = vunpack.c.l.b16 %v1541
          %v1557 = vunpack.c.l.b16 %v1542
          %v1558 = vpack.c.b16 %v1555, %v1554
          %v1559 = vpack.c.b16 %v1557, %v1556
          %vm1562 = vcmask 261120
          %v1564 = vsel %vm1562, %v1538, 0
          %1566 = vmatprep.subr.bf16.mxu0 0
          %1567 = vmatpush1.bf16.msra.mxu0 %v1558
          %1568 = vmatprep.subr.bf16.mxu0 0
          %1569 = vmatpush1.bf16.msra.mxu0 %v1559
          %1570 = vmatprep.subr.bf16.mxu0 0
          %1571 = vmatpush1.bf16.msra.mxu0 0
          %1572 = vmatprep.subr.bf16.mxu0 0
          %1573 = vmatpush1.bf16.msra.mxu0 0
          %1574 = vmatprep.subr.bf16.mxu0 0
          %1575 = vmatpush1.bf16.msra.mxu0 0
          %1576 = vmatprep.subr.bf16.mxu0 0
          %1577 = vmatpush1.bf16.msra.mxu0 0
          %1578 = vmatprep.subr.bf16.mxu0 0
          %1579 = vmatpush1.bf16.msra.mxu0 0
          %1580 = vmatprep.subr.bf16.mxu0 0
          %1581 = vmatpush1.bf16.msra.mxu0 0
          %1582 = vmatprep.subr.bf16.mxu0 0
          %1583 = vmatpush1.bf16.msra.mxu0 0
          %1584 = vmatprep.subr.bf16.mxu0 0
          %1585 = vmatpush1.bf16.msra.mxu0 0
          %1586 = vmatprep.subr.bf16.mxu0 0
          %1587 = vmatpush1.bf16.msra.mxu0 0
          %1588 = vmatprep.subr.bf16.mxu0 0
          %1589 = vmatpush1.bf16.msra.mxu0 0
          %1590 = vmatprep.subr.bf16.mxu0 0
          %1591 = vmatpush1.bf16.msra.mxu0 0
          %1592 = vmatprep.subr.bf16.mxu0 0
          %1593 = vmatpush1.bf16.msra.mxu0 0
          %1594 = vmatprep.subr.bf16.mxu0 0
          %1595 = vmatpush1.bf16.msra.mxu0 0
          %1596 = vmatprep.subr.bf16.mxu0 0
          %1597 = vmatpush1.bf16.msra.mxu0 0
          %1598 = vmatprep.mubr.bf16.mxu0 0
          %1599 = vmatmul.mubr.bf16.gmra.mrb[0].mxu0 %v1564
          %v1600 = vpop.f32.mrb[0].mxu0
          %v1601 = vadd.f32 %v1548, %v1600
          %v1602 = vpop.f32.mrb[0].mxu0
          %v1603 = vpop.f32.mrb[0].mxu0
          %v1604 = vpop.f32.mrb[0].mxu0
          %1605 = vdwg.mxu0
          %v1606 = vld [vmem:[%s567] sm:$0xff]
          %v1607 = vadd.f32 %v1606, %v1601
          %v1608 = vld [vmem:[%s11] sm:$0x1]
          %v1609 = vld [vmem:[%s12] sm:$0x1]
          %v1610 = vsel %vm1562, %v1607, 0.0
          %1611 = vadd.xlane.f32.xlu0 %v1610
          %v1612 = vpop.xlane.xlu0 %1611
          %v1613 = vrcp.pop 32.0
          %v1614 = vmul.f32 %v1612, %v1613
          %v1615 = vsub.f32 %v1607, %v1614
          %v1616 = vmul.f32 %v1615, %v1615
          %v1617 = vsel %vm1562, %v1616, 0.0
          %1618 = vadd.xlane.f32.xlu0 %v1617
          %v1619 = vpop.xlane.xlu0 %1618
          %v1620 = vmul.f32 %v1619, %v1613
          %v1621 = vadd.f32 %v1620, 1e-05
          %v1622 = vrsqrt.pop %v1621
          %v1623 = vmul.f32 %v1615, %v1622
          %v1625 = vlaneseq
          %v1626 = vshrl.u32 %v1625, 7
          %v1627 = vsub.s32 0, %v1626
          %v1628 = vrot.slane %v1608, %v1627
          %v1630 = vmul.f32 %v1623, %v1628
          %v1632 = vlaneseq
          %v1633 = vshrl.u32 %v1632, 7
          %v1634 = vsub.s32 0, %v1633
          %v1635 = vrot.slane %v1609, %v1634
          %v1637 = vadd.f32 %v1630, %v1635
          %v1638 = vpack.c.bf16 %v1637, %v1637
          %v1639 = vld [vmem:[%s7] sm:$0xf]
          %v1640 = vld [vmem:[%s7 + $0x4] sm:$0xf]
          %v1641 = vld [vmem:[%s7 + $0x8] sm:$0xf]
          %v1642 = vld [vmem:[%s7 + $0xc] sm:$0xf]
          %v1643 = vld [vmem:[%s8] sm:$0x1]
          %v1645 = vlaneseq
          %v1646 = vshrl.u32 %v1645, 7
          %v1647 = vsub.s32 0, %v1646
          %v1648 = vrot.slane %v1643, %v1647
          %v1654 = vunpack.c.l.b16 %v1639
          %v1655 = vunpack.c.l.b16 %v1640
          %v1656 = vunpack.c.l.b16 %v1641
          %v1657 = vunpack.c.l.b16 %v1642
          %v1658 = vpack.c.b16 %v1655, %v1654
          %v1659 = vpack.c.b16 %v1657, %v1656
          %v1663 = vsel %vm1562, %v1638, 0
          %1665 = vmatprep.subr.bf16.mxu0 0
          %1666 = vmatpush1.bf16.msra.mxu0 %v1658
          %1667 = vmatprep.subr.bf16.mxu0 0
          %1668 = vmatpush1.bf16.msra.mxu0 %v1659
          %1669 = vmatprep.subr.bf16.mxu0 0
          %1670 = vmatpush1.bf16.msra.mxu0 0
          %1671 = vmatprep.subr.bf16.mxu0 0
          %1672 = vmatpush1.bf16.msra.mxu0 0
          %1673 = vmatprep.subr.bf16.mxu0 0
          %1674 = vmatpush1.bf16.msra.mxu0 0
          %1675 = vmatprep.subr.bf16.mxu0 0
          %1676 = vmatpush1.bf16.msra.mxu0 0
          %1677 = vmatprep.subr.bf16.mxu0 0
          %1678 = vmatpush1.bf16.msra.mxu0 0
          %1679 = vmatprep.subr.bf16.mxu0 0
          %1680 = vmatpush1.bf16.msra.mxu0 0
          %1681 = vmatprep.subr.bf16.mxu0 0
          %1682 = vmatpush1.bf16.msra.mxu0 0
          %1683 = vmatprep.subr.bf16.mxu0 0
          %1684 = vmatpush1.bf16.msra.mxu0 0
          %1685 = vmatprep.subr.bf16.mxu0 0
          %1686 = vmatpush1.bf16.msra.mxu0 0
          %1687 = vmatprep.subr.bf16.mxu0 0
          %1688 = vmatpush1.bf16.msra.mxu0 0
          %1689 = vmatprep.subr.bf16.mxu0 0
          %1690 = vmatpush1.bf16.msra.mxu0 0
          %1691 = vmatprep.subr.bf16.mxu0 0
          %1692 = vmatpush1.bf16.msra.mxu0 0
          %1693 = vmatprep.subr.bf16.mxu0 0
          %1694 = vmatpush1.bf16.msra.mxu0 0
          %1695 = vmatprep.subr.bf16.mxu0 0
          %1696 = vmatpush1.bf16.msra.mxu0 0
          %1697 = vmatprep.mubr.bf16.mxu0 0
          %1698 = vmatmul.mubr.bf16.gmra.mrb[0].mxu0 %v1663
          %v1699 = vpop.f32.mrb[0].mxu0
          %v1700 = vadd.f32 %v1648, %v1699
          %v1701 = vpop.f32.mrb[0].mxu0
          %v1702 = vpop.f32.mrb[0].mxu0
          %v1703 = vpop.f32.mrb[0].mxu0
          %1704 = vdwg.mxu0
          %v1705 = vmax.f32 %v1700, 0.0
          %v1706 = vpack.c.bf16 %v1705, %v1705
          %v1707 = vld [vmem:[%s9] sm:$0xf]
          %v1708 = vld [vmem:[%s9 + $0x4] sm:$0xf]
          %v1709 = vld [vmem:[%s9 + $0x8] sm:$0xf]
          %v1710 = vld [vmem:[%s9 + $0xc] sm:$0xf]
          %v1711 = vld [vmem:[%s9 + $0x10] sm:$0xf]
          %v1712 = vld [vmem:[%s9 + $0x14] sm:$0xf]
          %v1713 = vld [vmem:[%s9 + $0x18] sm:$0xf]
          %v1714 = vld [vmem:[%s9 + $0x1c] sm:$0xf]
          %v1715 = vld [vmem:[%s10] sm:$0x1]
          %v1717 = vlaneseq
          %v1718 = vshrl.u32 %v1717, 7
          %v1719 = vsub.s32 0, %v1718
          %v1720 = vrot.slane %v1715, %v1719
          %v1730 = vunpack.c.l.b16 %v1707
          %v1731 = vunpack.c.l.b16 %v1708
          %v1732 = vunpack.c.l.b16 %v1709
          %v1733 = vunpack.c.l.b16 %v1710
          %v1734 = vunpack.c.l.b16 %v1711
          %v1735 = vunpack.c.l.b16 %v1712
          %v1736 = vunpack.c.l.b16 %v1713
          %v1737 = vunpack.c.l.b16 %v1714
          %v1738 = vpack.c.b16 %v1731, %v1730
          %v1739 = vpack.c.b16 %v1733, %v1732
          %v1740 = vpack.c.b16 %v1735, %v1734
          %v1741 = vpack.c.b16 %v1737, %v1736
          %vm1746 = vcmask 523264
          %v1748 = vsel %vm1746, %v1706, 0
          %1750 = vmatprep.subr.bf16.mxu0 0
          %1751 = vmatpush1.bf16.msra.mxu0 %v1738
          %1752 = vmatprep.subr.bf16.mxu0 0
          %1753 = vmatpush1.bf16.msra.mxu0 %v1739
          %1754 = vmatprep.subr.bf16.mxu0 0
          %1755 = vmatpush1.bf16.msra.mxu0 %v1740
          %1756 = vmatprep.subr.bf16.mxu0 0
          %1757 = vmatpush1.bf16.msra.mxu0 %v1741
          %1758 = vmatprep.subr.bf16.mxu0 0
          %1759 = vmatpush1.bf16.msra.mxu0 0
          %1760 = vmatprep.subr.bf16.mxu0 0
          %1761 = vmatpush1.bf16.msra.mxu0 0
          %1762 = vmatprep.subr.bf16.mxu0 0
          %1763 = vmatpush1.bf16.msra.mxu0 0
          %1764 = vmatprep.subr.bf16.mxu0 0
          %1765 = vmatpush1.bf16.msra.mxu0 0
          %1766 = vmatprep.subr.bf16.mxu0 0
          %1767 = vmatpush1.bf16.msra.mxu0 0
          %1768 = vmatprep.subr.bf16.mxu0 0
          %1769 = vmatpush1.bf16.msra.mxu0 0
          %1770 = vmatprep.subr.bf16.mxu0 0
          %1771 = vmatpush1.bf16.msra.mxu0 0
          %1772 = vmatprep.subr.bf16.mxu0 0
          %1773 = vmatpush1.bf16.msra.mxu0 0
          %1774 = vmatprep.subr.bf16.mxu0 0
          %1775 = vmatpush1.bf16.msra.mxu0 0
          %1776 = vmatprep.subr.bf16.mxu0 0
          %1777 = vmatpush1.bf16.msra.mxu0 0
          %1778 = vmatprep.subr.bf16.mxu0 0
          %1779 = vmatpush1.bf16.msra.mxu0 0
          %1780 = vmatprep.subr.bf16.mxu0 0
          %1781 = vmatpush1.bf16.msra.mxu0 0
          %1782 = vmatprep.mubr.bf16.mxu0 0
          %1783 = vmatmul.mubr.bf16.gmra.mrb[0].mxu0 %v1748
          %v1784 = vpop.f32.mrb[0].mxu0
          %v1785 = vadd.f32 %v1720, %v1784
          %v1786 = vpop.f32.mrb[0].mxu0
          %v1787 = vpop.f32.mrb[0].mxu0
          %v1788 = vpop.f32.mrb[0].mxu0
          %1789 = vdwg.mxu0
          %v1790 = vadd.f32 %v1637, %v1785
          %v1791 = vld [vmem:[%s13] sm:$0x1]
          %v1792 = vld [vmem:[%s14] sm:$0x1]
          %v1793 = vsel %vm1562, %v1790, 0.0
          %1794 = vadd.xlane.f32.xlu0 %v1793
          %v1795 = vpop.xlane.xlu0 %1794
          %v1796 = vmul.f32 %v1795, %v1613
          %v1797 = vsub.f32 %v1790, %v1796
          %v1798 = vmul.f32 %v1797, %v1797
          %v1799 = vsel %vm1562, %v1798, 0.0
          %1800 = vadd.xlane.f32.xlu0 %v1799
          %v1801 = vpop.xlane.xlu0 %1800
          %v1802 = vmul.f32 %v1801, %v1613
          %v1803 = vadd.f32 %v1802, 1e-05
          %v1804 = vrsqrt.pop %v1803
          %v1805 = vmul.f32 %v1797, %v1804
          %v1807 = vlaneseq
          %v1808 = vshrl.u32 %v1807, 7
          %v1809 = vsub.s32 0, %v1808
          %v1810 = vrot.slane %v1791, %v1809
          %v1812 = vmul.f32 %v1805, %v1810
          %v1814 = vlaneseq
          %v1815 = vshrl.u32 %v1814, 7
          %v1816 = vsub.s32 0, %v1815
          %v1817 = vrot.slane %v1792, %v1816
          %v1819 = vadd.f32 %v1812, %v1817
          %1820 = vst.msk [vmem:[%s560] sm:$0xff] %vm1562, %v1819
        $region88: #{transformer_encoder.7} parent=79 // pred_fallthru
          _
        %s1821 = sand.u32 %s394, 1
        %s1822 = scalar_lea.sflag [#allocation7], %s1821
        %s1823 = sand.u32 %s394, 1
        %s1824 = smul.addr %s1823, 8
        %s1825 = scalar_lea.vmem [#allocation6], %s1824
        // Predicated region
        $region89: #{transformer_encoder.7} parent=79 // pred_check
          %p1826 = pneg %p404
        $region90: #{transformer_encoder.7} parent=79 // pred_check_branch
          %1828 = sbr.rel (%p1826) target = $region92
        $region91: #{transformer_encoder.7} parent=79 // pred_region
          %s1830 = ssub.s32 128, 128
          %1831 = vsyncadd %s1822, %s1830
          %s1832 = sadd.s32 %s35, %s34
          %s1833 = smul.addr %s1832, 128
          %s1834 = scalar_lea.hbm %s15, %s1833
          %s1836 = sshll.u32 %s1825, 4
          %s1837 = int_to_ptr.vmem [resolvable:$true] %s1836
          %1839 = dma.vmem_to_hbm [thread:$0]  %s1837, 128, %s1834, %s1822
        $region92: #{transformer_encoder.7} parent=79 // pred_fallthru
          _
      $region80: #{transformer_encoder.7} parent=5 // pred_fallthru
        _
      %p1840 = scmp.le.s32.totalorder 2, %s24
      // Predicated region
      $region93: #{transformer_encoder.7} parent=5 // pred_check
        %p1841 = pneg %p1840
      $region94: #{transformer_encoder.7} parent=5 // pred_check_branch
        %1843 = sbr.rel (%p1841) target = $region96
      $region95: #{transformer_encoder.7} parent=5 // pred_region
        %s1844 = ssub.s32 %s24, 2
        // Predicated region
        $region97: #{transformer_encoder.7} parent=95 // pred_check
          %p1845 = pneg %p410
        $region98: #{transformer_encoder.7} parent=95 // pred_check_branch
          %1847 = sbr.rel (%p1845) target = $region100
        $region99: #{transformer_encoder.7} parent=95 // pred_region
          %s1848 = sand.u32 %s395, 1
          %s1849 = scalar_lea.sflag [#allocation7], %s1848
          %s1850 = sand.u32 %s395, 1
          %s1851 = smul.addr %s1850, 8
          %s1852 = scalar_lea.vmem [#allocation6], %s1851
          %1853 = dma.done %s1849, 128
        $region100: #{transformer_encoder.7} parent=95 // pred_fallthru
          _
      $region96: #{transformer_encoder.7} parent=5 // pred_fallthru
        _
    $region6: #{transformer_encoder.7} parent=1 // loop_footer
      %s28 = sadd.s32 1, %s24
    $region7: #{transformer_encoder.7} parent=1 // loop_footer_branch
      %23 = sbr.rel target = $region3
    $region8: #{transformer_encoder.7} parent=1 // loop_exit
      _
    %1854 = vsyncpa [#allocation7], 1
    %s1855 = scalar_lea.sflag [#allocation7], 1
    %1856 = vsyncpa %s1855, 1

</llo_original>
